<compile_context>
chip_gen: v6e
topology: v6e:2x2x1
jax: 0.10.0
libtpu: 0.0.40
codegen_flags: <defaults>
</compile_context>

<pallas_src>
import numpy as np
import jax
import jax.numpy as jnp
from jax.experimental import pallas as pl
from jax.experimental.pallas import tpu as pltpu

NUM_CLASSES = 3
NUM_ANCHORS = 3
CIN = 3
HIDDEN = 16
RAW_PER_ANCHOR = 5 + NUM_CLASSES              # [p, tx, ty, tw, th, cls...]
HEAD_CH = NUM_ANCHORS * RAW_PER_ANCHOR        # 24 head channels (field-major in kernel)
OUT_FIELDS = 8                                # [conf, cx, cy, w, h, cls, keep, pad]
OUT_CH = NUM_ANCHORS * OUT_FIELDS             # 24 decoded rows (field-major)
STRIDES = (32, 16, 8)                         # "13", "26", "52" heads, torch cat order
NUM_SCALES = len(STRIDES)
STRIDE_TO_ANCHOR_KEY = {32: 13, 16: 26, 8: 52}

CELL_BLOCK = 1024                             # lanes DMA'd per grid step
CHUNK = 512                                   # lanes computed per in-kernel chunk
NUM_CHUNKS = CELL_BLOCK // CHUNK
TAB_STRIDE = 8                                # f32 scalars per scale in the SMEM table


# ---------------------------------------------------------------------------
# Fused kernel: per-scale 1x1 conv (+ReLU) -> 1x1 head conv (MXU) -> YOLO decode
# ---------------------------------------------------------------------------
def _fused_head_decode_kernel(sid_ref, base_ref, tab_ref, x_ref,
                              w1_ref, b1_ref, w2_ref, b2_ref, anc_ref, out_ref):
    i = pl.program_id(0)
    sid = sid_ref[i]                      # which scale this tile belongs to
    base = base_ref[i]                    # first cell index of this tile within its scale
    off = sid * TAB_STRIDE
    scale = tab_ref[off + 0]              # stride / case
    thresh = tab_ref[off + 1]             # raw-logit threshold (matches torch)
    cpi = tab_ref[off + 2]                # cells per image (h*w) as f32
    inv_cpi = tab_ref[off + 3]
    gw = tab_ref[off + 4]                 # grid width as f32
    inv_gw = tab_ref[off + 5]

    A = NUM_ANCHORS
    w1 = w1_ref[0]                        # (HIDDEN, CIN)
    b1 = b1_ref[0]                        # (HIDDEN, 1)
    w2 = w2_ref[0]                        # (HEAD_CH, HIDDEN)   field-major rows
    b2 = b2_ref[0]                        # (HEAD_CH, 1)
    anc = anc_ref[0]                      # (8, 1): rows 0-2 anchor_w/case, 3-5 anchor_h/case
    aw = anc[0:A, :]                      # (3, 1)
    ah = anc[A:2 * A, :]                  # (3, 1)

    for c in range(NUM_CHUNKS):           # static unroll; chunk temps die at their store
        lo = c * CHUNK
        x = x_ref[:, lo:lo + CHUNK]                              # (CIN, CHUNK)

        # 1x1 conv #1 (K=3): VPU broadcast MAC (too small for useful MXU work) + ReLU.
        feat = b1
        for cc in range(CIN):
            feat = feat + w1[:, cc:cc + 1] * x[cc:cc + 1, :]
        feat = jnp.maximum(feat, 0.0)                            # (HIDDEN, CHUNK)

        # 1x1 conv #2 (24x16 @ 16xCHUNK): MXU, f32 accumulation.
        head = jnp.dot(w2, feat,
                       preferred_element_type=jnp.float32,
                       precision=jax.lax.Precision.HIGHEST) + b2  # (24, CHUNK)

        # Field-major (anchor-batched) slabs, each (3, CHUNK).
        p_raw = head[0 * A:1 * A, :]
        tx = head[1 * A:2 * A, :]
        ty = head[2 * A:3 * A, :]
        tw = head[3 * A:4 * A, :]
        th = head[4 * A:5 * A, :]

        # Cell coordinates shared across anchors (no meta DMA).  Reciprocal-multiply
        # with a +0.5 nudge as the exactness guard (exact for the padded grids here;
        # valid while n*h*w stays well below 2**23).
        cell = jax.lax.broadcasted_iota(jnp.int32, (1, CHUNK), 1) + (base + lo)
        cell_f = cell.astype(jnp.float32)
        img = jnp.floor((cell_f + 0.5) * inv_cpi)
        rem = cell_f - img * cpi
        gy = jnp.floor((rem + 0.5) * inv_gw)
        gx = rem - gy * gw

        conf = jax.nn.sigmoid(p_raw)                             # (3, CHUNK)
        keep = (p_raw > thresh).astype(jnp.float32)
        cx = (gx + tx) * scale
        cy = (gy + ty) * scale
        bw = aw * jnp.exp(tw)                                    # anchors pre-divided by case
        bh = ah * jnp.exp(th)

        # Per-anchor argmax over classes (first occurrence on ties, like np.argmax).
        best = head[5 * A:6 * A, :]
        best_idx = jnp.zeros_like(best)
        for ci in range(1, NUM_CLASSES):
            cur = head[(5 + ci) * A:(6 + ci) * A, :]
            best_idx = jnp.where(cur > best, jnp.float32(ci), best_idx)
            best = jnp.maximum(best, cur)

        # One lane-dense (24, CHUNK) store per chunk, field-major rows.
        out_ref[:, lo:lo + CHUNK] = jnp.concatenate(
            [conf, cx, cy, bw, bh, best_idx, keep, jnp.zeros_like(conf)], axis=0)


# ---------------------------------------------------------------------------
# Trace-time (shape-only) tiling metadata
# ---------------------------------------------------------------------------
def _build_static_meta(n, hh, ww):
    metas, tile_sid, tile_base = [], [], []
    col = 0
    for s_idx, stride in enumerate(STRIDES):
        h, w = hh // stride, ww // stride
        m = n * h * w
        n_tiles = -(-m // CELL_BLOCK)
        m_pad = n_tiles * CELL_BLOCK
        metas.append(dict(stride=stride, h=h, w=w, m=m, m_pad=m_pad, col=col))
        tile_sid += [s_idx] * n_tiles
        tile_base += [t * CELL_BLOCK for t in range(n_tiles)]
        col += m_pad
    return (metas, np.asarray(tile_sid, np.int32),
            np.asarray(tile_base, np.int32), col)


# ---------------------------------------------------------------------------
# Device-side forward (jitted): single fused pallas_call, no host sync
# ---------------------------------------------------------------------------
def _forward_device(params, image_nchw, thresh, case, anchors_arr):
    x = image_nchw.astype(jnp.float32)                           # NCHW, channels leading
    n, c, hh, ww = x.shape
    assert c == CIN and hh % 32 == 0 and ww % 32 == 0

    # TODO(synk): Yolo_V3_Net backbone is not provided in the source file; the feature
    # extractor is a deterministic stand-in (average-pool pyramid built from NCHW).
    p8 = x.reshape(n, c, hh // 8, 8, ww // 8, 8).mean(axis=(3, 5))
    p16 = p8.reshape(n, c, hh // 16, 2, ww // 16, 2).mean(axis=(3, 5))
    p32 = p16.reshape(n, c, hh // 32, 2, ww // 32, 2).mean(axis=(3, 5))
    pools = {8: p8, 16: p16, 32: p32}

    metas, tile_sid, tile_base, total_cols = _build_static_meta(n, hh, ww)

    # Channel-major (C, cells) slabs, cells in (n, y, x) order, padded per scale.
    slabs = []
    for meta in metas:
        pooled = pools[meta["stride"]]                           # (n, c, h, w)
        x_t = jnp.transpose(pooled, (1, 0, 2, 3)).reshape(c, meta["m"])
        slabs.append(jnp.pad(x_t, ((0, 0), (0, meta["m_pad"] - meta["m"]))))
    x_all = jnp.concatenate(slabs, axis=1)                       # (C, total_cols)

    # Per-scale scalar table (SMEM, 1-D) and anchor columns (VMEM, scale-blocked).
    def f32(v):
        return jnp.asarray(v, jnp.float32)

    case_f = f32(case)
    thresh_f = f32(thresh)
    tab_rows = []
    for meta in metas:
        cpi = float(meta["h"] * meta["w"])
        gwf = float(meta["w"])
        tab_rows.append(jnp.stack([
            f32(meta["stride"]) / case_f, thresh_f,
            f32(cpi), f32(1.0 / cpi), f32(gwf), f32(1.0 / gwf), f32(0.0), f32(0.0)]))
    tab = jnp.concatenate(tab_rows)                              # (NUM_SCALES*TAB_STRIDE,)

    inv_case = f32(1.0) / case_f
    anc = jnp.concatenate(
        [anchors_arr[:, :, 0] * inv_case, anchors_arr[:, :, 1] * inv_case,
         jnp.zeros((NUM_SCALES, 8 - 2 * NUM_ANCHORS), jnp.float32)],
        axis=1)[:, :, None]                                      # (NUM_SCALES, 8, 1)

    num_tiles = total_cols // CELL_BLOCK
    grid_spec = pltpu.PrefetchScalarGridSpec(
        num_scalar_prefetch=2,
        grid=(num_tiles,),
        in_specs=[
            pl.BlockSpec(memory_space=pltpu.MemorySpace.SMEM),                   # scale table
            pl.BlockSpec((CIN, CELL_BLOCK), lambda i, sid, base: (0, i)),        # features
            pl.BlockSpec((1, HIDDEN, CIN), lambda i, sid, base: (sid[i], 0, 0)),  # w1
            pl.BlockSpec((1, HIDDEN, 1), lambda i, sid, base: (sid[i], 0, 0)),    # b1
            pl.BlockSpec((1, HEAD_CH, HIDDEN), lambda i, sid, base: (sid[i], 0, 0)),  # w2 (fm)
            pl.BlockSpec((1, HEAD_CH, 1), lambda i, sid, base: (sid[i], 0, 0)),   # b2 (fm)
            pl.BlockSpec((1, 8, 1), lambda i, sid, base: (sid[i], 0, 0)),         # anchors/case
        ],
        out_specs=pl.BlockSpec((OUT_CH, CELL_BLOCK), lambda i, sid, base: (0, i)),
    )
    out_all = pl.pallas_call(
        _fused_head_decode_kernel,
        grid_spec=grid_spec,
        out_shape=jax.ShapeDtypeStruct((OUT_CH, total_cols), jnp.float32),
        compiler_params=pltpu.CompilerParams(dimension_semantics=("parallel",)),
    )(tile_sid, tile_base, tab, x_all,
      params["w1t"], params["b1t"], params["w2t_fm"], params["b2t_fm"], anc)

    # Field-major (8*3, M) -> dense rows (M*3, 8) in (n, y, x, anchor) order per scale,
    # scales concatenated in torch order (13, 26, 52).
    parts = []
    for meta in metas:
        seg = out_all[:, meta["col"]:meta["col"] + meta["m"]]
        parts.append(seg.reshape(OUT_FIELDS, NUM_ANCHORS, meta["m"])
                     .transpose(2, 1, 0).reshape(meta["m"] * NUM_ANCHORS, OUT_FIELDS))
    return jnp.concatenate(parts, axis=0)


_forward_device_jit = jax.jit(_forward_device)


# ---------------------------------------------------------------------------
# Detector wrapper
# ---------------------------------------------------------------------------
class PallasDetector:
    """Pallas TPU implementation of Detector.forward."""

    def __init__(self, key):
        # TODO(synk): 'params/net.pt' weights for Yolo_V3_Net are not available; the
        # per-scale 1x1-conv heads below are a deterministic random stand-in.
        # Field-major row permutation (free host-side reorder of the head weights).
        perm = np.asarray([a * RAW_PER_ANCHOR + f
                           for f in range(RAW_PER_ANCHOR) for a in range(NUM_ANCHORS)])
        self.params_ref = {}
        w1s, b1s, w2s, b2s = [], [], [], []
        for i, stride in enumerate(STRIDES):
            k1, k2, k3, k4 = jax.random.split(jax.random.fold_in(key, i), 4)
            w1t = 0.3 * jax.random.normal(k1, (HIDDEN, CIN), jnp.float32)
            b1t = 0.1 * jax.random.normal(k2, (HIDDEN, 1), jnp.float32)
            w2t = 0.3 * jax.random.normal(k3, (HEAD_CH, HIDDEN), jnp.float32)
            b2t = 0.1 * jax.random.normal(k4, (HEAD_CH, 1), jnp.float32)
            self.params_ref[stride] = dict(w1t=np.asarray(w1t), b1t=np.asarray(b1t),
                                           w2t=np.asarray(w2t), b2t=np.asarray(b2t))
            w1s.append(w1t)
            b1s.append(b1t)
            w2s.append(w2t[perm])
            b2s.append(b2t[perm])
        self.params_dev = dict(w1t=jnp.stack(w1s), b1t=jnp.stack(b1s),
                               w2t_fm=jnp.stack(w2s), b2t_fm=jnp.stack(b2s))

    @staticmethod
    def _anchors_arr(anchors):
        return jnp.asarray([anchors[STRIDE_TO_ANCHOR_KEY[s]] for s in STRIDES], jnp.float32)

    def dense_device(self, image_nchw, thresh, anchors, case):
        """(rows, 8) on device: cols = [conf, cx, cy, w, h, cls, keep_flag, pad]."""
        return _forward_device_jit(self.params_dev, jnp.asarray(image_nchw),
                                   jnp.float32(thresh), jnp.float32(case),
                                   self._anchors_arr(anchors))

    def __call__(self, image_nchw, thresh, anchors, case):
        dense = self.dense_device(image_nchw, thresh, anchors, case)
        dense = np.asarray(jax.block_until_ready(dense))   # single D2H transfer, all scales
        # TODO(synk): mask.nonzero() / boolean gather is dynamic-shape; the compaction
        # uses the in-kernel keep flag and happens on host after the one transfer.
        keep = dense[:, 6] > 0.5
        return dense[keep, :6]                              # == torch.cat([b13,b26,b52], 0)


# ---------------------------------------------------------------------------
# Pure-numpy reference (used only by the test in __main__)
# ---------------------------------------------------------------------------
def _reference_dense(params_ref, image_np, thresh, anchors, case):
    x = image_np.astype(np.float32)
    n, c, hh, ww = x.shape
    p8 = x.reshape(n, c, hh // 8, 8, ww // 8, 8).mean(axis=(3, 5))
    p16 = p8.reshape(n, c, hh // 16, 2, ww // 16, 2).mean(axis=(3, 5))
    p32 = p16.reshape(n, c, hh // 32, 2, ww // 32, 2).mean(axis=(3, 5))
    pools = {8: p8, 16: p16, 32: p32}
    rows, p_all, gap_all = [], [], []
    for stride in STRIDES:
        pr = params_ref[stride]
        pooled = pools[stride]                                    # (n, c, h, w)
        h, w = pooled.shape[2], pooled.shape[3]
        m = n * h * w
        feats = pooled.transpose(0, 2, 3, 1).reshape(m, c)
        feat = np.maximum(feats @ pr["w1t"].T + pr["b1t"].T, 0.0)
        head = feat @ pr["w2t"].T + pr["b2t"].T                   # (m, 24) anchor-major
        raw = head.reshape(m * NUM_ANCHORS, RAW_PER_ANCHOR)       # (n, y, x, a) order
        anc = np.asarray(anchors[STRIDE_TO_ANCHOR_KEY[stride]], np.float32)
        cell = np.arange(m)
        gy = np.repeat((cell % (h * w)) // w, NUM_ANCHORS).astype(np.float32)
        gx = np.repeat((cell % (h * w)) % w, NUM_ANCHORS).astype(np.float32)
        aa = np.tile(np.arange(NUM_ANCHORS), m)
        conf = 1.0 / (1.0 + np.exp(-raw[:, 0]))
        cx = (gx + raw[:, 1]) * stride / case
        cy = (gy + raw[:, 2]) * stride / case
        bw = anc[aa, 0] * np.exp(raw[:, 3]) / case
        bh = anc[aa, 1] * np.exp(raw[:, 4]) / case
        cls_scores = raw[:, 5:]
        cls = np.argmax(cls_scores, axis=1).astype(np.float32)
        srt = np.sort(cls_scores, axis=1)
        gap = srt[:, -1] - srt[:, -2]
        keep = (raw[:, 0] > thresh).astype(np.float32)
        rows.append(np.stack([conf, cx, cy, bw, bh, cls, keep, np.zeros_like(conf)], 1))
        p_all.append(raw[:, 0])
        gap_all.append(gap)
    return (np.concatenate(rows, 0), np.concatenate(p_all, 0), np.concatenate(gap_all, 0))


if __name__ == "__main__":
    key = jax.random.PRNGKey(0)
    k_img, k_par = jax.random.split(key)

    # Small NCHW image; strides 32/16/8 -> 2x2, 4x4, 8x8 grids.
    image = jax.random.normal(k_img, (2, 3, 64, 64), jnp.float32)
    anchors = {13: [[116, 90], [156, 198], [373, 326]],
               26: [[30, 61], [62, 45], [59, 119]],
               52: [[10, 13], [16, 30], [33, 23]]}
    thresh = 0.0
    case = 1.0

    det = PallasDetector(k_par)

    # Run the fused Pallas kernel once and block on the device result.
    dense_dev = np.asarray(jax.block_until_ready(
        det.dense_device(image, thresh, anchors, case)))

    # Correctness check vs. a pure-numpy reference (kept out of forward).
    dense_ref, p_ref, cls_gap = _reference_dense(det.params_ref, np.asarray(image),
                                                 thresh, anchors, case)
    np.testing.assert_allclose(dense_dev[:, :5], dense_ref[:, :5], rtol=2e-3, atol=2e-3)
    safe_cls = cls_gap > 1e-3
    assert np.array_equal(dense_dev[safe_cls, 5], dense_ref[safe_cls, 5])
    safe_keep = np.abs(p_ref - thresh) > 1e-3
    assert np.array_equal(dense_dev[safe_keep, 6] > 0.5, dense_ref[safe_keep, 6] > 0.5)

    boxes = det(image, thresh, anchors, case)
    assert boxes.ndim == 2 and boxes.shape[1] == 6
    print("KERNEL_OK")
</pallas_src>

<mosaic_0001>
module attributes {stable_mosaic.version = 11 : i64} {
  func.func @_fused_head_decode_kernel(%arg0: i32, %arg1: memref<3xi32, #tpu.memory_space<smem>>, %arg2: memref<3xi32, #tpu.memory_space<smem>>, %arg3: memref<24xf32, #tpu.memory_space<smem>>, %arg4: memref<3x1024xf32, #tpu.memory_space<vmem>>, %arg5: memref<1x16x3xf32, #tpu.memory_space<vmem>>, %arg6: memref<1x16x1xf32, #tpu.memory_space<vmem>>, %arg7: memref<1x24x16xf32, #tpu.memory_space<vmem>>, %arg8: memref<1x24x1xf32, #tpu.memory_space<vmem>>, %arg9: memref<1x8x1xf32, #tpu.memory_space<vmem>>, %arg10: memref<24x1024xf32, #tpu.memory_space<vmem>>) attributes {dimension_semantics = [#tpu.dimension_semantics<parallel>], iteration_bounds = array<i64: 3>, scalar_prefetch = 2 : i64, scratch_operands = 0 : i64, tpu.core_type = #tpu.core_type<tc>, window_params = [{transform_indices = @transform_0, window_bounds = array<i64: 24>}, {transform_indices = @transform_1, window_bounds = array<i64: 3, 1024>}, {transform_indices = @transform_2, window_bounds = array<i64: 1, 16, 3>}, {transform_indices = @transform_3, window_bounds = array<i64: 1, 16, 1>}, {transform_indices = @transform_4, window_bounds = array<i64: 1, 24, 16>}, {transform_indices = @transform_5, window_bounds = array<i64: 1, 24, 1>}, {transform_indices = @transform_6, window_bounds = array<i64: 1, 8, 1>}, {transform_indices = @transform_7, window_bounds = array<i64: 24, 1024>}]} {
    %0 = arith.index_cast %arg0 : i32 to index
    %1 = memref.load %arg1[%0] : memref<3xi32, #tpu.memory_space<smem>>
    %2 = arith.index_cast %arg0 : i32 to index
    %3 = memref.load %arg2[%2] : memref<3xi32, #tpu.memory_space<smem>>
    %c8_i32 = arith.constant 8 : i32
    %4 = arith.muli %1, %c8_i32 : i32
    %c0_i32 = arith.constant 0 : i32
    %5 = arith.addi %4, %c0_i32 : i32
    %6 = arith.index_cast %5 : i32 to index
    %7 = memref.load %arg3[%6] : memref<24xf32, #tpu.memory_space<smem>>
    %c1_i32 = arith.constant 1 : i32
    %8 = arith.addi %4, %c1_i32 : i32
    %9 = arith.index_cast %8 : i32 to index
    %10 = memref.load %arg3[%9] : memref<24xf32, #tpu.memory_space<smem>>
    %c2_i32 = arith.constant 2 : i32
    %11 = arith.addi %4, %c2_i32 : i32
    %12 = arith.index_cast %11 : i32 to index
    %13 = memref.load %arg3[%12] : memref<24xf32, #tpu.memory_space<smem>>
    %c3_i32 = arith.constant 3 : i32
    %14 = arith.addi %4, %c3_i32 : i32
    %15 = arith.index_cast %14 : i32 to index
    %16 = memref.load %arg3[%15] : memref<24xf32, #tpu.memory_space<smem>>
    %c4_i32 = arith.constant 4 : i32
    %17 = arith.addi %4, %c4_i32 : i32
    %18 = arith.index_cast %17 : i32 to index
    %19 = memref.load %arg3[%18] : memref<24xf32, #tpu.memory_space<smem>>
    %c5_i32 = arith.constant 5 : i32
    %20 = arith.addi %4, %c5_i32 : i32
    %21 = arith.index_cast %20 : i32 to index
    %22 = memref.load %arg3[%21] : memref<24xf32, #tpu.memory_space<smem>>
    %c0 = arith.constant 0 : index
    %c0_0 = arith.constant 0 : index
    %c0_1 = arith.constant 0 : index
    %23 = vector.load %arg5[%c0, %c0_0, %c0_1] : memref<1x16x3xf32, #tpu.memory_space<vmem>>, vector<1x16x3xf32>
    %24 = vector.shape_cast %23 : vector<1x16x3xf32> to vector<16x3xf32>
    %c0_2 = arith.constant 0 : index
    %c0_3 = arith.constant 0 : index
    %c0_4 = arith.constant 0 : index
    %25 = vector.load %arg6[%c0_2, %c0_3, %c0_4] : memref<1x16x1xf32, #tpu.memory_space<vmem>>, vector<1x16x1xf32>
    %26 = vector.shape_cast %25 : vector<1x16x1xf32> to vector<16x1xf32>
    %c0_5 = arith.constant 0 : index
    %c0_6 = arith.constant 0 : index
    %c0_7 = arith.constant 0 : index
    %27 = vector.load %arg7[%c0_5, %c0_6, %c0_7] : memref<1x24x16xf32, #tpu.memory_space<vmem>>, vector<1x24x16xf32>
    %28 = vector.shape_cast %27 : vector<1x24x16xf32> to vector<24x16xf32>
    %c0_8 = arith.constant 0 : index
    %c0_9 = arith.constant 0 : index
    %c0_10 = arith.constant 0 : index
    %29 = vector.load %arg8[%c0_8, %c0_9, %c0_10] : memref<1x24x1xf32, #tpu.memory_space<vmem>>, vector<1x24x1xf32>
    %30 = vector.shape_cast %29 : vector<1x24x1xf32> to vector<24x1xf32>
    %c0_11 = arith.constant 0 : index
    %c0_12 = arith.constant 0 : index
    %c0_13 = arith.constant 0 : index
    %31 = vector.load %arg9[%c0_11, %c0_12, %c0_13] : memref<1x8x1xf32, #tpu.memory_space<vmem>>, vector<1x8x1xf32>
    %32 = vector.shape_cast %31 : vector<1x8x1xf32> to vector<8x1xf32>
    %33 = vector.extract_strided_slice %32 {offsets = [0, 0], sizes = [3, 1], strides = [1, 1]} : vector<8x1xf32> to vector<3x1xf32>
    %34 = vector.extract_strided_slice %32 {offsets = [3, 0], sizes = [3, 1], strides = [1, 1]} : vector<8x1xf32> to vector<3x1xf32>
    %c0_14 = arith.constant 0 : index
    %c0_15 = arith.constant 0 : index
    %35 = vector.load %arg4[%c0_14, %c0_15] : memref<3x1024xf32, #tpu.memory_space<vmem>>, vector<3x512xf32>
    %36 = vector.extract_strided_slice %24 {offsets = [0, 0], sizes = [16, 1], strides = [1, 1]} : vector<16x3xf32> to vector<16x1xf32>
    %37 = vector.extract_strided_slice %35 {offsets = [0, 0], sizes = [1, 512], strides = [1, 1]} : vector<3x512xf32> to vector<1x512xf32>
    %38 = vector.broadcast %36 : vector<16x1xf32> to vector<16x512xf32>
    %39 = vector.broadcast %37 : vector<1x512xf32> to vector<16x512xf32>
    %40 = arith.mulf %38, %39 : vector<16x512xf32>
    %41 = vector.broadcast %26 : vector<16x1xf32> to vector<16x512xf32>
    %42 = arith.addf %41, %40 : vector<16x512xf32>
    %43 = vector.extract_strided_slice %24 {offsets = [0, 1], sizes = [16, 1], strides = [1, 1]} : vector<16x3xf32> to vector<16x1xf32>
    %44 = vector.extract_strided_slice %35 {offsets = [1, 0], sizes = [1, 512], strides = [1, 1]} : vector<3x512xf32> to vector<1x512xf32>
    %45 = vector.broadcast %43 : vector<16x1xf32> to vector<16x512xf32>
    %46 = vector.broadcast %44 : vector<1x512xf32> to vector<16x512xf32>
    %47 = arith.mulf %45, %46 : vector<16x512xf32>
    %48 = arith.addf %42, %47 : vector<16x512xf32>
    %49 = vector.extract_strided_slice %24 {offsets = [0, 2], sizes = [16, 1], strides = [1, 1]} : vector<16x3xf32> to vector<16x1xf32>
    %50 = vector.extract_strided_slice %35 {offsets = [2, 0], sizes = [1, 512], strides = [1, 1]} : vector<3x512xf32> to vector<1x512xf32>
    %51 = vector.broadcast %49 : vector<16x1xf32> to vector<16x512xf32>
    %52 = vector.broadcast %50 : vector<1x512xf32> to vector<16x512xf32>
    %53 = arith.mulf %51, %52 : vector<16x512xf32>
    %54 = arith.addf %48, %53 : vector<16x512xf32>
    %cst = arith.constant 0.000000e+00 : f32
    %55 = vector.broadcast %cst : f32 to vector<16x512xf32>
    %56 = arith.maximumf %54, %55 : vector<16x512xf32>
    %cst_16 = arith.constant dense<0.000000e+00> : vector<24x512xf32>
    %57 = tpu.matmul %28, %56, %cst_16 {dimension_numbers = #tpu.dot_dimension_numbers<[1], [0], [0], [1], [0, 0, 1, 1], [], []>, precision = #tpu.contract_precision<fp32>} : vector<24x16xf32>, vector<16x512xf32>, vector<24x512xf32> -> vector<24x512xf32>
    %58 = vector.broadcast %30 : vector<24x1xf32> to vector<24x512xf32>
    %59 = arith.addf %57, %58 : vector<24x512xf32>
    %60 = vector.extract_strided_slice %59 {offsets = [0, 0], sizes = [3, 512], strides = [1, 1]} : vector<24x512xf32> to vector<3x512xf32>
    %61 = vector.extract_strided_slice %59 {offsets = [3, 0], sizes = [3, 512], strides = [1, 1]} : vector<24x512xf32> to vector<3x512xf32>
    %62 = vector.extract_strided_slice %59 {offsets = [6, 0], sizes = [3, 512], strides = [1, 1]} : vector<24x512xf32> to vector<3x512xf32>
    %63 = vector.extract_strided_slice %59 {offsets = [9, 0], sizes = [3, 512], strides = [1, 1]} : vector<24x512xf32> to vector<3x512xf32>
    %64 = vector.extract_strided_slice %59 {offsets = [12, 0], sizes = [3, 512], strides = [1, 1]} : vector<24x512xf32> to vector<3x512xf32>
    %65 = tpu.iota {dimensions = array<i32: 1>} : vector<1x512xi32>
    %c0_i32_17 = arith.constant 0 : i32
    %66 = arith.addi %3, %c0_i32_17 : i32
    %67 = vector.broadcast %66 : i32 to vector<1x512xi32>
    %68 = arith.addi %65, %67 : vector<1x512xi32>
    %69 = arith.sitofp %68 : vector<1x512xi32> to vector<1x512xf32>
    %cst_18 = arith.constant 5.000000e-01 : f32
    %70 = vector.broadcast %cst_18 : f32 to vector<1x512xf32>
    %71 = arith.addf %69, %70 : vector<1x512xf32>
    %72 = vector.broadcast %16 : f32 to vector<1x512xf32>
    %73 = arith.mulf %71, %72 : vector<1x512xf32>
    %74 = math.floor %73 : vector<1x512xf32>
    %75 = vector.broadcast %13 : f32 to vector<1x512xf32>
    %76 = arith.mulf %74, %75 : vector<1x512xf32>
    %77 = arith.subf %69, %76 : vector<1x512xf32>
    %cst_19 = arith.constant 5.000000e-01 : f32
    %78 = vector.broadcast %cst_19 : f32 to vector<1x512xf32>
    %79 = arith.addf %77, %78 : vector<1x512xf32>
    %80 = vector.broadcast %22 : f32 to vector<1x512xf32>
    %81 = arith.mulf %79, %80 : vector<1x512xf32>
    %82 = math.floor %81 : vector<1x512xf32>
    %83 = vector.broadcast %19 : f32 to vector<1x512xf32>
    %84 = arith.mulf %82, %83 : vector<1x512xf32>
    %85 = arith.subf %77, %84 : vector<1x512xf32>
    %86 = arith.negf %60 : vector<3x512xf32>
    %87 = math.exp %86 : vector<3x512xf32>
    %cst_20 = arith.constant 1.000000e+00 : f32
    %88 = vector.broadcast %cst_20 : f32 to vector<3x512xf32>
    %89 = arith.addf %88, %87 : vector<3x512xf32>
    %90 = arith.divf %88, %89 : vector<3x512xf32>
    %91 = vector.broadcast %10 : f32 to vector<3x512xf32>
    %92 = arith.cmpf ogt, %60, %91 : vector<3x512xf32>
    %93 = arith.extui %92 : vector<3x512xi1> to vector<3x512xi32>
    %94 = arith.sitofp %93 : vector<3x512xi32> to vector<3x512xf32>
    %95 = vector.broadcast %85 : vector<1x512xf32> to vector<3x512xf32>
    %96 = arith.addf %95, %61 : vector<3x512xf32>
    %97 = vector.broadcast %7 : f32 to vector<3x512xf32>
    %98 = arith.mulf %96, %97 : vector<3x512xf32>
    %99 = vector.broadcast %82 : vector<1x512xf32> to vector<3x512xf32>
    %100 = arith.addf %99, %62 : vector<3x512xf32>
    %101 = vector.broadcast %7 : f32 to vector<3x512xf32>
    %102 = arith.mulf %100, %101 : vector<3x512xf32>
    %103 = math.exp %63 : vector<3x512xf32>
    %104 = vector.broadcast %33 : vector<3x1xf32> to vector<3x512xf32>
    %105 = arith.mulf %104, %103 : vector<3x512xf32>
    %106 = math.exp %64 : vector<3x512xf32>
    %107 = vector.broadcast %34 : vector<3x1xf32> to vector<3x512xf32>
    %108 = arith.mulf %107, %106 : vector<3x512xf32>
    %109 = vector.extract_strided_slice %59 {offsets = [15, 0], sizes = [3, 512], strides = [1, 1]} : vector<24x512xf32> to vector<3x512xf32>
    %cst_21 = arith.constant 0.000000e+00 : f32
    %110 = vector.broadcast %cst_21 : f32 to vector<3x512xf32>
    %111 = vector.extract_strided_slice %59 {offsets = [18, 0], sizes = [3, 512], strides = [1, 1]} : vector<24x512xf32> to vector<3x512xf32>
    %112 = arith.cmpf ogt, %111, %109 : vector<3x512xf32>
    %cst_22 = arith.constant 1.000000e+00 : f32
    %113 = vector.broadcast %cst_22 : f32 to vector<3x512xf32>
    %114 = arith.select %112, %113, %110 : vector<3x512xi1>, vector<3x512xf32>
    %115 = arith.maximumf %109, %111 : vector<3x512xf32>
    %116 = vector.extract_strided_slice %59 {offsets = [21, 0], sizes = [3, 512], strides = [1, 1]} : vector<24x512xf32> to vector<3x512xf32>
    %117 = arith.cmpf ogt, %116, %115 : vector<3x512xf32>
    %cst_23 = arith.constant 2.000000e+00 : f32
    %118 = vector.broadcast %cst_23 : f32 to vector<3x512xf32>
    %119 = arith.select %117, %118, %114 : vector<3x512xi1>, vector<3x512xf32>
    %cst_24 = arith.constant 0.000000e+00 : f32
    %120 = vector.broadcast %cst_24 : f32 to vector<3x512xf32>
    %121 = tpu.concatenate %90, %98, %102, %105, %108, %119, %94, %120 in 0 : vector<3x512xf32>, vector<3x512xf32>, vector<3x512xf32>, vector<3x512xf32>, vector<3x512xf32>, vector<3x512xf32>, vector<3x512xf32>, vector<3x512xf32> -> vector<24x512xf32>
    %c0_25 = arith.constant 0 : index
    %c0_26 = arith.constant 0 : index
    %122 = vector.load %arg10[%c0_25, %c0_26] : memref<24x1024xf32, #tpu.memory_space<vmem>>, vector<24x512xf32>
    tpu.vector_store %arg10[%c0_25, %c0_26], %121 {strides = array<i32>} : memref<24x1024xf32, #tpu.memory_space<vmem>>, vector<24x512xf32>,
    %c0_27 = arith.constant 0 : index
    %c512 = arith.constant 512 : index
    %123 = vector.load %arg4[%c0_27, %c512] : memref<3x1024xf32, #tpu.memory_space<vmem>>, vector<3x512xf32>
    %124 = vector.extract_strided_slice %24 {offsets = [0, 0], sizes = [16, 1], strides = [1, 1]} : vector<16x3xf32> to vector<16x1xf32>
    %125 = vector.extract_strided_slice %123 {offsets = [0, 0], sizes = [1, 512], strides = [1, 1]} : vector<3x512xf32> to vector<1x512xf32>
    %126 = vector.broadcast %124 : vector<16x1xf32> to vector<16x512xf32>
    %127 = vector.broadcast %125 : vector<1x512xf32> to vector<16x512xf32>
    %128 = arith.mulf %126, %127 : vector<16x512xf32>
    %129 = vector.broadcast %26 : vector<16x1xf32> to vector<16x512xf32>
    %130 = arith.addf %129, %128 : vector<16x512xf32>
    %131 = vector.extract_strided_slice %24 {offsets = [0, 1], sizes = [16, 1], strides = [1, 1]} : vector<16x3xf32> to vector<16x1xf32>
    %132 = vector.extract_strided_slice %123 {offsets = [1, 0], sizes = [1, 512], strides = [1, 1]} : vector<3x512xf32> to vector<1x512xf32>
    %133 = vector.broadcast %131 : vector<16x1xf32> to vector<16x512xf32>
    %134 = vector.broadcast %132 : vector<1x512xf32> to vector<16x512xf32>
    %135 = arith.mulf %133, %134 : vector<16x512xf32>
    %136 = arith.addf %130, %135 : vector<16x512xf32>
    %137 = vector.extract_strided_slice %24 {offsets = [0, 2], sizes = [16, 1], strides = [1, 1]} : vector<16x3xf32> to vector<16x1xf32>
    %138 = vector.extract_strided_slice %123 {offsets = [2, 0], sizes = [1, 512], strides = [1, 1]} : vector<3x512xf32> to vector<1x512xf32>
    %139 = vector.broadcast %137 : vector<16x1xf32> to vector<16x512xf32>
    %140 = vector.broadcast %138 : vector<1x512xf32> to vector<16x512xf32>
    %141 = arith.mulf %139, %140 : vector<16x512xf32>
    %142 = arith.addf %136, %141 : vector<16x512xf32>
    %cst_28 = arith.constant 0.000000e+00 : f32
    %143 = vector.broadcast %cst_28 : f32 to vector<16x512xf32>
    %144 = arith.maximumf %142, %143 : vector<16x512xf32>
    %cst_29 = arith.constant dense<0.000000e+00> : vector<24x512xf32>
    %145 = tpu.matmul %28, %144, %cst_29 {dimension_numbers = #tpu.dot_dimension_numbers<[1], [0], [0], [1], [0, 0, 1, 1], [], []>, precision = #tpu.contract_precision<fp32>} : vector<24x16xf32>, vector<16x512xf32>, vector<24x512xf32> -> vector<24x512xf32>
    %146 = vector.broadcast %30 : vector<24x1xf32> to vector<24x512xf32>
    %147 = arith.addf %145, %146 : vector<24x512xf32>
    %148 = vector.extract_strided_slice %147 {offsets = [0, 0], sizes = [3, 512], strides = [1, 1]} : vector<24x512xf32> to vector<3x512xf32>
    %149 = vector.extract_strided_slice %147 {offsets = [3, 0], sizes = [3, 512], strides = [1, 1]} : vector<24x512xf32> to vector<3x512xf32>
    %150 = vector.extract_strided_slice %147 {offsets = [6, 0], sizes = [3, 512], strides = [1, 1]} : vector<24x512xf32> to vector<3x512xf32>
    %151 = vector.extract_strided_slice %147 {offsets = [9, 0], sizes = [3, 512], strides = [1, 1]} : vector<24x512xf32> to vector<3x512xf32>
    %152 = vector.extract_strided_slice %147 {offsets = [12, 0], sizes = [3, 512], strides = [1, 1]} : vector<24x512xf32> to vector<3x512xf32>
    %153 = tpu.iota {dimensions = array<i32: 1>} : vector<1x512xi32>
    %c512_i32 = arith.constant 512 : i32
    %154 = arith.addi %3, %c512_i32 : i32
    %155 = vector.broadcast %154 : i32 to vector<1x512xi32>
    %156 = arith.addi %153, %155 : vector<1x512xi32>
    %157 = arith.sitofp %156 : vector<1x512xi32> to vector<1x512xf32>
    %cst_30 = arith.constant 5.000000e-01 : f32
    %158 = vector.broadcast %cst_30 : f32 to vector<1x512xf32>
    %159 = arith.addf %157, %158 : vector<1x512xf32>
    %160 = vector.broadcast %16 : f32 to vector<1x512xf32>
    %161 = arith.mulf %159, %160 : vector<1x512xf32>
    %162 = math.floor %161 : vector<1x512xf32>
    %163 = vector.broadcast %13 : f32 to vector<1x512xf32>
    %164 = arith.mulf %162, %163 : vector<1x512xf32>
    %165 = arith.subf %157, %164 : vector<1x512xf32>
    %cst_31 = arith.constant 5.000000e-01 : f32
    %166 = vector.broadcast %cst_31 : f32 to vector<1x512xf32>
    %167 = arith.addf %165, %166 : vector<1x512xf32>
    %168 = vector.broadcast %22 : f32 to vector<1x512xf32>
    %169 = arith.mulf %167, %168 : vector<1x512xf32>
    %170 = math.floor %169 : vector<1x512xf32>
    %171 = vector.broadcast %19 : f32 to vector<1x512xf32>
    %172 = arith.mulf %170, %171 : vector<1x512xf32>
    %173 = arith.subf %165, %172 : vector<1x512xf32>
    %174 = arith.negf %148 : vector<3x512xf32>
    %175 = math.exp %174 : vector<3x512xf32>
    %cst_32 = arith.constant 1.000000e+00 : f32
    %176 = vector.broadcast %cst_32 : f32 to vector<3x512xf32>
    %177 = arith.addf %176, %175 : vector<3x512xf32>
    %178 = arith.divf %176, %177 : vector<3x512xf32>
    %179 = vector.broadcast %10 : f32 to vector<3x512xf32>
    %180 = arith.cmpf ogt, %148, %179 : vector<3x512xf32>
    %181 = arith.extui %180 : vector<3x512xi1> to vector<3x512xi32>
    %182 = arith.sitofp %181 : vector<3x512xi32> to vector<3x512xf32>
    %183 = vector.broadcast %173 : vector<1x512xf32> to vector<3x512xf32>
    %184 = arith.addf %183, %149 : vector<3x512xf32>
    %185 = vector.broadcast %7 : f32 to vector<3x512xf32>
    %186 = arith.mulf %184, %185 : vector<3x512xf32>
    %187 = vector.broadcast %170 : vector<1x512xf32> to vector<3x512xf32>
    %188 = arith.addf %187, %150 : vector<3x512xf32>
    %189 = vector.broadcast %7 : f32 to vector<3x512xf32>
    %190 = arith.mulf %188, %189 : vector<3x512xf32>
    %191 = math.exp %151 : vector<3x512xf32>
    %192 = vector.broadcast %33 : vector<3x1xf32> to vector<3x512xf32>
    %193 = arith.mulf %192, %191 : vector<3x512xf32>
    %194 = math.exp %152 : vector<3x512xf32>
    %195 = vector.broadcast %34 : vector<3x1xf32> to vector<3x512xf32>
    %196 = arith.mulf %195, %194 : vector<3x512xf32>
    %197 = vector.extract_strided_slice %147 {offsets = [15, 0], sizes = [3, 512], strides = [1, 1]} : vector<24x512xf32> to vector<3x512xf32>
    %cst_33 = arith.constant 0.000000e+00 : f32
    %198 = vector.broadcast %cst_33 : f32 to vector<3x512xf32>
    %199 = vector.extract_strided_slice %147 {offsets = [18, 0], sizes = [3, 512], strides = [1, 1]} : vector<24x512xf32> to vector<3x512xf32>
    %200 = arith.cmpf ogt, %199, %197 : vector<3x512xf32>
    %cst_34 = arith.constant 1.000000e+00 : f32
    %201 = vector.broadcast %cst_34 : f32 to vector<3x512xf32>
    %202 = arith.select %200, %201, %198 : vector<3x512xi1>, vector<3x512xf32>
    %203 = arith.maximumf %197, %199 : vector<3x512xf32>
    %204 = vector.extract_strided_slice %147 {offsets = [21, 0], sizes = [3, 512], strides = [1, 1]} : vector<24x512xf32> to vector<3x512xf32>
    %205 = arith.cmpf ogt, %204, %203 : vector<3x512xf32>
    %cst_35 = arith.constant 2.000000e+00 : f32
    %206 = vector.broadcast %cst_35 : f32 to vector<3x512xf32>
    %207 = arith.select %205, %206, %202 : vector<3x512xi1>, vector<3x512xf32>
    %cst_36 = arith.constant 0.000000e+00 : f32
    %208 = vector.broadcast %cst_36 : f32 to vector<3x512xf32>
    %209 = tpu.concatenate %178, %186, %190, %193, %196, %207, %182, %208 in 0 : vector<3x512xf32>, vector<3x512xf32>, vector<3x512xf32>, vector<3x512xf32>, vector<3x512xf32>, vector<3x512xf32>, vector<3x512xf32>, vector<3x512xf32> -> vector<24x512xf32>
    %c0_37 = arith.constant 0 : index
    %c512_38 = arith.constant 512 : index
    %210 = vector.load %arg10[%c0_37, %c512_38] : memref<24x1024xf32, #tpu.memory_space<vmem>>, vector<24x512xf32>
    tpu.vector_store %arg10[%c0_37, %c512_38], %209 {strides = array<i32>} : memref<24x1024xf32, #tpu.memory_space<vmem>>, vector<24x512xf32>,
    return
  }
  func.func @transform_0(%arg0: i32, %arg1: memref<3xi32, #tpu.memory_space<smem>>, %arg2: memref<3xi32, #tpu.memory_space<smem>>) -> i32 {
    %c0_i32 = arith.constant 0 : i32
    %c0_i32_0 = arith.constant 0 : i32
    return %c0_i32 : i32
  }
  func.func @transform_1(%arg0: i32, %arg1: memref<3xi32, #tpu.memory_space<smem>>, %arg2: memref<3xi32, #tpu.memory_space<smem>>) -> (i32, i32) {
    %c0_i32 = arith.constant 0 : i32
    %c0_i32_0 = arith.constant 0 : i32
    return %c0_i32, %arg0 : i32, i32
  }
  func.func @transform_2(%arg0: i32, %arg1: memref<3xi32, #tpu.memory_space<smem>>, %arg2: memref<3xi32, #tpu.memory_space<smem>>) -> (i32, i32, i32) {
    %0 = arith.index_cast %arg0 : i32 to index
    %1 = memref.load %arg1[%0] : memref<3xi32, #tpu.memory_space<smem>>
    %c0_i32 = arith.constant 0 : i32
    %c0_i32_0 = arith.constant 0 : i32
    %c0_i32_1 = arith.constant 0 : i32
    return %1, %c0_i32, %c0_i32_0 : i32, i32, i32
  }
  func.func @transform_3(%arg0: i32, %arg1: memref<3xi32, #tpu.memory_space<smem>>, %arg2: memref<3xi32, #tpu.memory_space<smem>>) -> (i32, i32, i32) {
    %0 = arith.index_cast %arg0 : i32 to index
    %1 = memref.load %arg1[%0] : memref<3xi32, #tpu.memory_space<smem>>
    %c0_i32 = arith.constant 0 : i32
    %c0_i32_0 = arith.constant 0 : i32
    %c0_i32_1 = arith.constant 0 : i32
    return %1, %c0_i32, %c0_i32_0 : i32, i32, i32
  }
  func.func @transform_4(%arg0: i32, %arg1: memref<3xi32, #tpu.memory_space<smem>>, %arg2: memref<3xi32, #tpu.memory_space<smem>>) -> (i32, i32, i32) {
    %0 = arith.index_cast %arg0 : i32 to index
    %1 = memref.load %arg1[%0] : memref<3xi32, #tpu.memory_space<smem>>
    %c0_i32 = arith.constant 0 : i32
    %c0_i32_0 = arith.constant 0 : i32
    %c0_i32_1 = arith.constant 0 : i32
    return %1, %c0_i32, %c0_i32_0 : i32, i32, i32
  }
  func.func @transform_5(%arg0: i32, %arg1: memref<3xi32, #tpu.memory_space<smem>>, %arg2: memref<3xi32, #tpu.memory_space<smem>>) -> (i32, i32, i32) {
    %0 = arith.index_cast %arg0 : i32 to index
    %1 = memref.load %arg1[%0] : memref<3xi32, #tpu.memory_space<smem>>
    %c0_i32 = arith.constant 0 : i32
    %c0_i32_0 = arith.constant 0 : i32
    %c0_i32_1 = arith.constant 0 : i32
    return %1, %c0_i32, %c0_i32_0 : i32, i32, i32
  }
  func.func @transform_6(%arg0: i32, %arg1: memref<3xi32, #tpu.memory_space<smem>>, %arg2: memref<3xi32, #tpu.memory_space<smem>>) -> (i32, i32, i32) {
    %0 = arith.index_cast %arg0 : i32 to index
    %1 = memref.load %arg1[%0] : memref<3xi32, #tpu.memory_space<smem>>
    %c0_i32 = arith.constant 0 : i32
    %c0_i32_0 = arith.constant 0 : i32
    %c0_i32_1 = arith.constant 0 : i32
    return %1, %c0_i32, %c0_i32_0 : i32, i32, i32
  }
  func.func @transform_7(%arg0: i32, %arg1: memref<3xi32, #tpu.memory_space<smem>>, %arg2: memref<3xi32, #tpu.memory_space<smem>>) -> (i32, i32) {
    %c0_i32 = arith.constant 0 : i32
    %c0_i32_0 = arith.constant 0 : i32
    return %c0_i32, %arg0 : i32, i32
  }
}

</mosaic_0001>

<llo_original>
// kernel: _forward_device.1
$region0: #{_forward_device.1}
  #allocation0 [shape = 'u32[]', space=smem, size = 0x4, offset = 0x4, fixed_abs, tag = 'smem constant byte address 0x4 - core index']
  #allocation1 [shape = 'u32[144,128]{1,0:T(1,128)}', space=vmem, size = 0x12000, scoped, tag = 'internal scratch']
  #allocation2 [shape = 's32[1]{0}', space=sflag, size = 0x4, scoped, tag = 'scoped memory for _forward_device.1']
  #allocation3 [shape = 'u8[512]{0}', space=smem, size = 0x200, scoped, tag = 'prefetched SMEM operand 0']
  #allocation4 [shape = 'u8[512]{0}', space=smem, size = 0x200, scoped, tag = 'prefetched SMEM operand 1']
  %s0 = inlined_call_operand.vmem [shape: s32[3], index: 0, kind: input, shape index: {}]
  %s1 = inlined_call_operand.vmem [shape: s32[3], index: 1, kind: input, shape index: {}]
  %s2 = inlined_call_operand.vmem [shape: f32[24], index: 2, kind: input, shape index: {}]
  %s3 = inlined_call_operand.vmem [shape: f32[3,3072], index: 3, kind: input, shape index: {}]
  %s4 = inlined_call_operand.vmem [shape: f32[3,16,3], index: 4, kind: input, shape index: {}]
  %s5 = inlined_call_operand.vmem [shape: f32[3,16,1], index: 5, kind: input, shape index: {}]
  %s6 = inlined_call_operand.vmem [shape: f32[3,24,16], index: 6, kind: input, shape index: {}]
  %s7 = inlined_call_operand.vmem [shape: f32[3,24,1], index: 7, kind: input, shape index: {}]
  %s8 = inlined_call_operand.vmem [shape: f32[3,8,1], index: 8, kind: input, shape index: {}]
  %s9 = inlined_call_operand.vmem [shape: f32[24,3072], index: 9, kind: output, shape index: {}]
  %s10 = sld [smem:[#allocation0]]
  $region84: #{_forward_device.1} parent=0
    _
  %s12 = ssub.s32 1, %s10
  %s13 = scalar_select 0, %s12, %s10
  %s14 = sshll.u32 %s0, 4
  %s15 = int_to_ptr.vmem [resolvable:$true] %s14
  %17 = dma.vmem_to_smem %s15, 16, [#allocation3], [#allocation2]
  %s18 = sshll.u32 %s1, 4
  %s19 = int_to_ptr.vmem [resolvable:$true] %s18
  %21 = dma.vmem_to_smem %s19, 16, [#allocation4], [#allocation2]
  %22 = dma.done [#allocation2], 32
  %23 = sfence
  $region1: #{_forward_device.1} parent=0
    #allocation5 [shape = 'u8[512]{0}', space=smem, size = 0x200, scoped, tag = 'input window, operand 2, single buffered']
    #allocation6 [shape = 's32[2]{0}', space=sflag, size = 0x8, scoped, tag = 'scoped memory for _forward_device.1']
    #allocation7 [shape = 'u8[196608]{0}', space=vmem, size = 0x30000, scoped, tag = 'output window, operand 0']
    %24 = vsyncpa [#allocation6], 0
    loop: start=0, step=1, limit=5
    $region2: #{_forward_device.1} parent=1 // loop_pre_header
      _
    $region3: #{_forward_device.1} parent=1 // loop_header
      %s26 = sphi 0, %s30
      %p27 = scmp.ge.s32.totalorder %s26, 5
      %s34 = sphi 0, %s34
      %s36 = sphi 0, %s34
      %s37 = sphi 0, %s36
      %s51 = sphi 0, %s37
      %s57 = sphi 0, %s59
      %s60 = sphi 0, %s57
      %s61 = sphi 0, %s60
      %s77 = sphi 0, %s61
      %s85 = sphi 0, %s87
      %s88 = sphi 0, %s85
      %s89 = sphi 0, %s88
      %s105 = sphi 0, %s89
      %s113 = sphi 0, %s115
      %s116 = sphi 0, %s113
      %s117 = sphi 0, %s116
      %s133 = sphi 0, %s117
      %s141 = sphi 0, %s143
      %s144 = sphi 0, %s141
      %s145 = sphi 0, %s144
      %s161 = sphi 0, %s145
      %s169 = sphi 0, %s171
      %s172 = sphi 0, %s169
      %s173 = sphi 0, %s172
      %s189 = sphi 0, %s173
      %s197 = sphi 0, %s199
      %s200 = sphi 0, %s197
      %s201 = sphi 0, %s200
      %s217 = sphi 0, %s201
      %s223 = sphi 0, %s225
      %s226 = sphi 0, %s223
      %s227 = sphi 0, %s226
      %s243 = sphi 0, %s227
    $region4: #{_forward_device.1} parent=1 // loop_header_branch
      %29 = sbr.rel (%p27) target = $region8
    $region5: #{_forward_device.1} parent=1 // loop_body
      %s31 = ssub.s32 %s26, 1
      %s32 = ssub.s32 %s26, 2
      %s33 = sadd.s32 %s26, 1
      %s35 = sadd.s32 %s34, 1
      %p38 = scmp.eq.s32.totalorder %s26, 2
      %p39 = scmp.ne.s32.totalorder %s34, %s36
      %p40 = scmp.eq.s32.totalorder %s26, 0
      %p41 = por %p39, %p40
      %p42 = scmp.ne.s32.totalorder %s34, %s36
      %p43 = scmp.eq.s32.totalorder %s31, 2
      %p44 = por %p42, %p43
      %p45 = scmp.ne.s32.totalorder %s36, %s37
      %p46 = scmp.eq.s32.totalorder %s31, 0
      %p47 = por %p45, %p46
      %p48 = scmp.ne.s32.totalorder %s36, %s37
      %p49 = scmp.eq.s32.totalorder %s32, 2
      %p50 = por %p48, %p49
      %p52 = scmp.ne.s32.totalorder %s37, %s51
      %p53 = scmp.eq.s32.totalorder %s32, 0
      %p54 = por %p52, %p53
      %s55 = ssub.s32 %s26, %s33
      %p56 = scmp.eq.s32.totalorder %s55, 0
      %s58 = sadd.s32 %s57, 1
      %s59 = scalar_select %p56, %s57, %s58
      %p62 = pneg %p56
      %p63 = scmp.eq.s32.totalorder %s26, 2
      %p64 = por %p62, %p63
      %p65 = scmp.ne.s32.totalorder %s57, %s60
      %p66 = scmp.eq.s32.totalorder %s26, 0
      %p67 = por %p65, %p66
      %p68 = scmp.ne.s32.totalorder %s57, %s60
      %p69 = scmp.eq.s32.totalorder %s31, 2
      %p70 = por %p68, %p69
      %p71 = scmp.ne.s32.totalorder %s60, %s61
      %p72 = scmp.eq.s32.totalorder %s31, 0
      %p73 = por %p71, %p72
      %p74 = scmp.ne.s32.totalorder %s60, %s61
      %p75 = scmp.eq.s32.totalorder %s32, 2
      %p76 = por %p74, %p75
      %p78 = scmp.ne.s32.totalorder %s61, %s77
      %p79 = scmp.eq.s32.totalorder %s32, 0
      %p80 = por %p78, %p79
      %s81 = sld [smem:[#allocation3 + %s26]]
      %s82 = sld [smem:[#allocation3 + %s33]]
      %s83 = ssub.s32 %s81, %s82
      %p84 = scmp.eq.s32.totalorder %s83, 0
      %s86 = sadd.s32 %s85, 1
      %s87 = scalar_select %p84, %s85, %s86
      %p90 = pneg %p84
      %p91 = scmp.eq.s32.totalorder %s26, 2
      %p92 = por %p90, %p91
      %p93 = scmp.ne.s32.totalorder %s85, %s88
      %p94 = scmp.eq.s32.totalorder %s26, 0
      %p95 = por %p93, %p94
      %p96 = scmp.ne.s32.totalorder %s85, %s88
      %p97 = scmp.eq.s32.totalorder %s31, 2
      %p98 = por %p96, %p97
      %p99 = scmp.ne.s32.totalorder %s88, %s89
      %p100 = scmp.eq.s32.totalorder %s31, 0
      %p101 = por %p99, %p100
      %p102 = scmp.ne.s32.totalorder %s88, %s89
      %p103 = scmp.eq.s32.totalorder %s32, 2
      %p104 = por %p102, %p103
      %p106 = scmp.ne.s32.totalorder %s89, %s105
      %p107 = scmp.eq.s32.totalorder %s32, 0
      %p108 = por %p106, %p107
      %s109 = sld [smem:[#allocation3 + %s26]]
      %s110 = sld [smem:[#allocation3 + %s33]]
      %s111 = ssub.s32 %s109, %s110
      %p112 = scmp.eq.s32.totalorder %s111, 0
      %s114 = sadd.s32 %s113, 1
      %s115 = scalar_select %p112, %s113, %s114
      %p118 = pneg %p112
      %p119 = scmp.eq.s32.totalorder %s26, 2
      %p120 = por %p118, %p119
      %p121 = scmp.ne.s32.totalorder %s113, %s116
      %p122 = scmp.eq.s32.totalorder %s26, 0
      %p123 = por %p121, %p122
      %p124 = scmp.ne.s32.totalorder %s113, %s116
      %p125 = scmp.eq.s32.totalorder %s31, 2
      %p126 = por %p124, %p125
      %p127 = scmp.ne.s32.totalorder %s116, %s117
      %p128 = scmp.eq.s32.totalorder %s31, 0
      %p129 = por %p127, %p128
      %p130 = scmp.ne.s32.totalorder %s116, %s117
      %p131 = scmp.eq.s32.totalorder %s32, 2
      %p132 = por %p130, %p131
      %p134 = scmp.ne.s32.totalorder %s117, %s133
      %p135 = scmp.eq.s32.totalorder %s32, 0
      %p136 = por %p134, %p135
      %s137 = sld [smem:[#allocation3 + %s26]]
      %s138 = sld [smem:[#allocation3 + %s33]]
      %s139 = ssub.s32 %s137, %s138
      %p140 = scmp.eq.s32.totalorder %s139, 0
      %s142 = sadd.s32 %s141, 1
      %s143 = scalar_select %p140, %s141, %s142
      %p146 = pneg %p140
      %p147 = scmp.eq.s32.totalorder %s26, 2
      %p148 = por %p146, %p147
      %p149 = scmp.ne.s32.totalorder %s141, %s144
      %p150 = scmp.eq.s32.totalorder %s26, 0
      %p151 = por %p149, %p150
      %p152 = scmp.ne.s32.totalorder %s141, %s144
      %p153 = scmp.eq.s32.totalorder %s31, 2
      %p154 = por %p152, %p153
      %p155 = scmp.ne.s32.totalorder %s144, %s145
      %p156 = scmp.eq.s32.totalorder %s31, 0
      %p157 = por %p155, %p156
      %p158 = scmp.ne.s32.totalorder %s144, %s145
      %p159 = scmp.eq.s32.totalorder %s32, 2
      %p160 = por %p158, %p159
      %p162 = scmp.ne.s32.totalorder %s145, %s161
      %p163 = scmp.eq.s32.totalorder %s32, 0
      %p164 = por %p162, %p163
      %s165 = sld [smem:[#allocation3 + %s26]]
      %s166 = sld [smem:[#allocation3 + %s33]]
      %s167 = ssub.s32 %s165, %s166
      %p168 = scmp.eq.s32.totalorder %s167, 0
      %s170 = sadd.s32 %s169, 1
      %s171 = scalar_select %p168, %s169, %s170
      %p174 = pneg %p168
      %p175 = scmp.eq.s32.totalorder %s26, 2
      %p176 = por %p174, %p175
      %p177 = scmp.ne.s32.totalorder %s169, %s172
      %p178 = scmp.eq.s32.totalorder %s26, 0
      %p179 = por %p177, %p178
      %p180 = scmp.ne.s32.totalorder %s169, %s172
      %p181 = scmp.eq.s32.totalorder %s31, 2
      %p182 = por %p180, %p181
      %p183 = scmp.ne.s32.totalorder %s172, %s173
      %p184 = scmp.eq.s32.totalorder %s31, 0
      %p185 = por %p183, %p184
      %p186 = scmp.ne.s32.totalorder %s172, %s173
      %p187 = scmp.eq.s32.totalorder %s32, 2
      %p188 = por %p186, %p187
      %p190 = scmp.ne.s32.totalorder %s173, %s189
      %p191 = scmp.eq.s32.totalorder %s32, 0
      %p192 = por %p190, %p191
      %s193 = sld [smem:[#allocation3 + %s26]]
      %s194 = sld [smem:[#allocation3 + %s33]]
      %s195 = ssub.s32 %s193, %s194
      %p196 = scmp.eq.s32.totalorder %s195, 0
      %s198 = sadd.s32 %s197, 1
      %s199 = scalar_select %p196, %s197, %s198
      %p202 = pneg %p196
      %p203 = scmp.eq.s32.totalorder %s26, 2
      %p204 = por %p202, %p203
      %p205 = scmp.ne.s32.totalorder %s197, %s200
      %p206 = scmp.eq.s32.totalorder %s26, 0
      %p207 = por %p205, %p206
      %p208 = scmp.ne.s32.totalorder %s197, %s200
      %p209 = scmp.eq.s32.totalorder %s31, 2
      %p210 = por %p208, %p209
      %p211 = scmp.ne.s32.totalorder %s200, %s201
      %p212 = scmp.eq.s32.totalorder %s31, 0
      %p213 = por %p211, %p212
      %p214 = scmp.ne.s32.totalorder %s200, %s201
      %p215 = scmp.eq.s32.totalorder %s32, 2
      %p216 = por %p214, %p215
      %p218 = scmp.ne.s32.totalorder %s201, %s217
      %p219 = scmp.eq.s32.totalorder %s32, 0
      %p220 = por %p218, %p219
      %s221 = ssub.s32 %s26, %s33
      %p222 = scmp.eq.s32.totalorder %s221, 0
      %s224 = sadd.s32 %s223, 1
      %s225 = scalar_select %p222, %s223, %s224
      %p228 = pneg %p222
      %p229 = scmp.eq.s32.totalorder %s26, 2
      %p230 = por %p228, %p229
      %p231 = scmp.ne.s32.totalorder %s223, %s226
      %p232 = scmp.eq.s32.totalorder %s26, 0
      %p233 = por %p231, %p232
      %p234 = scmp.ne.s32.totalorder %s223, %s226
      %p235 = scmp.eq.s32.totalorder %s31, 2
      %p236 = por %p234, %p235
      %p237 = scmp.ne.s32.totalorder %s226, %s227
      %p238 = scmp.eq.s32.totalorder %s31, 0
      %p239 = por %p237, %p238
      %p240 = scmp.ne.s32.totalorder %s226, %s227
      %p241 = scmp.eq.s32.totalorder %s32, 2
      %p242 = por %p240, %p241
      %p244 = scmp.ne.s32.totalorder %s227, %s243
      %p245 = scmp.eq.s32.totalorder %s32, 0
      %p246 = por %p244, %p245
      %p247 = scmp.le.s32.totalorder 1, %s26
      %p248 = scmp.lt.s32.totalorder %s26, 4
      %p249 = pnand %p247, %p248
      %p250 = pneg %p249
      // Predicated region
      $region9: #{_forward_device.1} parent=5 // pred_check
        _
      $region10: #{_forward_device.1} parent=5 // pred_check_branch
        %252 = sbr.rel (%p249) target = $region12
      $region11: #{_forward_device.1} parent=5 // pred_region
        %s253 = ssub.s32 %s26, 1
        // Predicated region
        $region13: #{_forward_device.1} parent=11 // pred_check
          %p254 = pneg %p47
        $region14: #{_forward_device.1} parent=11 // pred_check_branch
          %256 = sbr.rel (%p254) target = $region16
        $region15: #{_forward_device.1} parent=11 // pred_region
          %s258 = ssub.s32 16, 16
          %259 = vsyncadd [#allocation6], %s258
          %s261 = sshll.u32 %s2, 4
          %s262 = int_to_ptr.vmem [resolvable:$true] %s261
          %264 = dma.vmem_to_smem %s262, 16, [#allocation5], [#allocation6]
        $region16: #{_forward_device.1} parent=11 // pred_fallthru
          _
      $region12: #{_forward_device.1} parent=5 // pred_fallthru
        _
      %p265 = scmp.lt.s32.totalorder %s26, 3
      // Predicated region
      $region17: #{_forward_device.1} parent=5 // pred_check
        %p266 = pneg %p265
      $region18: #{_forward_device.1} parent=5 // pred_check_branch
        %268 = sbr.rel (%p266) target = $region20
      $region19: #{_forward_device.1} parent=5 // pred_region
        // Predicated region
        $region21: #{_forward_device.1} parent=19 // pred_check
          %p269 = pneg %p67
        $region22: #{_forward_device.1} parent=19 // pred_check_branch
          %271 = sbr.rel (%p269) target = $region24
        $region23: #{_forward_device.1} parent=19 // pred_region
          %s272 = smul.u32 8, %s26
          %p273 = scmp.lt.s32.totalorder %s272, 23
          %s274 = scalar_select %p273, %s272, 23
          %s275 = smul.addr %s274, 4
          %s276 = scalar_lea.vmem %s3, %s275
          %s277 = smul.u32 8, %s26
        $region24: #{_forward_device.1} parent=19 // pred_fallthru
          _
        // Predicated region
        $region25: #{_forward_device.1} parent=19 // pred_check
          %p278 = pneg %p95
        $region26: #{_forward_device.1} parent=19 // pred_check_branch
          %280 = sbr.rel (%p278) target = $region28
        $region27: #{_forward_device.1} parent=19 // pred_region
          %s281 = sld [smem:[#allocation3 + %s26]]
          %p282 = scmp.lt.s32.totalorder %s281, 2
          %s283 = scalar_select %p282, %s281, 2
          %s284 = smul.addr %s283, 2
          %s285 = smul.addr %s284, 8
          %s286 = scalar_lea.vmem %s4, %s285
          %s287 = sld [smem:[#allocation3 + %s26]]
        $region28: #{_forward_device.1} parent=19 // pred_fallthru
          _
        // Predicated region
        $region29: #{_forward_device.1} parent=19 // pred_check
          %p288 = pneg %p123
        $region30: #{_forward_device.1} parent=19 // pred_check_branch
          %290 = sbr.rel (%p288) target = $region32
        $region31: #{_forward_device.1} parent=19 // pred_region
          %s291 = sld [smem:[#allocation3 + %s26]]
          %p292 = scmp.lt.s32.totalorder %s291, 2
          %s293 = scalar_select %p292, %s291, 2
          %s294 = smul.addr %s293, 2
          %s295 = smul.addr %s294, 8
          %s296 = scalar_lea.vmem %s5, %s295
          %s297 = sld [smem:[#allocation3 + %s26]]
        $region32: #{_forward_device.1} parent=19 // pred_fallthru
          _
        // Predicated region
        $region33: #{_forward_device.1} parent=19 // pred_check
          %p298 = pneg %p151
        $region34: #{_forward_device.1} parent=19 // pred_check_branch
          %300 = sbr.rel (%p298) target = $region36
        $region35: #{_forward_device.1} parent=19 // pred_region
          %s301 = sld [smem:[#allocation3 + %s26]]
          %p302 = scmp.lt.s32.totalorder %s301, 2
          %s303 = scalar_select %p302, %s301, 2
          %s304 = smul.addr %s303, 3
          %s305 = smul.addr %s304, 8
          %s306 = scalar_lea.vmem %s6, %s305
          %s307 = sld [smem:[#allocation3 + %s26]]
        $region36: #{_forward_device.1} parent=19 // pred_fallthru
          _
        // Predicated region
        $region37: #{_forward_device.1} parent=19 // pred_check
          %p308 = pneg %p179
        $region38: #{_forward_device.1} parent=19 // pred_check_branch
          %310 = sbr.rel (%p308) target = $region40
        $region39: #{_forward_device.1} parent=19 // pred_region
          %s311 = sld [smem:[#allocation3 + %s26]]
          %p312 = scmp.lt.s32.totalorder %s311, 2
          %s313 = scalar_select %p312, %s311, 2
          %s314 = smul.addr %s313, 3
          %s315 = smul.addr %s314, 8
          %s316 = scalar_lea.vmem %s7, %s315
          %s317 = sld [smem:[#allocation3 + %s26]]
        $region40: #{_forward_device.1} parent=19 // pred_fallthru
          _
        // Predicated region
        $region41: #{_forward_device.1} parent=19 // pred_check
          %p318 = pneg %p207
        $region42: #{_forward_device.1} parent=19 // pred_check_branch
          %320 = sbr.rel (%p318) target = $region44
        $region43: #{_forward_device.1} parent=19 // pred_region
          %s321 = sld [smem:[#allocation3 + %s26]]
          %p322 = scmp.lt.s32.totalorder %s321, 2
          %s323 = scalar_select %p322, %s321, 2
          %s324 = smul.addr %s323, 8
          %s325 = scalar_lea.vmem %s8, %s324
          %s326 = sld [smem:[#allocation3 + %s26]]
        $region44: #{_forward_device.1} parent=19 // pred_fallthru
          _
      $region20: #{_forward_device.1} parent=5 // pred_fallthru
        _
      %p327 = scmp.le.s32.totalorder 1, %s26
      %p328 = scmp.lt.s32.totalorder %s26, 4
      %p329 = pnand %p327, %p328
      %p330 = pneg %p329
      // Predicated region
      $region45: #{_forward_device.1} parent=5 // pred_check
        _
      $region46: #{_forward_device.1} parent=5 // pred_check_branch
        %332 = sbr.rel (%p329) target = $region48
      $region47: #{_forward_device.1} parent=5 // pred_region
        %s333 = ssub.s32 %s26, 1
        // Predicated region
        $region49: #{_forward_device.1} parent=47 // pred_check
          %p334 = pneg %p47
        $region50: #{_forward_device.1} parent=47 // pred_check_branch
          %336 = sbr.rel (%p334) target = $region52
        $region51: #{_forward_device.1} parent=47 // pred_region
          %337 = dma.done [#allocation6], 16
        $region52: #{_forward_device.1} parent=47 // pred_fallthru
          _
        %338 = sfence
        %p339 = pneg %p47
        %p340 = pneg %p44
        %s341 = smul.u32 8, %s31
        %p342 = scmp.lt.s32.totalorder %s341, 23
        %s343 = scalar_select %p342, %s341, 23
        %s344 = smul.addr %s343, 4
        %s345 = scalar_lea.vmem %s3, %s344
        %p346 = pneg %p73
        %p347 = pneg %p70
        %s348 = sld [smem:[#allocation3 + %s31]]
        %p349 = scmp.lt.s32.totalorder %s348, 2
        %s350 = scalar_select %p349, %s348, 2
        %s351 = smul.addr %s350, 2
        %s352 = smul.addr %s351, 8
        %s353 = scalar_lea.vmem %s4, %s352
        %p354 = pneg %p101
        %p355 = pneg %p98
        %s356 = sld [smem:[#allocation3 + %s31]]
        %p357 = scmp.lt.s32.totalorder %s356, 2
        %s358 = scalar_select %p357, %s356, 2
        %s359 = smul.addr %s358, 2
        %s360 = smul.addr %s359, 8
        %s361 = scalar_lea.vmem %s5, %s360
        %p362 = pneg %p129
        %p363 = pneg %p126
        %s364 = sld [smem:[#allocation3 + %s31]]
        %p365 = scmp.lt.s32.totalorder %s364, 2
        %s366 = scalar_select %p365, %s364, 2
        %s367 = smul.addr %s366, 3
        %s368 = smul.addr %s367, 8
        %s369 = scalar_lea.vmem %s6, %s368
        %p370 = pneg %p157
        %p371 = pneg %p154
        %s372 = sld [smem:[#allocation3 + %s31]]
        %p373 = scmp.lt.s32.totalorder %s372, 2
        %s374 = scalar_select %p373, %s372, 2
        %s375 = smul.addr %s374, 3
        %s376 = smul.addr %s375, 8
        %s377 = scalar_lea.vmem %s7, %s376
        %p378 = pneg %p185
        %p379 = pneg %p182
        %s380 = sld [smem:[#allocation3 + %s31]]
        %p381 = scmp.lt.s32.totalorder %s380, 2
        %s382 = scalar_select %p381, %s380, 2
        %s383 = smul.addr %s382, 8
        %s384 = scalar_lea.vmem %s8, %s383
        %p385 = pneg %p213
        %p386 = pneg %p210
        %p387 = pneg %p239
        %p388 = pneg %p236
        %s389 = sand.u32 %s226, 1
        %s390 = sand.u32 %s226, 1
        %s391 = smul.addr %s390, 192
        %s392 = scalar_lea.vmem [#allocation7], %s391
        %s393 = smul.u32 8, %s31
        %p394 = scmp.lt.s32.totalorder %s393, 23
        %s395 = scalar_select %p394, %s393, 23
        %s396 = smul.addr %s395, 4
        %s397 = scalar_lea.vmem %s3, %s396
        %s398 = smul.u32 8, %s31
        %s399 = sld [smem:[#allocation3 + %s31]]
        %p400 = scmp.lt.s32.totalorder %s399, 2
        %s401 = scalar_select %p400, %s399, 2
        %s402 = smul.addr %s401, 2
        %s403 = smul.addr %s402, 8
        %s404 = scalar_lea.vmem %s4, %s403
        %s405 = sld [smem:[#allocation3 + %s31]]
        %s406 = sld [smem:[#allocation3 + %s31]]
        %p407 = scmp.lt.s32.totalorder %s406, 2
        %s408 = scalar_select %p407, %s406, 2
        %s409 = smul.addr %s408, 2
        %s410 = smul.addr %s409, 8
        %s411 = scalar_lea.vmem %s5, %s410
        %s412 = sld [smem:[#allocation3 + %s31]]
        %s413 = sld [smem:[#allocation3 + %s31]]
        %p414 = scmp.lt.s32.totalorder %s413, 2
        %s415 = scalar_select %p414, %s413, 2
        %s416 = smul.addr %s415, 3
        %s417 = smul.addr %s416, 8
        %s418 = scalar_lea.vmem %s6, %s417
        %s419 = sld [smem:[#allocation3 + %s31]]
        %s420 = sld [smem:[#allocation3 + %s31]]
        %p421 = scmp.lt.s32.totalorder %s420, 2
        %s422 = scalar_select %p421, %s420, 2
        %s423 = smul.addr %s422, 3
        %s424 = smul.addr %s423, 8
        %s425 = scalar_lea.vmem %s7, %s424
        %s426 = sld [smem:[#allocation3 + %s31]]
        %s427 = sld [smem:[#allocation3 + %s31]]
        %p428 = scmp.lt.s32.totalorder %s427, 2
        %s429 = scalar_select %p428, %s427, 2
        %s430 = smul.addr %s429, 8
        %s431 = scalar_lea.vmem %s8, %s430
        %s432 = sld [smem:[#allocation3 + %s31]]
        %s433 = smul.u32 8, %s31
        %s434 = sld [smem:[#allocation3 + %s31]]
        %s435 = sld [smem:[#allocation4 + %s31]]
        %s436 = smul.u32 %s434, 8
        %s437 = sld [smem:[#allocation5 + %s436]]
        %s438 = sadd.s32 %s436, 1
        %s439 = sld [smem:[#allocation5 + %s438]]
        %s440 = sadd.s32 %s436, 2
        %s441 = sld [smem:[#allocation5 + %s440]]
        %s442 = sadd.s32 %s436, 3
        %s443 = sld [smem:[#allocation5 + %s442]]
        %s444 = sadd.s32 %s436, 4
        %s445 = sld [smem:[#allocation5 + %s444]]
        %s446 = sadd.s32 %s436, 5
        %s447 = sld [smem:[#allocation5 + %s446]]
        %v448 = vld [vmem:[%s404] sm:$0xff]
        %v449 = vld [vmem:[%s404 + $0x8] sm:$0xff]
        %v450 = vld [vmem:[%s411] sm:$0xff]
        %v451 = vld [vmem:[%s411 + $0x8] sm:$0xff]
        %v452 = vld [vmem:[%s418] sm:$0xff]
        %v453 = vld [vmem:[%s418 + $0x8] sm:$0xff]
        %v454 = vld [vmem:[%s418 + $0x10] sm:$0xff]
        %v455 = vld [vmem:[%s425] sm:$0xff]
        %v456 = vld [vmem:[%s425 + $0x8] sm:$0xff]
        %v457 = vld [vmem:[%s425 + $0x10] sm:$0xff]
        %v458 = vld [vmem:[%s431] sm:$0xff]
        %v459 = vld [vmem:[%s397] sm:$0x77]
        %v460 = vld [vmem:[%s397 + $0x8] sm:$0x77]
        %462 = vset.pattern.permute.xlu0 0
        %463 = vperm.xlu0 %462, %v448
        %v464 = vpop.permute.xlu0 %463
        %467 = vset.pattern.permute.xlu0 0
        %468 = vperm.xlu0 %467, %v449
        %v469 = vpop.permute.xlu0 %468
        %v473 = vlaneseq
        %v474 = vshrl.u32 %v473, 7
        %v475 = vsub.s32 0, %v474
        %v476 = vrot.slane %v459, %v475
        %v477 = vlaneseq
        %v478 = vshrl.u32 %v477, 7
        %v479 = vsub.s32 4, %v478
        %v480 = vrot.slane %v459, %v479
        %v481 = vlaneseq
        %v482 = vshrl.u32 %v481, 7
        %v483 = vsub.s32 0, %v482
        %v484 = vrot.slane %v460, %v483
        %v485 = vlaneseq
        %v486 = vshrl.u32 %v485, 7
        %v487 = vsub.s32 4, %v486
        %v488 = vrot.slane %v460, %v487
        %v493 = vlaneseq
        %v494 = vshrl.u32 %v493, 7
        %v495 = vsub.s32 0, %v494
        %v496 = vrot.slane %v476, %v495
        %v497 = vlaneseq
        %v498 = vshrl.u32 %v497, 7
        %v499 = vsub.s32 0, %v498
        %v500 = vrot.slane %v480, %v499
        %v501 = vlaneseq
        %v502 = vshrl.u32 %v501, 7
        %v503 = vsub.s32 0, %v502
        %v504 = vrot.slane %v484, %v503
        %v505 = vlaneseq
        %v506 = vshrl.u32 %v505, 7
        %v507 = vsub.s32 0, %v506
        %v508 = vrot.slane %v488, %v507
        %v509 = vmul.f32 %v464, %v496
        %v510 = vmul.f32 %v464, %v500
        %v511 = vmul.f32 %v464, %v504
        %v512 = vmul.f32 %v464, %v508
        %v513 = vmul.f32 %v469, %v496
        %v514 = vmul.f32 %v469, %v500
        %v515 = vmul.f32 %v469, %v504
        %v516 = vmul.f32 %v469, %v508
        %518 = vset.pattern.permute.xlu0 0
        %519 = vperm.xlu0 %518, %v450
        %v520 = vpop.permute.xlu0 %519
        %523 = vset.pattern.permute.xlu0 0
        %524 = vperm.xlu0 %523, %v451
        %v525 = vpop.permute.xlu0 %524
        %v527 = vadd.f32 %v520, %v509
        %v528 = vadd.f32 %v520, %v510
        %v529 = vadd.f32 %v520, %v511
        %v530 = vadd.f32 %v520, %v512
        %v531 = vadd.f32 %v525, %v513
        %v532 = vadd.f32 %v525, %v514
        %v533 = vadd.f32 %v525, %v515
        %v534 = vadd.f32 %v525, %v516
        %535 = vset.pattern.permute.xlu0 1
        %536 = vperm.xlu0 %535, %v448
        %v537 = vpop.permute.xlu0 %536
        %539 = vset.pattern.permute.xlu0 1
        %540 = vperm.xlu0 %539, %v449
        %v541 = vpop.permute.xlu0 %540
        %v543 = vlaneseq
        %v544 = vshrl.u32 %v543, 7
        %v545 = vsub.s32 1, %v544
        %v546 = vrot.slane %v459, %v545
        %v547 = vlaneseq
        %v548 = vshrl.u32 %v547, 7
        %v549 = vsub.s32 5, %v548
        %v550 = vrot.slane %v459, %v549
        %v551 = vlaneseq
        %v552 = vshrl.u32 %v551, 7
        %v553 = vsub.s32 1, %v552
        %v554 = vrot.slane %v460, %v553
        %v555 = vlaneseq
        %v556 = vshrl.u32 %v555, 7
        %v557 = vsub.s32 5, %v556
        %v558 = vrot.slane %v460, %v557
        %v563 = vlaneseq
        %v564 = vshrl.u32 %v563, 7
        %v565 = vsub.s32 1, %v564
        %v566 = vrot.slane %v546, %v565
        %v567 = vlaneseq
        %v568 = vshrl.u32 %v567, 7
        %v569 = vsub.s32 1, %v568
        %v570 = vrot.slane %v550, %v569
        %v571 = vlaneseq
        %v572 = vshrl.u32 %v571, 7
        %v573 = vsub.s32 1, %v572
        %v574 = vrot.slane %v554, %v573
        %v575 = vlaneseq
        %v576 = vshrl.u32 %v575, 7
        %v577 = vsub.s32 1, %v576
        %v578 = vrot.slane %v558, %v577
        %v579 = vmul.f32 %v537, %v566
        %v580 = vmul.f32 %v537, %v570
        %v581 = vmul.f32 %v537, %v574
        %v582 = vmul.f32 %v537, %v578
        %v583 = vmul.f32 %v541, %v566
        %v584 = vmul.f32 %v541, %v570
        %v585 = vmul.f32 %v541, %v574
        %v586 = vmul.f32 %v541, %v578
        %v587 = vadd.f32 %v527, %v579
        %v588 = vadd.f32 %v528, %v580
        %v589 = vadd.f32 %v529, %v581
        %v590 = vadd.f32 %v530, %v582
        %v591 = vadd.f32 %v531, %v583
        %v592 = vadd.f32 %v532, %v584
        %v593 = vadd.f32 %v533, %v585
        %v594 = vadd.f32 %v534, %v586
        %595 = vset.pattern.permute.xlu0 2
        %596 = vperm.xlu0 %595, %v448
        %v597 = vpop.permute.xlu0 %596
        %599 = vset.pattern.permute.xlu0 2
        %600 = vperm.xlu0 %599, %v449
        %v601 = vpop.permute.xlu0 %600
        %v603 = vlaneseq
        %v604 = vshrl.u32 %v603, 7
        %v605 = vsub.s32 2, %v604
        %v606 = vrot.slane %v459, %v605
        %v607 = vlaneseq
        %v608 = vshrl.u32 %v607, 7
        %v609 = vsub.s32 6, %v608
        %v610 = vrot.slane %v459, %v609
        %v611 = vlaneseq
        %v612 = vshrl.u32 %v611, 7
        %v613 = vsub.s32 2, %v612
        %v614 = vrot.slane %v460, %v613
        %v615 = vlaneseq
        %v616 = vshrl.u32 %v615, 7
        %v617 = vsub.s32 6, %v616
        %v618 = vrot.slane %v460, %v617
        %v623 = vlaneseq
        %v624 = vshrl.u32 %v623, 7
        %v625 = vsub.s32 2, %v624
        %v626 = vrot.slane %v606, %v625
        %v627 = vlaneseq
        %v628 = vshrl.u32 %v627, 7
        %v629 = vsub.s32 2, %v628
        %v630 = vrot.slane %v610, %v629
        %v631 = vlaneseq
        %v632 = vshrl.u32 %v631, 7
        %v633 = vsub.s32 2, %v632
        %v634 = vrot.slane %v614, %v633
        %v635 = vlaneseq
        %v636 = vshrl.u32 %v635, 7
        %v637 = vsub.s32 2, %v636
        %v638 = vrot.slane %v618, %v637
        %v639 = vmul.f32 %v597, %v626
        %v640 = vmul.f32 %v597, %v630
        %v641 = vmul.f32 %v597, %v634
        %v642 = vmul.f32 %v597, %v638
        %v643 = vmul.f32 %v601, %v626
        %v644 = vmul.f32 %v601, %v630
        %v645 = vmul.f32 %v601, %v634
        %v646 = vmul.f32 %v601, %v638
        %v647 = vadd.f32 %v587, %v639
        %v648 = vadd.f32 %v588, %v640
        %v649 = vadd.f32 %v589, %v641
        %v650 = vadd.f32 %v590, %v642
        %v651 = vadd.f32 %v591, %v643
        %v652 = vadd.f32 %v592, %v644
        %v653 = vadd.f32 %v593, %v645
        %v654 = vadd.f32 %v594, %v646
        %v655 = vmax.f32 %v647, 0.0
        %v656 = vmax.f32 %v648, 0.0
        %v657 = vmax.f32 %v649, 0.0
        %v658 = vmax.f32 %v650, 0.0
        %v659 = vmax.f32 %v651, 0.0
        %v660 = vmax.f32 %v652, 0.0
        %v661 = vmax.f32 %v653, 0.0
        %v662 = vmax.f32 %v654, 0.0
        %664 = vset.pattern.permute.xlu0 0
        %665 = vperm.xlu0 %664, %v455
        %v666 = vpop.permute.xlu0 %665
        %669 = vset.pattern.permute.xlu0 0
        %670 = vperm.xlu0 %669, %v456
        %v671 = vpop.permute.xlu0 %670
        %674 = vset.pattern.permute.xlu0 0
        %675 = vperm.xlu0 %674, %v457
        %v676 = vpop.permute.xlu0 %675
        %vm678 = vcmask 130048
        %v680 = vsel %vm678, %v452, 0
        %v683 = vsel %vm678, %v453, 0
        %v686 = vsel %vm678, %v454, 0
        %688 = vmatprep.subr.mxu0 0.0
        %689 = vmatpush1.msra.mxu0 0.0
        %690 = vmatprep.subr.mxu0 0.0
        %691 = vmatpush1.msra.mxu0 0.0
        %692 = vmatprep.subr.mxu0 0.0
        %693 = vmatpush1.msra.mxu0 0.0
        %694 = vmatprep.subr.mxu0 0.0
        %695 = vmatpush1.msra.mxu0 0.0
        %696 = vmatprep.subr.mxu0 0.0
        %697 = vmatpush1.msra.mxu0 0.0
        %698 = vmatprep.subr.mxu0 0.0
        %699 = vmatpush1.msra.mxu0 0.0
        %700 = vmatprep.subr.mxu0 0.0
        %701 = vmatpush1.msra.mxu0 0.0
        %702 = vmatprep.subr.mxu0 0.0
        %703 = vmatpush1.msra.mxu0 0.0
        %704 = vmatprep.subr.mxu0 0.0
        %705 = vmatpush1.msra.mxu0 0.0
        %706 = vmatprep.subr.mxu0 0.0
        %707 = vmatpush1.msra.mxu0 0.0
        %708 = vmatprep.subr.mxu0 0.0
        %709 = vmatpush1.msra.mxu0 0.0
        %710 = vmatprep.subr.mxu0 0.0
        %711 = vmatpush1.msra.mxu0 0.0
        %712 = vmatprep.subr.mxu0 0.0
        %713 = vmatpush1.msra.mxu0 0.0
        %714 = vmatprep.subr.mxu0 0.0
        %715 = vmatpush1.msra.mxu0 0.0
        %v716 = vand.u32 %v660, 4294901760
        %717 = vmatprep.subr.mxu0 %v716
        %v718 = vand.u32 %v659, 4294901760
        %719 = vmatpush1.msra.mxu0 %v718
        %v720 = vand.u32 %v656, 4294901760
        %721 = vmatprep.subr.mxu0 %v720
        %v722 = vand.u32 %v655, 4294901760
        %723 = vmatpush1.msra.mxu0 %v722
        %724 = vmatprep.subr.mxu0 0.0
        %725 = vmatpush2.msra.mxu0 0.0
        %726 = vmatprep.subr.mxu0 0.0
        %727 = vmatpush2.msra.mxu0 0.0
        %728 = vmatprep.subr.mxu0 0.0
        %729 = vmatpush2.msra.mxu0 0.0
        %730 = vmatprep.subr.mxu0 0.0
        %731 = vmatpush2.msra.mxu0 0.0
        %732 = vmatprep.subr.mxu0 0.0
        %733 = vmatpush2.msra.mxu0 0.0
        %734 = vmatprep.subr.mxu0 0.0
        %735 = vmatpush2.msra.mxu0 0.0
        %736 = vmatprep.subr.mxu0 0.0
        %737 = vmatpush2.msra.mxu0 0.0
        %738 = vmatprep.subr.mxu0 0.0
        %739 = vmatpush2.msra.mxu0 0.0
        %740 = vmatprep.subr.mxu0 0.0
        %741 = vmatpush2.msra.mxu0 0.0
        %742 = vmatprep.subr.mxu0 0.0
        %743 = vmatpush2.msra.mxu0 0.0
        %744 = vmatprep.subr.mxu0 0.0
        %745 = vmatpush2.msra.mxu0 0.0
        %746 = vmatprep.subr.mxu0 0.0
        %747 = vmatpush2.msra.mxu0 0.0
        %748 = vmatprep.subr.mxu0 0.0
        %749 = vmatpush2.msra.mxu0 0.0
        %750 = vmatprep.subr.mxu0 0.0
        %751 = vmatpush2.msra.mxu0 0.0
        %752 = vmatprep.subr.mxu0 0.0
        %753 = vmatpush2.msra.mxu0 0.0
        %754 = vmatprep.subr.mxu0 0.0
        %755 = vmatpush2.msra.mxu0 0.0
        %756 = vmatprep.mubr.f32.mxu0 0.0
        %v757 = vand.u32 %v680, 4294901760
        %v758 = vsub.f32 %v680, %v757
        %v759 = vand.u32 %v758, 4294901760
        %v760 = vsub.f32 %v758, %v759
        %v761 = vand.u32 %v760, 4294901760
        %762 = vmatmul.mubr.f32.gmra.mxu0 %v761
        %v763 = vpop.f32.mrf.mxu0
        %v764 = vadd.f32 %v666, %v763
        %v765 = vpop.f32.mrf.mxu0
        %v766 = vadd.f32 %v666, %v765
        %767 = vmatprep.mubr.f32.mxu0 0.0
        %v768 = vand.u32 %v683, 4294901760
        %v769 = vsub.f32 %v683, %v768
        %v770 = vand.u32 %v769, 4294901760
        %v771 = vsub.f32 %v769, %v770
        %v772 = vand.u32 %v771, 4294901760
        %773 = vmatmul.mubr.f32.gmra.mxu0 %v772
        %v774 = vpop.f32.mrf.mxu0
        %v775 = vadd.f32 %v671, %v774
        %v776 = vpop.f32.mrf.mxu0
        %v777 = vadd.f32 %v671, %v776
        %778 = vmatprep.mubr.f32.mxu0 0.0
        %v779 = vand.u32 %v686, 4294901760
        %v780 = vsub.f32 %v686, %v779
        %v781 = vand.u32 %v780, 4294901760
        %v782 = vsub.f32 %v780, %v781
        %v783 = vand.u32 %v782, 4294901760
        %784 = vmatmul.mubr.f32.gmra.mxu0 %v783
        %v785 = vpop.f32.mrf.mxu0
        %v786 = vadd.f32 %v676, %v785
        %v787 = vpop.f32.mrf.mxu0
        %v788 = vadd.f32 %v676, %v787
        %789 = vdwg.mxu0
        %790 = vmatprep.subr.mxu0 0.0
        %791 = vmatpush1.msra.mxu0 0.0
        %792 = vmatprep.subr.mxu0 0.0
        %793 = vmatpush1.msra.mxu0 0.0
        %794 = vmatprep.subr.mxu0 0.0
        %795 = vmatpush1.msra.mxu0 0.0
        %796 = vmatprep.subr.mxu0 0.0
        %797 = vmatpush1.msra.mxu0 0.0
        %798 = vmatprep.subr.mxu0 0.0
        %799 = vmatpush1.msra.mxu0 0.0
        %800 = vmatprep.subr.mxu0 0.0
        %801 = vmatpush1.msra.mxu0 0.0
        %802 = vmatprep.subr.mxu0 0.0
        %803 = vmatpush1.msra.mxu0 0.0
        %804 = vmatprep.subr.mxu0 0.0
        %805 = vmatpush1.msra.mxu0 0.0
        %806 = vmatprep.subr.mxu0 0.0
        %807 = vmatpush1.msra.mxu0 0.0
        %808 = vmatprep.subr.mxu0 0.0
        %809 = vmatpush1.msra.mxu0 0.0
        %810 = vmatprep.subr.mxu0 0.0
        %811 = vmatpush1.msra.mxu0 0.0
        %812 = vmatprep.subr.mxu0 0.0
        %813 = vmatpush1.msra.mxu0 0.0
        %814 = vmatprep.subr.mxu0 0.0
        %815 = vmatpush1.msra.mxu0 0.0
        %816 = vmatprep.subr.mxu0 0.0
        %817 = vmatpush1.msra.mxu0 0.0
        %v818 = vand.u32 %v660, 4294901760
        %v819 = vsub.f32 %v660, %v818
        %v820 = vand.u32 %v819, 4294901760
        %v821 = vsub.f32 %v819, %v820
        %v822 = vand.u32 %v821, 4294901760
        %823 = vmatprep.subr.mxu0 %v822
        %v824 = vand.u32 %v659, 4294901760
        %v825 = vsub.f32 %v659, %v824
        %v826 = vand.u32 %v825, 4294901760
        %v827 = vsub.f32 %v825, %v826
        %v828 = vand.u32 %v827, 4294901760
        %829 = vmatpush1.msra.mxu0 %v828
        %v830 = vand.u32 %v656, 4294901760
        %v831 = vsub.f32 %v656, %v830
        %v832 = vand.u32 %v831, 4294901760
        %v833 = vsub.f32 %v831, %v832
        %v834 = vand.u32 %v833, 4294901760
        %835 = vmatprep.subr.mxu0 %v834
        %v836 = vand.u32 %v655, 4294901760
        %v837 = vsub.f32 %v655, %v836
        %v838 = vand.u32 %v837, 4294901760
        %v839 = vsub.f32 %v837, %v838
        %v840 = vand.u32 %v839, 4294901760
        %841 = vmatpush1.msra.mxu0 %v840
        %842 = vmatprep.subr.mxu0 0.0
        %843 = vmatpush2.msra.mxu0 0.0
        %844 = vmatprep.subr.mxu0 0.0
        %845 = vmatpush2.msra.mxu0 0.0
        %846 = vmatprep.subr.mxu0 0.0
        %847 = vmatpush2.msra.mxu0 0.0
        %848 = vmatprep.subr.mxu0 0.0
        %849 = vmatpush2.msra.mxu0 0.0
        %850 = vmatprep.subr.mxu0 0.0
        %851 = vmatpush2.msra.mxu0 0.0
        %852 = vmatprep.subr.mxu0 0.0
        %853 = vmatpush2.msra.mxu0 0.0
        %854 = vmatprep.subr.mxu0 0.0
        %855 = vmatpush2.msra.mxu0 0.0
        %856 = vmatprep.subr.mxu0 0.0
        %857 = vmatpush2.msra.mxu0 0.0
        %858 = vmatprep.subr.mxu0 0.0
        %859 = vmatpush2.msra.mxu0 0.0
        %860 = vmatprep.subr.mxu0 0.0
        %861 = vmatpush2.msra.mxu0 0.0
        %862 = vmatprep.subr.mxu0 0.0
        %863 = vmatpush2.msra.mxu0 0.0
        %864 = vmatprep.subr.mxu0 0.0
        %865 = vmatpush2.msra.mxu0 0.0
        %866 = vmatprep.subr.mxu0 0.0
        %867 = vmatpush2.msra.mxu0 0.0
        %868 = vmatprep.subr.mxu0 0.0
        %869 = vmatpush2.msra.mxu0 0.0
        %870 = vmatprep.subr.mxu0 0.0
        %871 = vmatpush2.msra.mxu0 0.0
        %872 = vmatprep.subr.mxu0 0.0
        %873 = vmatpush2.msra.mxu0 0.0
        %874 = vmatprep.mubr.f32.mxu0 0.0
        %v875 = vand.u32 %v680, 4294901760
        %876 = vmatmul.mubr.f32.gmra.mxu0 %v875
        %v877 = vpop.f32.mrf.mxu0
        %v878 = vadd.f32 %v764, %v877
        %v879 = vpop.f32.mrf.mxu0
        %v880 = vadd.f32 %v766, %v879
        %881 = vmatprep.mubr.f32.mxu0 0.0
        %v882 = vand.u32 %v683, 4294901760
        %883 = vmatmul.mubr.f32.gmra.mxu0 %v882
        %v884 = vpop.f32.mrf.mxu0
        %v885 = vadd.f32 %v775, %v884
        %v886 = vpop.f32.mrf.mxu0
        %v887 = vadd.f32 %v777, %v886
        %888 = vmatprep.mubr.f32.mxu0 0.0
        %v889 = vand.u32 %v686, 4294901760
        %890 = vmatmul.mubr.f32.gmra.mxu0 %v889
        %v891 = vpop.f32.mrf.mxu0
        %v892 = vadd.f32 %v786, %v891
        %v893 = vpop.f32.mrf.mxu0
        %v894 = vadd.f32 %v788, %v893
        %895 = vdwg.mxu0
        %896 = vmatprep.subr.mxu0 0.0
        %897 = vmatpush1.msra.mxu0 0.0
        %898 = vmatprep.subr.mxu0 0.0
        %899 = vmatpush1.msra.mxu0 0.0
        %900 = vmatprep.subr.mxu0 0.0
        %901 = vmatpush1.msra.mxu0 0.0
        %902 = vmatprep.subr.mxu0 0.0
        %903 = vmatpush1.msra.mxu0 0.0
        %904 = vmatprep.subr.mxu0 0.0
        %905 = vmatpush1.msra.mxu0 0.0
        %906 = vmatprep.subr.mxu0 0.0
        %907 = vmatpush1.msra.mxu0 0.0
        %908 = vmatprep.subr.mxu0 0.0
        %909 = vmatpush1.msra.mxu0 0.0
        %910 = vmatprep.subr.mxu0 0.0
        %911 = vmatpush1.msra.mxu0 0.0
        %912 = vmatprep.subr.mxu0 0.0
        %913 = vmatpush1.msra.mxu0 0.0
        %914 = vmatprep.subr.mxu0 0.0
        %915 = vmatpush1.msra.mxu0 0.0
        %916 = vmatprep.subr.mxu0 0.0
        %917 = vmatpush1.msra.mxu0 0.0
        %918 = vmatprep.subr.mxu0 0.0
        %919 = vmatpush1.msra.mxu0 0.0
        %920 = vmatprep.subr.mxu0 0.0
        %921 = vmatpush1.msra.mxu0 0.0
        %922 = vmatprep.subr.mxu0 0.0
        %923 = vmatpush1.msra.mxu0 0.0
        %v924 = vand.u32 %v660, 4294901760
        %v925 = vsub.f32 %v660, %v924
        %926 = vmatprep.subr.mxu0 %v925
        %v927 = vand.u32 %v659, 4294901760
        %v928 = vsub.f32 %v659, %v927
        %929 = vmatpush1.msra.mxu0 %v928
        %v930 = vand.u32 %v656, 4294901760
        %v931 = vsub.f32 %v656, %v930
        %932 = vmatprep.subr.mxu0 %v931
        %v933 = vand.u32 %v655, 4294901760
        %v934 = vsub.f32 %v655, %v933
        %935 = vmatpush1.msra.mxu0 %v934
        %936 = vmatprep.subr.mxu0 0.0
        %937 = vmatpush2.msra.mxu0 0.0
        %938 = vmatprep.subr.mxu0 0.0
        %939 = vmatpush2.msra.mxu0 0.0
        %940 = vmatprep.subr.mxu0 0.0
        %941 = vmatpush2.msra.mxu0 0.0
        %942 = vmatprep.subr.mxu0 0.0
        %943 = vmatpush2.msra.mxu0 0.0
        %944 = vmatprep.subr.mxu0 0.0
        %945 = vmatpush2.msra.mxu0 0.0
        %946 = vmatprep.subr.mxu0 0.0
        %947 = vmatpush2.msra.mxu0 0.0
        %948 = vmatprep.subr.mxu0 0.0
        %949 = vmatpush2.msra.mxu0 0.0
        %950 = vmatprep.subr.mxu0 0.0
        %951 = vmatpush2.msra.mxu0 0.0
        %952 = vmatprep.subr.mxu0 0.0
        %953 = vmatpush2.msra.mxu0 0.0
        %954 = vmatprep.subr.mxu0 0.0
        %955 = vmatpush2.msra.mxu0 0.0
        %956 = vmatprep.subr.mxu0 0.0
        %957 = vmatpush2.msra.mxu0 0.0
        %958 = vmatprep.subr.mxu0 0.0
        %959 = vmatpush2.msra.mxu0 0.0
        %960 = vmatprep.subr.mxu0 0.0
        %961 = vmatpush2.msra.mxu0 0.0
        %962 = vmatprep.subr.mxu0 0.0
        %963 = vmatpush2.msra.mxu0 0.0
        %964 = vmatprep.subr.mxu0 0.0
        %965 = vmatpush2.msra.mxu0 0.0
        %966 = vmatprep.subr.mxu0 0.0
        %967 = vmatpush2.msra.mxu0 0.0
        %968 = vmatprep.mubr.f32.mxu0 0.0
        %v969 = vand.u32 %v680, 4294901760
        %v970 = vsub.f32 %v680, %v969
        %971 = vmatmul.mubr.f32.gmra.mxu0 %v970
        %v972 = vpop.f32.mrf.mxu0
        %v973 = vadd.f32 %v878, %v972
        %v974 = vpop.f32.mrf.mxu0
        %v975 = vadd.f32 %v880, %v974
        %976 = vmatprep.mubr.f32.mxu0 0.0
        %v977 = vand.u32 %v683, 4294901760
        %v978 = vsub.f32 %v683, %v977
        %979 = vmatmul.mubr.f32.gmra.mxu0 %v978
        %v980 = vpop.f32.mrf.mxu0
        %v981 = vadd.f32 %v885, %v980
        %v982 = vpop.f32.mrf.mxu0
        %v983 = vadd.f32 %v887, %v982
        %984 = vmatprep.mubr.f32.mxu0 0.0
        %v985 = vand.u32 %v686, 4294901760
        %v986 = vsub.f32 %v686, %v985
        %987 = vmatmul.mubr.f32.gmra.mxu0 %v986
        %v988 = vpop.f32.mrf.mxu0
        %v989 = vadd.f32 %v892, %v988
        %v990 = vpop.f32.mrf.mxu0
        %v991 = vadd.f32 %v894, %v990
        %992 = vdwg.mxu0
        %993 = vmatprep.subr.mxu0 0.0
        %994 = vmatpush1.msra.mxu0 0.0
        %995 = vmatprep.subr.mxu0 0.0
        %996 = vmatpush1.msra.mxu0 0.0
        %997 = vmatprep.subr.mxu0 0.0
        %998 = vmatpush1.msra.mxu0 0.0
        %999 = vmatprep.subr.mxu0 0.0
        %1000 = vmatpush1.msra.mxu0 0.0
        %1001 = vmatprep.subr.mxu0 0.0
        %1002 = vmatpush1.msra.mxu0 0.0
        %1003 = vmatprep.subr.mxu0 0.0
        %1004 = vmatpush1.msra.mxu0 0.0
        %1005 = vmatprep.subr.mxu0 0.0
        %1006 = vmatpush1.msra.mxu0 0.0
        %1007 = vmatprep.subr.mxu0 0.0
        %1008 = vmatpush1.msra.mxu0 0.0
        %1009 = vmatprep.subr.mxu0 0.0
        %1010 = vmatpush1.msra.mxu0 0.0
        %1011 = vmatprep.subr.mxu0 0.0
        %1012 = vmatpush1.msra.mxu0 0.0
        %1013 = vmatprep.subr.mxu0 0.0
        %1014 = vmatpush1.msra.mxu0 0.0
        %1015 = vmatprep.subr.mxu0 0.0
        %1016 = vmatpush1.msra.mxu0 0.0
        %1017 = vmatprep.subr.mxu0 0.0
        %1018 = vmatpush1.msra.mxu0 0.0
        %1019 = vmatprep.subr.mxu0 0.0
        %1020 = vmatpush1.msra.mxu0 0.0
        %v1021 = vand.u32 %v660, 4294901760
        %1022 = vmatprep.subr.mxu0 %v1021
        %v1023 = vand.u32 %v659, 4294901760
        %1024 = vmatpush1.msra.mxu0 %v1023
        %v1025 = vand.u32 %v656, 4294901760
        %1026 = vmatprep.subr.mxu0 %v1025
        %v1027 = vand.u32 %v655, 4294901760
        %1028 = vmatpush1.msra.mxu0 %v1027
        %1029 = vmatprep.subr.mxu0 0.0
        %1030 = vmatpush2.msra.mxu0 0.0
        %1031 = vmatprep.subr.mxu0 0.0
        %1032 = vmatpush2.msra.mxu0 0.0
        %1033 = vmatprep.subr.mxu0 0.0
        %1034 = vmatpush2.msra.mxu0 0.0
        %1035 = vmatprep.subr.mxu0 0.0
        %1036 = vmatpush2.msra.mxu0 0.0
        %1037 = vmatprep.subr.mxu0 0.0
        %1038 = vmatpush2.msra.mxu0 0.0
        %1039 = vmatprep.subr.mxu0 0.0
        %1040 = vmatpush2.msra.mxu0 0.0
        %1041 = vmatprep.subr.mxu0 0.0
        %1042 = vmatpush2.msra.mxu0 0.0
        %1043 = vmatprep.subr.mxu0 0.0
        %1044 = vmatpush2.msra.mxu0 0.0
        %1045 = vmatprep.subr.mxu0 0.0
        %1046 = vmatpush2.msra.mxu0 0.0
        %1047 = vmatprep.subr.mxu0 0.0
        %1048 = vmatpush2.msra.mxu0 0.0
        %1049 = vmatprep.subr.mxu0 0.0
        %1050 = vmatpush2.msra.mxu0 0.0
        %1051 = vmatprep.subr.mxu0 0.0
        %1052 = vmatpush2.msra.mxu0 0.0
        %1053 = vmatprep.subr.mxu0 0.0
        %1054 = vmatpush2.msra.mxu0 0.0
        %1055 = vmatprep.subr.mxu0 0.0
        %1056 = vmatpush2.msra.mxu0 0.0
        %1057 = vmatprep.subr.mxu0 0.0
        %1058 = vmatpush2.msra.mxu0 0.0
        %1059 = vmatprep.subr.mxu0 0.0
        %1060 = vmatpush2.msra.mxu0 0.0
        %1061 = vmatprep.mubr.f32.mxu0 0.0
        %v1062 = vand.u32 %v680, 4294901760
        %v1063 = vsub.f32 %v680, %v1062
        %v1064 = vand.u32 %v1063, 4294901760
        %1065 = vmatmul.mubr.f32.gmra.mxu0 %v1064
        %v1066 = vpop.f32.mrf.mxu0
        %v1067 = vadd.f32 %v973, %v1066
        %v1068 = vpop.f32.mrf.mxu0
        %v1069 = vadd.f32 %v975, %v1068
        %1070 = vmatprep.mubr.f32.mxu0 0.0
        %v1071 = vand.u32 %v683, 4294901760
        %v1072 = vsub.f32 %v683, %v1071
        %v1073 = vand.u32 %v1072, 4294901760
        %1074 = vmatmul.mubr.f32.gmra.mxu0 %v1073
        %v1075 = vpop.f32.mrf.mxu0
        %v1076 = vadd.f32 %v981, %v1075
        %v1077 = vpop.f32.mrf.mxu0
        %v1078 = vadd.f32 %v983, %v1077
        %1079 = vmatprep.mubr.f32.mxu0 0.0
        %v1080 = vand.u32 %v686, 4294901760
        %v1081 = vsub.f32 %v686, %v1080
        %v1082 = vand.u32 %v1081, 4294901760
        %1083 = vmatmul.mubr.f32.gmra.mxu0 %v1082
        %v1084 = vpop.f32.mrf.mxu0
        %v1085 = vadd.f32 %v989, %v1084
        %v1086 = vpop.f32.mrf.mxu0
        %v1087 = vadd.f32 %v991, %v1086
        %1088 = vdwg.mxu0
        %1089 = vmatprep.subr.mxu0 0.0
        %1090 = vmatpush1.msra.mxu0 0.0
        %1091 = vmatprep.subr.mxu0 0.0
        %1092 = vmatpush1.msra.mxu0 0.0
        %1093 = vmatprep.subr.mxu0 0.0
        %1094 = vmatpush1.msra.mxu0 0.0
        %1095 = vmatprep.subr.mxu0 0.0
        %1096 = vmatpush1.msra.mxu0 0.0
        %1097 = vmatprep.subr.mxu0 0.0
        %1098 = vmatpush1.msra.mxu0 0.0
        %1099 = vmatprep.subr.mxu0 0.0
        %1100 = vmatpush1.msra.mxu0 0.0
        %1101 = vmatprep.subr.mxu0 0.0
        %1102 = vmatpush1.msra.mxu0 0.0
        %1103 = vmatprep.subr.mxu0 0.0
        %1104 = vmatpush1.msra.mxu0 0.0
        %1105 = vmatprep.subr.mxu0 0.0
        %1106 = vmatpush1.msra.mxu0 0.0
        %1107 = vmatprep.subr.mxu0 0.0
        %1108 = vmatpush1.msra.mxu0 0.0
        %1109 = vmatprep.subr.mxu0 0.0
        %1110 = vmatpush1.msra.mxu0 0.0
        %1111 = vmatprep.subr.mxu0 0.0
        %1112 = vmatpush1.msra.mxu0 0.0
        %1113 = vmatprep.subr.mxu0 0.0
        %1114 = vmatpush1.msra.mxu0 0.0
        %1115 = vmatprep.subr.mxu0 0.0
        %1116 = vmatpush1.msra.mxu0 0.0
        %v1117 = vand.u32 %v660, 4294901760
        %v1118 = vsub.f32 %v660, %v1117
        %v1119 = vand.u32 %v1118, 4294901760
        %1120 = vmatprep.subr.mxu0 %v1119
        %v1121 = vand.u32 %v659, 4294901760
        %v1122 = vsub.f32 %v659, %v1121
        %v1123 = vand.u32 %v1122, 4294901760
        %1124 = vmatpush1.msra.mxu0 %v1123
        %v1125 = vand.u32 %v656, 4294901760
        %v1126 = vsub.f32 %v656, %v1125
        %v1127 = vand.u32 %v1126, 4294901760
        %1128 = vmatprep.subr.mxu0 %v1127
        %v1129 = vand.u32 %v655, 4294901760
        %v1130 = vsub.f32 %v655, %v1129
        %v1131 = vand.u32 %v1130, 4294901760
        %1132 = vmatpush1.msra.mxu0 %v1131
        %1133 = vmatprep.subr.mxu0 0.0
        %1134 = vmatpush2.msra.mxu0 0.0
        %1135 = vmatprep.subr.mxu0 0.0
        %1136 = vmatpush2.msra.mxu0 0.0
        %1137 = vmatprep.subr.mxu0 0.0
        %1138 = vmatpush2.msra.mxu0 0.0
        %1139 = vmatprep.subr.mxu0 0.0
        %1140 = vmatpush2.msra.mxu0 0.0
        %1141 = vmatprep.subr.mxu0 0.0
        %1142 = vmatpush2.msra.mxu0 0.0
        %1143 = vmatprep.subr.mxu0 0.0
        %1144 = vmatpush2.msra.mxu0 0.0
        %1145 = vmatprep.subr.mxu0 0.0
        %1146 = vmatpush2.msra.mxu0 0.0
        %1147 = vmatprep.subr.mxu0 0.0
        %1148 = vmatpush2.msra.mxu0 0.0
        %1149 = vmatprep.subr.mxu0 0.0
        %1150 = vmatpush2.msra.mxu0 0.0
        %1151 = vmatprep.subr.mxu0 0.0
        %1152 = vmatpush2.msra.mxu0 0.0
        %1153 = vmatprep.subr.mxu0 0.0
        %1154 = vmatpush2.msra.mxu0 0.0
        %1155 = vmatprep.subr.mxu0 0.0
        %1156 = vmatpush2.msra.mxu0 0.0
        %1157 = vmatprep.subr.mxu0 0.0
        %1158 = vmatpush2.msra.mxu0 0.0
        %1159 = vmatprep.subr.mxu0 0.0
        %1160 = vmatpush2.msra.mxu0 0.0
        %1161 = vmatprep.subr.mxu0 0.0
        %1162 = vmatpush2.msra.mxu0 0.0
        %1163 = vmatprep.subr.mxu0 0.0
        %1164 = vmatpush2.msra.mxu0 0.0
        %1165 = vmatprep.mubr.f32.mxu0 0.0
        %v1166 = vand.u32 %v680, 4294901760
        %1167 = vmatmul.mubr.f32.gmra.mxu0 %v1166
        %v1168 = vpop.f32.mrf.mxu0
        %v1169 = vadd.f32 %v1067, %v1168
        %v1170 = vpop.f32.mrf.mxu0
        %v1171 = vadd.f32 %v1069, %v1170
        %1172 = vmatprep.mubr.f32.mxu0 0.0
        %v1173 = vand.u32 %v683, 4294901760
        %1174 = vmatmul.mubr.f32.gmra.mxu0 %v1173
        %v1175 = vpop.f32.mrf.mxu0
        %v1176 = vadd.f32 %v1076, %v1175
        %v1177 = vpop.f32.mrf.mxu0
        %v1178 = vadd.f32 %v1078, %v1177
        %1179 = vmatprep.mubr.f32.mxu0 0.0
        %v1180 = vand.u32 %v686, 4294901760
        %1181 = vmatmul.mubr.f32.gmra.mxu0 %v1180
        %v1182 = vpop.f32.mrf.mxu0
        %v1183 = vadd.f32 %v1085, %v1182
        %v1184 = vpop.f32.mrf.mxu0
        %v1185 = vadd.f32 %v1087, %v1184
        %1186 = vdwg.mxu0
        %1187 = vmatprep.subr.mxu0 0.0
        %1188 = vmatpush1.msra.mxu0 0.0
        %1189 = vmatprep.subr.mxu0 0.0
        %1190 = vmatpush1.msra.mxu0 0.0
        %1191 = vmatprep.subr.mxu0 0.0
        %1192 = vmatpush1.msra.mxu0 0.0
        %1193 = vmatprep.subr.mxu0 0.0
        %1194 = vmatpush1.msra.mxu0 0.0
        %1195 = vmatprep.subr.mxu0 0.0
        %1196 = vmatpush1.msra.mxu0 0.0
        %1197 = vmatprep.subr.mxu0 0.0
        %1198 = vmatpush1.msra.mxu0 0.0
        %1199 = vmatprep.subr.mxu0 0.0
        %1200 = vmatpush1.msra.mxu0 0.0
        %1201 = vmatprep.subr.mxu0 0.0
        %1202 = vmatpush1.msra.mxu0 0.0
        %1203 = vmatprep.subr.mxu0 0.0
        %1204 = vmatpush1.msra.mxu0 0.0
        %1205 = vmatprep.subr.mxu0 0.0
        %1206 = vmatpush1.msra.mxu0 0.0
        %1207 = vmatprep.subr.mxu0 0.0
        %1208 = vmatpush1.msra.mxu0 0.0
        %1209 = vmatprep.subr.mxu0 0.0
        %1210 = vmatpush1.msra.mxu0 0.0
        %1211 = vmatprep.subr.mxu0 0.0
        %1212 = vmatpush1.msra.mxu0 0.0
        %1213 = vmatprep.subr.mxu0 0.0
        %1214 = vmatpush1.msra.mxu0 0.0
        %v1215 = vand.u32 %v660, 4294901760
        %1216 = vmatprep.subr.mxu0 %v1215
        %v1217 = vand.u32 %v659, 4294901760
        %1218 = vmatpush1.msra.mxu0 %v1217
        %v1219 = vand.u32 %v656, 4294901760
        %1220 = vmatprep.subr.mxu0 %v1219
        %v1221 = vand.u32 %v655, 4294901760
        %1222 = vmatpush1.msra.mxu0 %v1221
        %1223 = vmatprep.subr.mxu0 0.0
        %1224 = vmatpush2.msra.mxu0 0.0
        %1225 = vmatprep.subr.mxu0 0.0
        %1226 = vmatpush2.msra.mxu0 0.0
        %1227 = vmatprep.subr.mxu0 0.0
        %1228 = vmatpush2.msra.mxu0 0.0
        %1229 = vmatprep.subr.mxu0 0.0
        %1230 = vmatpush2.msra.mxu0 0.0
        %1231 = vmatprep.subr.mxu0 0.0
        %1232 = vmatpush2.msra.mxu0 0.0
        %1233 = vmatprep.subr.mxu0 0.0
        %1234 = vmatpush2.msra.mxu0 0.0
        %1235 = vmatprep.subr.mxu0 0.0
        %1236 = vmatpush2.msra.mxu0 0.0
        %1237 = vmatprep.subr.mxu0 0.0
        %1238 = vmatpush2.msra.mxu0 0.0
        %1239 = vmatprep.subr.mxu0 0.0
        %1240 = vmatpush2.msra.mxu0 0.0
        %1241 = vmatprep.subr.mxu0 0.0
        %1242 = vmatpush2.msra.mxu0 0.0
        %1243 = vmatprep.subr.mxu0 0.0
        %1244 = vmatpush2.msra.mxu0 0.0
        %1245 = vmatprep.subr.mxu0 0.0
        %1246 = vmatpush2.msra.mxu0 0.0
        %1247 = vmatprep.subr.mxu0 0.0
        %1248 = vmatpush2.msra.mxu0 0.0
        %1249 = vmatprep.subr.mxu0 0.0
        %1250 = vmatpush2.msra.mxu0 0.0
        %1251 = vmatprep.subr.mxu0 0.0
        %1252 = vmatpush2.msra.mxu0 0.0
        %1253 = vmatprep.subr.mxu0 0.0
        %1254 = vmatpush2.msra.mxu0 0.0
        %1255 = vmatprep.mubr.f32.mxu0 0.0
        %v1256 = vand.u32 %v680, 4294901760
        %1257 = vmatmul.mubr.f32.gmra.mxu0 %v1256
        %v1258 = vpop.f32.mrf.mxu0
        %v1259 = vadd.f32 %v1169, %v1258
        %v1260 = vpop.f32.mrf.mxu0
        %v1261 = vadd.f32 %v1171, %v1260
        %1262 = vmatprep.mubr.f32.mxu0 0.0
        %v1263 = vand.u32 %v683, 4294901760
        %1264 = vmatmul.mubr.f32.gmra.mxu0 %v1263
        %v1265 = vpop.f32.mrf.mxu0
        %v1266 = vadd.f32 %v1176, %v1265
        %v1267 = vpop.f32.mrf.mxu0
        %v1268 = vadd.f32 %v1178, %v1267
        %1269 = vmatprep.mubr.f32.mxu0 0.0
        %v1270 = vand.u32 %v686, 4294901760
        %1271 = vmatmul.mubr.f32.gmra.mxu0 %v1270
        %v1272 = vpop.f32.mrf.mxu0
        %v1273 = vadd.f32 %v1183, %v1272
        %v1274 = vpop.f32.mrf.mxu0
        %v1275 = vadd.f32 %v1185, %v1274
        %1276 = vdwg.mxu0
        %1277 = vmatprep.subr.mxu0 0.0
        %1278 = vmatpush1.msra.mxu0 0.0
        %1279 = vmatprep.subr.mxu0 0.0
        %1280 = vmatpush1.msra.mxu0 0.0
        %1281 = vmatprep.subr.mxu0 0.0
        %1282 = vmatpush1.msra.mxu0 0.0
        %1283 = vmatprep.subr.mxu0 0.0
        %1284 = vmatpush1.msra.mxu0 0.0
        %1285 = vmatprep.subr.mxu0 0.0
        %1286 = vmatpush1.msra.mxu0 0.0
        %1287 = vmatprep.subr.mxu0 0.0
        %1288 = vmatpush1.msra.mxu0 0.0
        %1289 = vmatprep.subr.mxu0 0.0
        %1290 = vmatpush1.msra.mxu0 0.0
        %1291 = vmatprep.subr.mxu0 0.0
        %1292 = vmatpush1.msra.mxu0 0.0
        %1293 = vmatprep.subr.mxu0 0.0
        %1294 = vmatpush1.msra.mxu0 0.0
        %1295 = vmatprep.subr.mxu0 0.0
        %1296 = vmatpush1.msra.mxu0 0.0
        %1297 = vmatprep.subr.mxu0 0.0
        %1298 = vmatpush1.msra.mxu0 0.0
        %1299 = vmatprep.subr.mxu0 0.0
        %1300 = vmatpush1.msra.mxu0 0.0
        %1301 = vmatprep.subr.mxu0 0.0
        %1302 = vmatpush1.msra.mxu0 0.0
        %1303 = vmatprep.subr.mxu0 0.0
        %1304 = vmatpush1.msra.mxu0 0.0
        %v1305 = vand.u32 %v662, 4294901760
        %1306 = vmatprep.subr.mxu0 %v1305
        %v1307 = vand.u32 %v661, 4294901760
        %1308 = vmatpush1.msra.mxu0 %v1307
        %v1309 = vand.u32 %v658, 4294901760
        %1310 = vmatprep.subr.mxu0 %v1309
        %v1311 = vand.u32 %v657, 4294901760
        %1312 = vmatpush1.msra.mxu0 %v1311
        %1313 = vmatprep.subr.mxu0 0.0
        %1314 = vmatpush2.msra.mxu0 0.0
        %1315 = vmatprep.subr.mxu0 0.0
        %1316 = vmatpush2.msra.mxu0 0.0
        %1317 = vmatprep.subr.mxu0 0.0
        %1318 = vmatpush2.msra.mxu0 0.0
        %1319 = vmatprep.subr.mxu0 0.0
        %1320 = vmatpush2.msra.mxu0 0.0
        %1321 = vmatprep.subr.mxu0 0.0
        %1322 = vmatpush2.msra.mxu0 0.0
        %1323 = vmatprep.subr.mxu0 0.0
        %1324 = vmatpush2.msra.mxu0 0.0
        %1325 = vmatprep.subr.mxu0 0.0
        %1326 = vmatpush2.msra.mxu0 0.0
        %1327 = vmatprep.subr.mxu0 0.0
        %1328 = vmatpush2.msra.mxu0 0.0
        %1329 = vmatprep.subr.mxu0 0.0
        %1330 = vmatpush2.msra.mxu0 0.0
        %1331 = vmatprep.subr.mxu0 0.0
        %1332 = vmatpush2.msra.mxu0 0.0
        %1333 = vmatprep.subr.mxu0 0.0
        %1334 = vmatpush2.msra.mxu0 0.0
        %1335 = vmatprep.subr.mxu0 0.0
        %1336 = vmatpush2.msra.mxu0 0.0
        %1337 = vmatprep.subr.mxu0 0.0
        %1338 = vmatpush2.msra.mxu0 0.0
        %1339 = vmatprep.subr.mxu0 0.0
        %1340 = vmatpush2.msra.mxu0 0.0
        %1341 = vmatprep.subr.mxu0 0.0
        %1342 = vmatpush2.msra.mxu0 0.0
        %1343 = vmatprep.subr.mxu0 0.0
        %1344 = vmatpush2.msra.mxu0 0.0
        %1345 = vmatprep.mubr.f32.mxu0 0.0
        %v1346 = vand.u32 %v680, 4294901760
        %v1347 = vsub.f32 %v680, %v1346
        %v1348 = vand.u32 %v1347, 4294901760
        %v1349 = vsub.f32 %v1347, %v1348
        %v1350 = vand.u32 %v1349, 4294901760
        %1351 = vmatmul.mubr.f32.gmra.mxu0 %v1350
        %v1352 = vpop.f32.mrf.mxu0
        %v1353 = vadd.f32 %v666, %v1352
        %v1354 = vpop.f32.mrf.mxu0
        %v1355 = vadd.f32 %v666, %v1354
        %1356 = vmatprep.mubr.f32.mxu0 0.0
        %v1357 = vand.u32 %v683, 4294901760
        %v1358 = vsub.f32 %v683, %v1357
        %v1359 = vand.u32 %v1358, 4294901760
        %v1360 = vsub.f32 %v1358, %v1359
        %v1361 = vand.u32 %v1360, 4294901760
        %1362 = vmatmul.mubr.f32.gmra.mxu0 %v1361
        %v1363 = vpop.f32.mrf.mxu0
        %v1364 = vadd.f32 %v671, %v1363
        %v1365 = vpop.f32.mrf.mxu0
        %v1366 = vadd.f32 %v671, %v1365
        %1367 = vmatprep.mubr.f32.mxu0 0.0
        %v1368 = vand.u32 %v686, 4294901760
        %v1369 = vsub.f32 %v686, %v1368
        %v1370 = vand.u32 %v1369, 4294901760
        %v1371 = vsub.f32 %v1369, %v1370
        %v1372 = vand.u32 %v1371, 4294901760
        %1373 = vmatmul.mubr.f32.gmra.mxu0 %v1372
        %v1374 = vpop.f32.mrf.mxu0
        %v1375 = vadd.f32 %v676, %v1374
        %v1376 = vpop.f32.mrf.mxu0
        %v1377 = vadd.f32 %v676, %v1376
        %1378 = vdwg.mxu0
        %1379 = vmatprep.subr.mxu0 0.0
        %1380 = vmatpush1.msra.mxu0 0.0
        %1381 = vmatprep.subr.mxu0 0.0
        %1382 = vmatpush1.msra.mxu0 0.0
        %1383 = vmatprep.subr.mxu0 0.0
        %1384 = vmatpush1.msra.mxu0 0.0
        %1385 = vmatprep.subr.mxu0 0.0
        %1386 = vmatpush1.msra.mxu0 0.0
        %1387 = vmatprep.subr.mxu0 0.0
        %1388 = vmatpush1.msra.mxu0 0.0
        %1389 = vmatprep.subr.mxu0 0.0
        %1390 = vmatpush1.msra.mxu0 0.0
        %1391 = vmatprep.subr.mxu0 0.0
        %1392 = vmatpush1.msra.mxu0 0.0
        %1393 = vmatprep.subr.mxu0 0.0
        %1394 = vmatpush1.msra.mxu0 0.0
        %1395 = vmatprep.subr.mxu0 0.0
        %1396 = vmatpush1.msra.mxu0 0.0
        %1397 = vmatprep.subr.mxu0 0.0
        %1398 = vmatpush1.msra.mxu0 0.0
        %1399 = vmatprep.subr.mxu0 0.0
        %1400 = vmatpush1.msra.mxu0 0.0
        %1401 = vmatprep.subr.mxu0 0.0
        %1402 = vmatpush1.msra.mxu0 0.0
        %1403 = vmatprep.subr.mxu0 0.0
        %1404 = vmatpush1.msra.mxu0 0.0
        %1405 = vmatprep.subr.mxu0 0.0
        %1406 = vmatpush1.msra.mxu0 0.0
        %v1407 = vand.u32 %v662, 4294901760
        %v1408 = vsub.f32 %v662, %v1407
        %v1409 = vand.u32 %v1408, 4294901760
        %v1410 = vsub.f32 %v1408, %v1409
        %v1411 = vand.u32 %v1410, 4294901760
        %1412 = vmatprep.subr.mxu0 %v1411
        %v1413 = vand.u32 %v661, 4294901760
        %v1414 = vsub.f32 %v661, %v1413
        %v1415 = vand.u32 %v1414, 4294901760
        %v1416 = vsub.f32 %v1414, %v1415
        %v1417 = vand.u32 %v1416, 4294901760
        %1418 = vmatpush1.msra.mxu0 %v1417
        %v1419 = vand.u32 %v658, 4294901760
        %v1420 = vsub.f32 %v658, %v1419
        %v1421 = vand.u32 %v1420, 4294901760
        %v1422 = vsub.f32 %v1420, %v1421
        %v1423 = vand.u32 %v1422, 4294901760
        %1424 = vmatprep.subr.mxu0 %v1423
        %v1425 = vand.u32 %v657, 4294901760
        %v1426 = vsub.f32 %v657, %v1425
        %v1427 = vand.u32 %v1426, 4294901760
        %v1428 = vsub.f32 %v1426, %v1427
        %v1429 = vand.u32 %v1428, 4294901760
        %1430 = vmatpush1.msra.mxu0 %v1429
        %1431 = vmatprep.subr.mxu0 0.0
        %1432 = vmatpush2.msra.mxu0 0.0
        %1433 = vmatprep.subr.mxu0 0.0
        %1434 = vmatpush2.msra.mxu0 0.0
        %1435 = vmatprep.subr.mxu0 0.0
        %1436 = vmatpush2.msra.mxu0 0.0
        %1437 = vmatprep.subr.mxu0 0.0
        %1438 = vmatpush2.msra.mxu0 0.0
        %1439 = vmatprep.subr.mxu0 0.0
        %1440 = vmatpush2.msra.mxu0 0.0
        %1441 = vmatprep.subr.mxu0 0.0
        %1442 = vmatpush2.msra.mxu0 0.0
        %1443 = vmatprep.subr.mxu0 0.0
        %1444 = vmatpush2.msra.mxu0 0.0
        %1445 = vmatprep.subr.mxu0 0.0
        %1446 = vmatpush2.msra.mxu0 0.0
        %1447 = vmatprep.subr.mxu0 0.0
        %1448 = vmatpush2.msra.mxu0 0.0
        %1449 = vmatprep.subr.mxu0 0.0
        %1450 = vmatpush2.msra.mxu0 0.0
        %1451 = vmatprep.subr.mxu0 0.0
        %1452 = vmatpush2.msra.mxu0 0.0
        %1453 = vmatprep.subr.mxu0 0.0
        %1454 = vmatpush2.msra.mxu0 0.0
        %1455 = vmatprep.subr.mxu0 0.0
        %1456 = vmatpush2.msra.mxu0 0.0
        %1457 = vmatprep.subr.mxu0 0.0
        %1458 = vmatpush2.msra.mxu0 0.0
        %1459 = vmatprep.subr.mxu0 0.0
        %1460 = vmatpush2.msra.mxu0 0.0
        %1461 = vmatprep.subr.mxu0 0.0
        %1462 = vmatpush2.msra.mxu0 0.0
        %1463 = vmatprep.mubr.f32.mxu0 0.0
        %v1464 = vand.u32 %v680, 4294901760
        %1465 = vmatmul.mubr.f32.gmra.mxu0 %v1464
        %v1466 = vpop.f32.mrf.mxu0
        %v1467 = vadd.f32 %v1353, %v1466
        %v1468 = vpop.f32.mrf.mxu0
        %v1469 = vadd.f32 %v1355, %v1468
        %1470 = vmatprep.mubr.f32.mxu0 0.0
        %v1471 = vand.u32 %v683, 4294901760
        %1472 = vmatmul.mubr.f32.gmra.mxu0 %v1471
        %v1473 = vpop.f32.mrf.mxu0
        %v1474 = vadd.f32 %v1364, %v1473
        %v1475 = vpop.f32.mrf.mxu0
        %v1476 = vadd.f32 %v1366, %v1475
        %1477 = vmatprep.mubr.f32.mxu0 0.0
        %v1478 = vand.u32 %v686, 4294901760
        %1479 = vmatmul.mubr.f32.gmra.mxu0 %v1478
        %v1480 = vpop.f32.mrf.mxu0
        %v1481 = vadd.f32 %v1375, %v1480
        %v1482 = vpop.f32.mrf.mxu0
        %v1483 = vadd.f32 %v1377, %v1482
        %1484 = vdwg.mxu0
        %1485 = vmatprep.subr.mxu0 0.0
        %1486 = vmatpush1.msra.mxu0 0.0
        %1487 = vmatprep.subr.mxu0 0.0
        %1488 = vmatpush1.msra.mxu0 0.0
        %1489 = vmatprep.subr.mxu0 0.0
        %1490 = vmatpush1.msra.mxu0 0.0
        %1491 = vmatprep.subr.mxu0 0.0
        %1492 = vmatpush1.msra.mxu0 0.0
        %1493 = vmatprep.subr.mxu0 0.0
        %1494 = vmatpush1.msra.mxu0 0.0
        %1495 = vmatprep.subr.mxu0 0.0
        %1496 = vmatpush1.msra.mxu0 0.0
        %1497 = vmatprep.subr.mxu0 0.0
        %1498 = vmatpush1.msra.mxu0 0.0
        %1499 = vmatprep.subr.mxu0 0.0
        %1500 = vmatpush1.msra.mxu0 0.0
        %1501 = vmatprep.subr.mxu0 0.0
        %1502 = vmatpush1.msra.mxu0 0.0
        %1503 = vmatprep.subr.mxu0 0.0
        %1504 = vmatpush1.msra.mxu0 0.0
        %1505 = vmatprep.subr.mxu0 0.0
        %1506 = vmatpush1.msra.mxu0 0.0
        %1507 = vmatprep.subr.mxu0 0.0
        %1508 = vmatpush1.msra.mxu0 0.0
        %1509 = vmatprep.subr.mxu0 0.0
        %1510 = vmatpush1.msra.mxu0 0.0
        %1511 = vmatprep.subr.mxu0 0.0
        %1512 = vmatpush1.msra.mxu0 0.0
        %v1513 = vand.u32 %v662, 4294901760
        %v1514 = vsub.f32 %v662, %v1513
        %1515 = vmatprep.subr.mxu0 %v1514
        %v1516 = vand.u32 %v661, 4294901760
        %v1517 = vsub.f32 %v661, %v1516
        %1518 = vmatpush1.msra.mxu0 %v1517
        %v1519 = vand.u32 %v658, 4294901760
        %v1520 = vsub.f32 %v658, %v1519
        %1521 = vmatprep.subr.mxu0 %v1520
        %v1522 = vand.u32 %v657, 4294901760
        %v1523 = vsub.f32 %v657, %v1522
        %1524 = vmatpush1.msra.mxu0 %v1523
        %1525 = vmatprep.subr.mxu0 0.0
        %1526 = vmatpush2.msra.mxu0 0.0
        %1527 = vmatprep.subr.mxu0 0.0
        %1528 = vmatpush2.msra.mxu0 0.0
        %1529 = vmatprep.subr.mxu0 0.0
        %1530 = vmatpush2.msra.mxu0 0.0
        %1531 = vmatprep.subr.mxu0 0.0
        %1532 = vmatpush2.msra.mxu0 0.0
        %1533 = vmatprep.subr.mxu0 0.0
        %1534 = vmatpush2.msra.mxu0 0.0
        %1535 = vmatprep.subr.mxu0 0.0
        %1536 = vmatpush2.msra.mxu0 0.0
        %1537 = vmatprep.subr.mxu0 0.0
        %1538 = vmatpush2.msra.mxu0 0.0
        %1539 = vmatprep.subr.mxu0 0.0
        %1540 = vmatpush2.msra.mxu0 0.0
        %1541 = vmatprep.subr.mxu0 0.0
        %1542 = vmatpush2.msra.mxu0 0.0
        %1543 = vmatprep.subr.mxu0 0.0
        %1544 = vmatpush2.msra.mxu0 0.0
        %1545 = vmatprep.subr.mxu0 0.0
        %1546 = vmatpush2.msra.mxu0 0.0
        %1547 = vmatprep.subr.mxu0 0.0
        %1548 = vmatpush2.msra.mxu0 0.0
        %1549 = vmatprep.subr.mxu0 0.0
        %1550 = vmatpush2.msra.mxu0 0.0
        %1551 = vmatprep.subr.mxu0 0.0
        %1552 = vmatpush2.msra.mxu0 0.0
        %1553 = vmatprep.subr.mxu0 0.0
        %1554 = vmatpush2.msra.mxu0 0.0
        %1555 = vmatprep.subr.mxu0 0.0
        %1556 = vmatpush2.msra.mxu0 0.0
        %1557 = vmatprep.mubr.f32.mxu0 0.0
        %v1558 = vand.u32 %v680, 4294901760
        %v1559 = vsub.f32 %v680, %v1558
        %1560 = vmatmul.mubr.f32.gmra.mxu0 %v1559
        %v1561 = vpop.f32.mrf.mxu0
        %v1562 = vadd.f32 %v1467, %v1561
        %v1563 = vpop.f32.mrf.mxu0
        %v1564 = vadd.f32 %v1469, %v1563
        %1565 = vmatprep.mubr.f32.mxu0 0.0
        %v1566 = vand.u32 %v683, 4294901760
        %v1567 = vsub.f32 %v683, %v1566
        %1568 = vmatmul.mubr.f32.gmra.mxu0 %v1567
        %v1569 = vpop.f32.mrf.mxu0
        %v1570 = vadd.f32 %v1474, %v1569
        %v1571 = vpop.f32.mrf.mxu0
        %v1572 = vadd.f32 %v1476, %v1571
        %1573 = vmatprep.mubr.f32.mxu0 0.0
        %v1574 = vand.u32 %v686, 4294901760
        %v1575 = vsub.f32 %v686, %v1574
        %1576 = vmatmul.mubr.f32.gmra.mxu0 %v1575
        %v1577 = vpop.f32.mrf.mxu0
        %v1578 = vadd.f32 %v1481, %v1577
        %v1579 = vpop.f32.mrf.mxu0
        %v1580 = vadd.f32 %v1483, %v1579
        %1581 = vdwg.mxu0
        %1582 = vmatprep.subr.mxu0 0.0
        %1583 = vmatpush1.msra.mxu0 0.0
        %1584 = vmatprep.subr.mxu0 0.0
        %1585 = vmatpush1.msra.mxu0 0.0
        %1586 = vmatprep.subr.mxu0 0.0
        %1587 = vmatpush1.msra.mxu0 0.0
        %1588 = vmatprep.subr.mxu0 0.0
        %1589 = vmatpush1.msra.mxu0 0.0
        %1590 = vmatprep.subr.mxu0 0.0
        %1591 = vmatpush1.msra.mxu0 0.0
        %1592 = vmatprep.subr.mxu0 0.0
        %1593 = vmatpush1.msra.mxu0 0.0
        %1594 = vmatprep.subr.mxu0 0.0
        %1595 = vmatpush1.msra.mxu0 0.0
        %1596 = vmatprep.subr.mxu0 0.0
        %1597 = vmatpush1.msra.mxu0 0.0
        %1598 = vmatprep.subr.mxu0 0.0
        %1599 = vmatpush1.msra.mxu0 0.0
        %1600 = vmatprep.subr.mxu0 0.0
        %1601 = vmatpush1.msra.mxu0 0.0
        %1602 = vmatprep.subr.mxu0 0.0
        %1603 = vmatpush1.msra.mxu0 0.0
        %1604 = vmatprep.subr.mxu0 0.0
        %1605 = vmatpush1.msra.mxu0 0.0
        %1606 = vmatprep.subr.mxu0 0.0
        %1607 = vmatpush1.msra.mxu0 0.0
        %1608 = vmatprep.subr.mxu0 0.0
        %1609 = vmatpush1.msra.mxu0 0.0
        %v1610 = vand.u32 %v662, 4294901760
        %1611 = vmatprep.subr.mxu0 %v1610
        %v1612 = vand.u32 %v661, 4294901760
        %1613 = vmatpush1.msra.mxu0 %v1612
        %v1614 = vand.u32 %v658, 4294901760
        %1615 = vmatprep.subr.mxu0 %v1614
        %v1616 = vand.u32 %v657, 4294901760
        %1617 = vmatpush1.msra.mxu0 %v1616
        %1618 = vmatprep.subr.mxu0 0.0
        %1619 = vmatpush2.msra.mxu0 0.0
        %1620 = vmatprep.subr.mxu0 0.0
        %1621 = vmatpush2.msra.mxu0 0.0
        %1622 = vmatprep.subr.mxu0 0.0
        %1623 = vmatpush2.msra.mxu0 0.0
        %1624 = vmatprep.subr.mxu0 0.0
        %1625 = vmatpush2.msra.mxu0 0.0
        %1626 = vmatprep.subr.mxu0 0.0
        %1627 = vmatpush2.msra.mxu0 0.0
        %1628 = vmatprep.subr.mxu0 0.0
        %1629 = vmatpush2.msra.mxu0 0.0
        %1630 = vmatprep.subr.mxu0 0.0
        %1631 = vmatpush2.msra.mxu0 0.0
        %1632 = vmatprep.subr.mxu0 0.0
        %1633 = vmatpush2.msra.mxu0 0.0
        %1634 = vmatprep.subr.mxu0 0.0
        %1635 = vmatpush2.msra.mxu0 0.0
        %1636 = vmatprep.subr.mxu0 0.0
        %1637 = vmatpush2.msra.mxu0 0.0
        %1638 = vmatprep.subr.mxu0 0.0
        %1639 = vmatpush2.msra.mxu0 0.0
        %1640 = vmatprep.subr.mxu0 0.0
        %1641 = vmatpush2.msra.mxu0 0.0
        %1642 = vmatprep.subr.mxu0 0.0
        %1643 = vmatpush2.msra.mxu0 0.0
        %1644 = vmatprep.subr.mxu0 0.0
        %1645 = vmatpush2.msra.mxu0 0.0
        %1646 = vmatprep.subr.mxu0 0.0
        %1647 = vmatpush2.msra.mxu0 0.0
        %1648 = vmatprep.subr.mxu0 0.0
        %1649 = vmatpush2.msra.mxu0 0.0
        %1650 = vmatprep.mubr.f32.mxu0 0.0
        %v1651 = vand.u32 %v680, 4294901760
        %v1652 = vsub.f32 %v680, %v1651
        %v1653 = vand.u32 %v1652, 4294901760
        %1654 = vmatmul.mubr.f32.gmra.mxu0 %v1653
        %v1655 = vpop.f32.mrf.mxu0
        %v1656 = vadd.f32 %v1562, %v1655
        %v1657 = vpop.f32.mrf.mxu0
        %v1658 = vadd.f32 %v1564, %v1657
        %1659 = vmatprep.mubr.f32.mxu0 0.0
        %v1660 = vand.u32 %v683, 4294901760
        %v1661 = vsub.f32 %v683, %v1660
        %v1662 = vand.u32 %v1661, 4294901760
        %1663 = vmatmul.mubr.f32.gmra.mxu0 %v1662
        %v1664 = vpop.f32.mrf.mxu0
        %v1665 = vadd.f32 %v1570, %v1664
        %v1666 = vpop.f32.mrf.mxu0
        %v1667 = vadd.f32 %v1572, %v1666
        %1668 = vmatprep.mubr.f32.mxu0 0.0
        %v1669 = vand.u32 %v686, 4294901760
        %v1670 = vsub.f32 %v686, %v1669
        %v1671 = vand.u32 %v1670, 4294901760
        %1672 = vmatmul.mubr.f32.gmra.mxu0 %v1671
        %v1673 = vpop.f32.mrf.mxu0
        %v1674 = vadd.f32 %v1578, %v1673
        %v1675 = vpop.f32.mrf.mxu0
        %v1676 = vadd.f32 %v1580, %v1675
        %1677 = vdwg.mxu0
        %1678 = vmatprep.subr.mxu0 0.0
        %1679 = vmatpush1.msra.mxu0 0.0
        %1680 = vmatprep.subr.mxu0 0.0
        %1681 = vmatpush1.msra.mxu0 0.0
        %1682 = vmatprep.subr.mxu0 0.0
        %1683 = vmatpush1.msra.mxu0 0.0
        %1684 = vmatprep.subr.mxu0 0.0
        %1685 = vmatpush1.msra.mxu0 0.0
        %1686 = vmatprep.subr.mxu0 0.0
        %1687 = vmatpush1.msra.mxu0 0.0
        %1688 = vmatprep.subr.mxu0 0.0
        %1689 = vmatpush1.msra.mxu0 0.0
        %1690 = vmatprep.subr.mxu0 0.0
        %1691 = vmatpush1.msra.mxu0 0.0
        %1692 = vmatprep.subr.mxu0 0.0
        %1693 = vmatpush1.msra.mxu0 0.0
        %1694 = vmatprep.subr.mxu0 0.0
        %1695 = vmatpush1.msra.mxu0 0.0
        %1696 = vmatprep.subr.mxu0 0.0
        %1697 = vmatpush1.msra.mxu0 0.0
        %1698 = vmatprep.subr.mxu0 0.0
        %1699 = vmatpush1.msra.mxu0 0.0
        %1700 = vmatprep.subr.mxu0 0.0
        %1701 = vmatpush1.msra.mxu0 0.0
        %1702 = vmatprep.subr.mxu0 0.0
        %1703 = vmatpush1.msra.mxu0 0.0
        %1704 = vmatprep.subr.mxu0 0.0
        %1705 = vmatpush1.msra.mxu0 0.0
        %v1706 = vand.u32 %v662, 4294901760
        %v1707 = vsub.f32 %v662, %v1706
        %v1708 = vand.u32 %v1707, 4294901760
        %1709 = vmatprep.subr.mxu0 %v1708
        %v1710 = vand.u32 %v661, 4294901760
        %v1711 = vsub.f32 %v661, %v1710
        %v1712 = vand.u32 %v1711, 4294901760
        %1713 = vmatpush1.msra.mxu0 %v1712
        %v1714 = vand.u32 %v658, 4294901760
        %v1715 = vsub.f32 %v658, %v1714
        %v1716 = vand.u32 %v1715, 4294901760
        %1717 = vmatprep.subr.mxu0 %v1716
        %v1718 = vand.u32 %v657, 4294901760
        %v1719 = vsub.f32 %v657, %v1718
        %v1720 = vand.u32 %v1719, 4294901760
        %1721 = vmatpush1.msra.mxu0 %v1720
        %1722 = vmatprep.subr.mxu0 0.0
        %1723 = vmatpush2.msra.mxu0 0.0
        %1724 = vmatprep.subr.mxu0 0.0
        %1725 = vmatpush2.msra.mxu0 0.0
        %1726 = vmatprep.subr.mxu0 0.0
        %1727 = vmatpush2.msra.mxu0 0.0
        %1728 = vmatprep.subr.mxu0 0.0
        %1729 = vmatpush2.msra.mxu0 0.0
        %1730 = vmatprep.subr.mxu0 0.0
        %1731 = vmatpush2.msra.mxu0 0.0
        %1732 = vmatprep.subr.mxu0 0.0
        %1733 = vmatpush2.msra.mxu0 0.0
        %1734 = vmatprep.subr.mxu0 0.0
        %1735 = vmatpush2.msra.mxu0 0.0
        %1736 = vmatprep.subr.mxu0 0.0
        %1737 = vmatpush2.msra.mxu0 0.0
        %1738 = vmatprep.subr.mxu0 0.0
        %1739 = vmatpush2.msra.mxu0 0.0
        %1740 = vmatprep.subr.mxu0 0.0
        %1741 = vmatpush2.msra.mxu0 0.0
        %1742 = vmatprep.subr.mxu0 0.0
        %1743 = vmatpush2.msra.mxu0 0.0
        %1744 = vmatprep.subr.mxu0 0.0
        %1745 = vmatpush2.msra.mxu0 0.0
        %1746 = vmatprep.subr.mxu0 0.0
        %1747 = vmatpush2.msra.mxu0 0.0
        %1748 = vmatprep.subr.mxu0 0.0
        %1749 = vmatpush2.msra.mxu0 0.0
        %1750 = vmatprep.subr.mxu0 0.0
        %1751 = vmatpush2.msra.mxu0 0.0
        %1752 = vmatprep.subr.mxu0 0.0
        %1753 = vmatpush2.msra.mxu0 0.0
        %1754 = vmatprep.mubr.f32.mxu0 0.0
        %v1755 = vand.u32 %v680, 4294901760
        %1756 = vmatmul.mubr.f32.gmra.mxu0 %v1755
        %v1757 = vpop.f32.mrf.mxu0
        %v1758 = vadd.f32 %v1656, %v1757
        %v1759 = vpop.f32.mrf.mxu0
        %v1760 = vadd.f32 %v1658, %v1759
        %1761 = vmatprep.mubr.f32.mxu0 0.0
        %v1762 = vand.u32 %v683, 4294901760
        %1763 = vmatmul.mubr.f32.gmra.mxu0 %v1762
        %v1764 = vpop.f32.mrf.mxu0
        %v1765 = vadd.f32 %v1665, %v1764
        %v1766 = vpop.f32.mrf.mxu0
        %v1767 = vadd.f32 %v1667, %v1766
        %1768 = vmatprep.mubr.f32.mxu0 0.0
        %v1769 = vand.u32 %v686, 4294901760
        %1770 = vmatmul.mubr.f32.gmra.mxu0 %v1769
        %v1771 = vpop.f32.mrf.mxu0
        %v1772 = vadd.f32 %v1674, %v1771
        %v1773 = vpop.f32.mrf.mxu0
        %v1774 = vadd.f32 %v1676, %v1773
        %1775 = vdwg.mxu0
        %1776 = vmatprep.subr.mxu0 0.0
        %1777 = vmatpush1.msra.mxu0 0.0
        %1778 = vmatprep.subr.mxu0 0.0
        %1779 = vmatpush1.msra.mxu0 0.0
        %1780 = vmatprep.subr.mxu0 0.0
        %1781 = vmatpush1.msra.mxu0 0.0
        %1782 = vmatprep.subr.mxu0 0.0
        %1783 = vmatpush1.msra.mxu0 0.0
        %1784 = vmatprep.subr.mxu0 0.0
        %1785 = vmatpush1.msra.mxu0 0.0
        %1786 = vmatprep.subr.mxu0 0.0
        %1787 = vmatpush1.msra.mxu0 0.0
        %1788 = vmatprep.subr.mxu0 0.0
        %1789 = vmatpush1.msra.mxu0 0.0
        %1790 = vmatprep.subr.mxu0 0.0
        %1791 = vmatpush1.msra.mxu0 0.0
        %1792 = vmatprep.subr.mxu0 0.0
        %1793 = vmatpush1.msra.mxu0 0.0
        %1794 = vmatprep.subr.mxu0 0.0
        %1795 = vmatpush1.msra.mxu0 0.0
        %1796 = vmatprep.subr.mxu0 0.0
        %1797 = vmatpush1.msra.mxu0 0.0
        %1798 = vmatprep.subr.mxu0 0.0
        %1799 = vmatpush1.msra.mxu0 0.0
        %1800 = vmatprep.subr.mxu0 0.0
        %1801 = vmatpush1.msra.mxu0 0.0
        %1802 = vmatprep.subr.mxu0 0.0
        %1803 = vmatpush1.msra.mxu0 0.0
        %v1804 = vand.u32 %v662, 4294901760
        %1805 = vmatprep.subr.mxu0 %v1804
        %v1806 = vand.u32 %v661, 4294901760
        %1807 = vmatpush1.msra.mxu0 %v1806
        %v1808 = vand.u32 %v658, 4294901760
        %1809 = vmatprep.subr.mxu0 %v1808
        %v1810 = vand.u32 %v657, 4294901760
        %1811 = vmatpush1.msra.mxu0 %v1810
        %1812 = vmatprep.subr.mxu0 0.0
        %1813 = vmatpush2.msra.mxu0 0.0
        %1814 = vmatprep.subr.mxu0 0.0
        %1815 = vmatpush2.msra.mxu0 0.0
        %1816 = vmatprep.subr.mxu0 0.0
        %1817 = vmatpush2.msra.mxu0 0.0
        %1818 = vmatprep.subr.mxu0 0.0
        %1819 = vmatpush2.msra.mxu0 0.0
        %1820 = vmatprep.subr.mxu0 0.0
        %1821 = vmatpush2.msra.mxu0 0.0
        %1822 = vmatprep.subr.mxu0 0.0
        %1823 = vmatpush2.msra.mxu0 0.0
        %1824 = vmatprep.subr.mxu0 0.0
        %1825 = vmatpush2.msra.mxu0 0.0
        %1826 = vmatprep.subr.mxu0 0.0
        %1827 = vmatpush2.msra.mxu0 0.0
        %1828 = vmatprep.subr.mxu0 0.0
        %1829 = vmatpush2.msra.mxu0 0.0
        %1830 = vmatprep.subr.mxu0 0.0
        %1831 = vmatpush2.msra.mxu0 0.0
        %1832 = vmatprep.subr.mxu0 0.0
        %1833 = vmatpush2.msra.mxu0 0.0
        %1834 = vmatprep.subr.mxu0 0.0
        %1835 = vmatpush2.msra.mxu0 0.0
        %1836 = vmatprep.subr.mxu0 0.0
        %1837 = vmatpush2.msra.mxu0 0.0
        %1838 = vmatprep.subr.mxu0 0.0
        %1839 = vmatpush2.msra.mxu0 0.0
        %1840 = vmatprep.subr.mxu0 0.0
        %1841 = vmatpush2.msra.mxu0 0.0
        %1842 = vmatprep.subr.mxu0 0.0
        %1843 = vmatpush2.msra.mxu0 0.0
        %1844 = vmatprep.mubr.f32.mxu0 0.0
        %v1845 = vand.u32 %v680, 4294901760
        %1846 = vmatmul.mubr.f32.gmra.mxu0 %v1845
        %v1847 = vpop.f32.mrf.mxu0
        %v1848 = vadd.f32 %v1758, %v1847
        %v1849 = vpop.f32.mrf.mxu0
        %v1850 = vadd.f32 %v1760, %v1849
        %1851 = vmatprep.mubr.f32.mxu0 0.0
        %v1852 = vand.u32 %v683, 4294901760
        %1853 = vmatmul.mubr.f32.gmra.mxu0 %v1852
        %v1854 = vpop.f32.mrf.mxu0
        %v1855 = vadd.f32 %v1765, %v1854
        %v1856 = vpop.f32.mrf.mxu0
        %v1857 = vadd.f32 %v1767, %v1856
        %1858 = vmatprep.mubr.f32.mxu0 0.0
        %v1859 = vand.u32 %v686, 4294901760
        %1860 = vmatmul.mubr.f32.gmra.mxu0 %v1859
        %v1861 = vpop.f32.mrf.mxu0
        %v1862 = vadd.f32 %v1772, %v1861
        %v1863 = vpop.f32.mrf.mxu0
        %v1864 = vadd.f32 %v1774, %v1863
        %1865 = vdwg.mxu0
        %v1866 = vlaneseq
        %v1867 = vand.u32 %v1866, 127
        %v1868 = vadd.s32 %v1867, 128
        %v1869 = vadd.s32 %v1867, 256
        %v1870 = vadd.s32 %v1867, 384
        %v1871 = vstv %s435
        %v1872 = vadd.s32 %v1867, %v1871
        %v1873 = vadd.s32 %v1868, %v1871
        %v1874 = vadd.s32 %v1869, %v1871
        %v1875 = vadd.s32 %v1870, %v1871
        %v1876 = vcvt.s32.f32 %v1872
        %v1877 = vcvt.s32.f32 %v1873
        %v1878 = vcvt.s32.f32 %v1874
        %v1879 = vcvt.s32.f32 %v1875
        %v1880 = vadd.f32 %v1876, 0.5
        %v1881 = vadd.f32 %v1877, 0.5
        %v1882 = vadd.f32 %v1878, 0.5
        %v1883 = vadd.f32 %v1879, 0.5
        %v1884 = vstv %s443
        %v1885 = vmul.f32 %v1880, %v1884
        %v1886 = vmul.f32 %v1881, %v1884
        %v1887 = vmul.f32 %v1882, %v1884
        %v1888 = vmul.f32 %v1883, %v1884
        %v1889 = vfloor.f32 %v1885
        %v1890 = vfloor.f32 %v1886
        %v1891 = vfloor.f32 %v1887
        %v1892 = vfloor.f32 %v1888
        %v1893 = vstv %s441
        %v1894 = vmul.f32 %v1889, %v1893
        %v1895 = vmul.f32 %v1890, %v1893
        %v1896 = vmul.f32 %v1891, %v1893
        %v1897 = vmul.f32 %v1892, %v1893
        %v1898 = vsub.f32 %v1876, %v1894
        %v1899 = vsub.f32 %v1877, %v1895
        %v1900 = vsub.f32 %v1878, %v1896
        %v1901 = vsub.f32 %v1879, %v1897
        %v1902 = vadd.f32 %v1898, 0.5
        %v1903 = vadd.f32 %v1899, 0.5
        %v1904 = vadd.f32 %v1900, 0.5
        %v1905 = vadd.f32 %v1901, 0.5
        %v1906 = vstv %s447
        %v1907 = vmul.f32 %v1902, %v1906
        %v1908 = vmul.f32 %v1903, %v1906
        %v1909 = vmul.f32 %v1904, %v1906
        %v1910 = vmul.f32 %v1905, %v1906
        %v1911 = vfloor.f32 %v1907
        %v1912 = vfloor.f32 %v1908
        %v1913 = vfloor.f32 %v1909
        %v1914 = vfloor.f32 %v1910
        %v1915 = vstv %s445
        %v1916 = vmul.f32 %v1911, %v1915
        %v1917 = vmul.f32 %v1912, %v1915
        %v1918 = vmul.f32 %v1913, %v1915
        %v1919 = vmul.f32 %v1914, %v1915
        %v1920 = vsub.f32 %v1898, %v1916
        %v1921 = vsub.f32 %v1899, %v1917
        %v1922 = vsub.f32 %v1900, %v1918
        %v1923 = vsub.f32 %v1901, %v1919
        %v1924 = vxor.u32 %v1259, 2147483648
        %v1925 = vxor.u32 %v1261, 2147483648
        %v1926 = vxor.u32 %v1848, 2147483648
        %v1927 = vxor.u32 %v1850, 2147483648
        %v1928 = vmul.f32 %v1924, 1.442695
        %v1929 = vpow.pop %v1928
        %v1930 = vmul.f32 %v1925, 1.442695
        %v1931 = vpow.pop %v1930
        %v1932 = vmul.f32 %v1926, 1.442695
        %v1933 = vpow.pop %v1932
        %v1934 = vmul.f32 %v1927, 1.442695
        %v1935 = vpow.pop %v1934
        %v1936 = vadd.f32 %v1929, 1.0
        %v1937 = vadd.f32 %v1931, 1.0
        %v1938 = vadd.f32 %v1933, 1.0
        %v1939 = vadd.f32 %v1935, 1.0
        %v1940 = vrcp.pop %v1936
        %v1941 = vmul.f32 1.0, %v1940
        %v1942 = vrcp.pop %v1937
        %v1943 = vmul.f32 1.0, %v1942
        %v1944 = vrcp.pop %v1938
        %v1945 = vmul.f32 1.0, %v1944
        %v1946 = vrcp.pop %v1939
        %v1947 = vmul.f32 1.0, %v1946
        %v1948 = vstv %s439
        %vm1949 = vcmp.gt.f32.partialorder %v1259, %v1948
        %vm1950 = vcmp.gt.f32.partialorder %v1261, %v1948
        %vm1951 = vcmp.gt.f32.partialorder %v1848, %v1948
        %vm1952 = vcmp.gt.f32.partialorder %v1850, %v1948
        %v1953 = vsel %vm1949, 1, 0
        %v1954 = vsel %vm1950, 1, 0
        %v1955 = vsel %vm1951, 1, 0
        %v1956 = vsel %vm1952, 1, 0
        %v1957 = vcvt.s32.f32 %v1953
        %v1958 = vcvt.s32.f32 %v1954
        %v1959 = vcvt.s32.f32 %v1955
        %v1960 = vcvt.s32.f32 %v1956
        %v1961 = vadd.f32 %v1920, %v1259
        %v1962 = vadd.f32 %v1921, %v1261
        %v1963 = vadd.f32 %v1922, %v1848
        %v1964 = vadd.f32 %v1923, %v1850
        %v1965 = vstv %s437
        %v1966 = vmul.f32 %v1961, %v1965
        %v1967 = vmul.f32 %v1962, %v1965
        %v1968 = vmul.f32 %v1963, %v1965
        %v1969 = vmul.f32 %v1964, %v1965
        %v1970 = vadd.f32 %v1911, %v1259
        %v1971 = vadd.f32 %v1912, %v1261
        %v1972 = vadd.f32 %v1913, %v1848
        %v1973 = vadd.f32 %v1914, %v1850
        %v1974 = vadd.f32 %v1911, %v1266
        %v1975 = vadd.f32 %v1912, %v1268
        %v1976 = vadd.f32 %v1913, %v1855
        %v1977 = vadd.f32 %v1914, %v1857
        %v1978 = vmul.f32 %v1970, %v1965
        %v1979 = vmul.f32 %v1971, %v1965
        %v1980 = vmul.f32 %v1972, %v1965
        %v1981 = vmul.f32 %v1973, %v1965
        %v1982 = vmul.f32 %v1974, %v1965
        %v1983 = vmul.f32 %v1975, %v1965
        %v1984 = vmul.f32 %v1976, %v1965
        %v1985 = vmul.f32 %v1977, %v1965
        %v1986 = vmul.f32 %v1266, 1.442695
        %v1987 = vpow.pop %v1986
        %v1988 = vmul.f32 %v1268, 1.442695
        %v1989 = vpow.pop %v1988
        %v1990 = vmul.f32 %v1855, 1.442695
        %v1991 = vpow.pop %v1990
        %v1992 = vmul.f32 %v1857, 1.442695
        %v1993 = vpow.pop %v1992
        %1995 = vset.pattern.permute.xlu0 0
        %1996 = vperm.xlu0 %1995, %v458
        %v1997 = vpop.permute.xlu0 %1996
        %v2003 = vrot.slane %v1987, 1
        %v2004 = vrot.slane %v1989, 1
        %v2005 = vrot.slane %v1991, 1
        %v2006 = vrot.slane %v1993, 1
        %v2011 = vmul.f32 %v1997, %v2003
        %v2012 = vmul.f32 %v1997, %v2004
        %v2013 = vmul.f32 %v1997, %v2005
        %v2014 = vmul.f32 %v1997, %v2006
        %vm2023 = vcmask 1042432
        %v2024 = vrot.slane %v1266, 5
        %v2025 = vrot.slane %v1273, 5
        %v2026 = vsel %vm2023, %v2024, %v2025
        %v2027 = vrot.slane %v1268, 5
        %v2028 = vrot.slane %v1275, 5
        %v2029 = vsel %vm2023, %v2027, %v2028
        %v2030 = vrot.slane %v1855, 5
        %v2031 = vrot.slane %v1862, 5
        %v2032 = vsel %vm2023, %v2030, %v2031
        %v2033 = vrot.slane %v1857, 5
        %v2034 = vrot.slane %v1864, 5
        %v2035 = vsel %vm2023, %v2033, %v2034
        %vm2040 = vcmp.gt.f32.partialorder %v1273, %v2026
        %vm2041 = vcmp.gt.f32.partialorder %v1275, %v2029
        %vm2042 = vcmp.gt.f32.partialorder %v1862, %v2032
        %vm2043 = vcmp.gt.f32.partialorder %v1864, %v2035
        %v2044 = vsel %vm2040, 1.0, 0.0
        %v2045 = vsel %vm2041, 1.0, 0.0
        %v2046 = vsel %vm2042, 1.0, 0.0
        %v2047 = vsel %vm2043, 1.0, 0.0
        %v2048 = vrot.slane %v1273, 3
        %v2049 = vrot.slane %v1275, 3
        %v2050 = vrot.slane %v1862, 3
        %v2051 = vrot.slane %v1864, 3
        %v2056 = vmax.f32 %v1266, %v2048
        %v2057 = vmax.f32 %v1268, %v2049
        %v2058 = vmax.f32 %v1855, %v2050
        %v2059 = vmax.f32 %v1857, %v2051
        %v2060 = vmax.f32 %v1273, %v2048
        %v2061 = vmax.f32 %v1275, %v2049
        %v2062 = vmax.f32 %v1862, %v2050
        %v2063 = vmax.f32 %v1864, %v2051
        %vm2072 = vcmask 1045504
        %v2073 = vrot.slane %v2056, 2
        %v2074 = vrot.slane %v2060, 2
        %v2075 = vsel %vm2072, %v2073, %v2074
        %v2076 = vrot.slane %v2057, 2
        %v2077 = vrot.slane %v2061, 2
        %v2078 = vsel %vm2072, %v2076, %v2077
        %v2079 = vrot.slane %v2058, 2
        %v2080 = vrot.slane %v2062, 2
        %v2081 = vsel %vm2072, %v2079, %v2080
        %v2082 = vrot.slane %v2059, 2
        %v2083 = vrot.slane %v2063, 2
        %v2084 = vsel %vm2072, %v2082, %v2083
        %vm2089 = vcmp.gt.f32.partialorder %v1273, %v2075
        %vm2090 = vcmp.gt.f32.partialorder %v1275, %v2078
        %vm2091 = vcmp.gt.f32.partialorder %v1862, %v2081
        %vm2092 = vcmp.gt.f32.partialorder %v1864, %v2084
        %v2097 = vrot.slane %v2044, 5
        %v2098 = vrot.slane %v2045, 5
        %v2099 = vrot.slane %v2046, 5
        %v2100 = vrot.slane %v2047, 5
        %v2105 = vsel %vm2089, 2.0, %v2097
        %v2106 = vsel %vm2090, 2.0, %v2098
        %v2107 = vsel %vm2091, 2.0, %v2099
        %v2108 = vsel %vm2092, 2.0, %v2100
        %v2113 = vrot.slane %v2011, 7
        %v2114 = vrot.slane %v2012, 7
        %v2115 = vrot.slane %v2013, 7
        %v2116 = vrot.slane %v2014, 7
        %v2125 = vrot.slane %v2105, 6
        %v2126 = vrot.slane %v2106, 6
        %v2127 = vrot.slane %v2107, 6
        %v2128 = vrot.slane %v2108, 6
        %v2137 = vrot.slane %v1957, 6
        %v2138 = vrot.slane %v1958, 6
        %v2139 = vrot.slane %v1959, 6
        %v2140 = vrot.slane %v1960, 6
        %v2145 = vsel %vm2023, %v1941, %v1966
        %v2146 = vsel %vm2023, %v1943, %v1967
        %v2147 = vsel %vm2023, %v1945, %v1968
        %v2148 = vsel %vm2023, %v1947, %v1969
        %v2149 = vsel %vm2072, %v2145, %v1978
        %v2150 = vsel %vm2072, %v2146, %v1979
        %v2151 = vsel %vm2072, %v2147, %v1980
        %v2152 = vsel %vm2072, %v2148, %v1981
        %vm2153 = vcmask 1040384
        %v2154 = vsel %vm2153, %v1982, %v2113
        %v2155 = vsel %vm2153, %v1983, %v2114
        %v2156 = vsel %vm2153, %v1984, %v2115
        %v2157 = vsel %vm2153, %v1985, %v2116
        %vm2158 = vcmask 1043456
        %v2159 = vsel %vm2158, %v2154, %v2113
        %v2160 = vsel %vm2158, %v2155, %v2114
        %v2161 = vsel %vm2158, %v2156, %v2115
        %v2162 = vsel %vm2158, %v2157, %v2116
        %vm2163 = vcmask 1046528
        %v2164 = vsel %vm2163, %v2159, %v2125
        %v2165 = vsel %vm2163, %v2160, %v2126
        %v2166 = vsel %vm2163, %v2161, %v2127
        %v2167 = vsel %vm2163, %v2162, %v2128
        %vm2168 = vcmask 1041408
        %v2169 = vsel %vm2168, %v2125, %v2137
        %v2170 = vsel %vm2168, %v2126, %v2138
        %v2171 = vsel %vm2168, %v2127, %v2139
        %v2172 = vsel %vm2168, %v2128, %v2140
        %vm2173 = vcmask 1044480
        %v2174 = vsel %vm2173, %v2169, 0.0
        %v2175 = vsel %vm2173, %v2170, 0.0
        %v2176 = vsel %vm2173, %v2171, 0.0
        %v2177 = vsel %vm2173, %v2172, 0.0
        %2178 = vst [vmem:[%s392] sm:$0xff] %v2149
        %2179 = vst [vmem:[%s392 + $0x8] sm:$0xff] %v2150
        %2180 = vst [vmem:[%s392 + $0x10] sm:$0xff] %v2151
        %2181 = vst [vmem:[%s392 + $0x18] sm:$0xff] %v2152
        %2182 = vst [vmem:[%s392 + $0x40] sm:$0xff] %v2164
        %2183 = vst [vmem:[%s392 + $0x48] sm:$0xff] %v2165
        %2184 = vst [vmem:[%s392 + $0x50] sm:$0xff] %v2166
        %2185 = vst [vmem:[%s392 + $0x58] sm:$0xff] %v2167
        %2186 = vst [vmem:[%s392 + $0x80] sm:$0xff] %v2174
        %2187 = vst [vmem:[%s392 + $0x88] sm:$0xff] %v2175
        %2188 = vst [vmem:[%s392 + $0x90] sm:$0xff] %v2176
        %2189 = vst [vmem:[%s392 + $0x98] sm:$0xff] %v2177
        %v2190 = vld [vmem:[%s397 + $0x10] sm:$0x77]
        %v2191 = vld [vmem:[%s397 + $0x18] sm:$0x77]
        %v2194 = vlaneseq
        %v2195 = vshrl.u32 %v2194, 7
        %v2196 = vsub.s32 0, %v2195
        %v2197 = vrot.slane %v2190, %v2196
        %v2198 = vlaneseq
        %v2199 = vshrl.u32 %v2198, 7
        %v2200 = vsub.s32 4, %v2199
        %v2201 = vrot.slane %v2190, %v2200
        %v2202 = vlaneseq
        %v2203 = vshrl.u32 %v2202, 7
        %v2204 = vsub.s32 0, %v2203
        %v2205 = vrot.slane %v2191, %v2204
        %v2206 = vlaneseq
        %v2207 = vshrl.u32 %v2206, 7
        %v2208 = vsub.s32 4, %v2207
        %v2209 = vrot.slane %v2191, %v2208
        %v2214 = vlaneseq
        %v2215 = vshrl.u32 %v2214, 7
        %v2216 = vsub.s32 0, %v2215
        %v2217 = vrot.slane %v2197, %v2216
        %v2218 = vlaneseq
        %v2219 = vshrl.u32 %v2218, 7
        %v2220 = vsub.s32 0, %v2219
        %v2221 = vrot.slane %v2201, %v2220
        %v2222 = vlaneseq
        %v2223 = vshrl.u32 %v2222, 7
        %v2224 = vsub.s32 0, %v2223
        %v2225 = vrot.slane %v2205, %v2224
        %v2226 = vlaneseq
        %v2227 = vshrl.u32 %v2226, 7
        %v2228 = vsub.s32 0, %v2227
        %v2229 = vrot.slane %v2209, %v2228
        %v2230 = vmul.f32 %v464, %v2217
        %v2231 = vmul.f32 %v464, %v2221
        %v2232 = vmul.f32 %v464, %v2225
        %v2233 = vmul.f32 %v464, %v2229
        %v2234 = vmul.f32 %v469, %v2217
        %v2235 = vmul.f32 %v469, %v2221
        %v2236 = vmul.f32 %v469, %v2225
        %v2237 = vmul.f32 %v469, %v2229
        %v2238 = vadd.f32 %v520, %v2230
        %v2239 = vadd.f32 %v520, %v2231
        %v2240 = vadd.f32 %v520, %v2232
        %v2241 = vadd.f32 %v520, %v2233
        %v2242 = vadd.f32 %v525, %v2234
        %v2243 = vadd.f32 %v525, %v2235
        %v2244 = vadd.f32 %v525, %v2236
        %v2245 = vadd.f32 %v525, %v2237
        %v2246 = vlaneseq
        %v2247 = vshrl.u32 %v2246, 7
        %v2248 = vsub.s32 1, %v2247
        %v2249 = vrot.slane %v2190, %v2248
        %v2250 = vlaneseq
        %v2251 = vshrl.u32 %v2250, 7
        %v2252 = vsub.s32 5, %v2251
        %v2253 = vrot.slane %v2190, %v2252
        %v2254 = vlaneseq
        %v2255 = vshrl.u32 %v2254, 7
        %v2256 = vsub.s32 1, %v2255
        %v2257 = vrot.slane %v2191, %v2256
        %v2258 = vlaneseq
        %v2259 = vshrl.u32 %v2258, 7
        %v2260 = vsub.s32 5, %v2259
        %v2261 = vrot.slane %v2191, %v2260
        %v2266 = vlaneseq
        %v2267 = vshrl.u32 %v2266, 7
        %v2268 = vsub.s32 1, %v2267
        %v2269 = vrot.slane %v2249, %v2268
        %v2270 = vlaneseq
        %v2271 = vshrl.u32 %v2270, 7
        %v2272 = vsub.s32 1, %v2271
        %v2273 = vrot.slane %v2253, %v2272
        %v2274 = vlaneseq
        %v2275 = vshrl.u32 %v2274, 7
        %v2276 = vsub.s32 1, %v2275
        %v2277 = vrot.slane %v2257, %v2276
        %v2278 = vlaneseq
        %v2279 = vshrl.u32 %v2278, 7
        %v2280 = vsub.s32 1, %v2279
        %v2281 = vrot.slane %v2261, %v2280
        %v2282 = vmul.f32 %v537, %v2269
        %v2283 = vmul.f32 %v537, %v2273
        %v2284 = vmul.f32 %v537, %v2277
        %v2285 = vmul.f32 %v537, %v2281
        %v2286 = vmul.f32 %v541, %v2269
        %v2287 = vmul.f32 %v541, %v2273
        %v2288 = vmul.f32 %v541, %v2277
        %v2289 = vmul.f32 %v541, %v2281
        %v2290 = vadd.f32 %v2238, %v2282
        %v2291 = vadd.f32 %v2239, %v2283
        %v2292 = vadd.f32 %v2240, %v2284
        %v2293 = vadd.f32 %v2241, %v2285
        %v2294 = vadd.f32 %v2242, %v2286
        %v2295 = vadd.f32 %v2243, %v2287
        %v2296 = vadd.f32 %v2244, %v2288
        %v2297 = vadd.f32 %v2245, %v2289
        %v2298 = vlaneseq
        %v2299 = vshrl.u32 %v2298, 7
        %v2300 = vsub.s32 2, %v2299
        %v2301 = vrot.slane %v2190, %v2300
        %v2302 = vlaneseq
        %v2303 = vshrl.u32 %v2302, 7
        %v2304 = vsub.s32 6, %v2303
        %v2305 = vrot.slane %v2190, %v2304
        %v2306 = vlaneseq
        %v2307 = vshrl.u32 %v2306, 7
        %v2308 = vsub.s32 2, %v2307
        %v2309 = vrot.slane %v2191, %v2308
        %v2310 = vlaneseq
        %v2311 = vshrl.u32 %v2310, 7
        %v2312 = vsub.s32 6, %v2311
        %v2313 = vrot.slane %v2191, %v2312
        %v2318 = vlaneseq
        %v2319 = vshrl.u32 %v2318, 7
        %v2320 = vsub.s32 2, %v2319
        %v2321 = vrot.slane %v2301, %v2320
        %v2322 = vlaneseq
        %v2323 = vshrl.u32 %v2322, 7
        %v2324 = vsub.s32 2, %v2323
        %v2325 = vrot.slane %v2305, %v2324
        %v2326 = vlaneseq
        %v2327 = vshrl.u32 %v2326, 7
        %v2328 = vsub.s32 2, %v2327
        %v2329 = vrot.slane %v2309, %v2328
        %v2330 = vlaneseq
        %v2331 = vshrl.u32 %v2330, 7
        %v2332 = vsub.s32 2, %v2331
        %v2333 = vrot.slane %v2313, %v2332
        %v2334 = vmul.f32 %v597, %v2321
        %v2335 = vmul.f32 %v597, %v2325
        %v2336 = vmul.f32 %v597, %v2329
        %v2337 = vmul.f32 %v597, %v2333
        %v2338 = vmul.f32 %v601, %v2321
        %v2339 = vmul.f32 %v601, %v2325
        %v2340 = vmul.f32 %v601, %v2329
        %v2341 = vmul.f32 %v601, %v2333
        %v2342 = vadd.f32 %v2290, %v2334
        %v2343 = vadd.f32 %v2291, %v2335
        %v2344 = vadd.f32 %v2292, %v2336
        %v2345 = vadd.f32 %v2293, %v2337
        %v2346 = vadd.f32 %v2294, %v2338
        %v2347 = vadd.f32 %v2295, %v2339
        %v2348 = vadd.f32 %v2296, %v2340
        %v2349 = vadd.f32 %v2297, %v2341
        %v2350 = vmax.f32 %v2342, 0.0
        %v2351 = vmax.f32 %v2343, 0.0
        %v2352 = vmax.f32 %v2344, 0.0
        %v2353 = vmax.f32 %v2345, 0.0
        %v2354 = vmax.f32 %v2346, 0.0
        %v2355 = vmax.f32 %v2347, 0.0
        %v2356 = vmax.f32 %v2348, 0.0
        %v2357 = vmax.f32 %v2349, 0.0
        %2358 = vmatprep.subr.mxu0 0.0
        %2359 = vmatpush1.msra.mxu0 0.0
        %2360 = vmatprep.subr.mxu0 0.0
        %2361 = vmatpush1.msra.mxu0 0.0
        %2362 = vmatprep.subr.mxu0 0.0
        %2363 = vmatpush1.msra.mxu0 0.0
        %2364 = vmatprep.subr.mxu0 0.0
        %2365 = vmatpush1.msra.mxu0 0.0
        %2366 = vmatprep.subr.mxu0 0.0
        %2367 = vmatpush1.msra.mxu0 0.0
        %2368 = vmatprep.subr.mxu0 0.0
        %2369 = vmatpush1.msra.mxu0 0.0
        %2370 = vmatprep.subr.mxu0 0.0
        %2371 = vmatpush1.msra.mxu0 0.0
        %2372 = vmatprep.subr.mxu0 0.0
        %2373 = vmatpush1.msra.mxu0 0.0
        %2374 = vmatprep.subr.mxu0 0.0
        %2375 = vmatpush1.msra.mxu0 0.0
        %2376 = vmatprep.subr.mxu0 0.0
        %2377 = vmatpush1.msra.mxu0 0.0
        %2378 = vmatprep.subr.mxu0 0.0
        %2379 = vmatpush1.msra.mxu0 0.0
        %2380 = vmatprep.subr.mxu0 0.0
        %2381 = vmatpush1.msra.mxu0 0.0
        %2382 = vmatprep.subr.mxu0 0.0
        %2383 = vmatpush1.msra.mxu0 0.0
        %2384 = vmatprep.subr.mxu0 0.0
        %2385 = vmatpush1.msra.mxu0 0.0
        %v2386 = vand.u32 %v2355, 4294901760
        %2387 = vmatprep.subr.mxu0 %v2386
        %v2388 = vand.u32 %v2354, 4294901760
        %2389 = vmatpush1.msra.mxu0 %v2388
        %v2390 = vand.u32 %v2351, 4294901760
        %2391 = vmatprep.subr.mxu0 %v2390
        %v2392 = vand.u32 %v2350, 4294901760
        %2393 = vmatpush1.msra.mxu0 %v2392
        %2394 = vmatprep.subr.mxu0 0.0
        %2395 = vmatpush2.msra.mxu0 0.0
        %2396 = vmatprep.subr.mxu0 0.0
        %2397 = vmatpush2.msra.mxu0 0.0
        %2398 = vmatprep.subr.mxu0 0.0
        %2399 = vmatpush2.msra.mxu0 0.0
        %2400 = vmatprep.subr.mxu0 0.0
        %2401 = vmatpush2.msra.mxu0 0.0
        %2402 = vmatprep.subr.mxu0 0.0
        %2403 = vmatpush2.msra.mxu0 0.0
        %2404 = vmatprep.subr.mxu0 0.0
        %2405 = vmatpush2.msra.mxu0 0.0
        %2406 = vmatprep.subr.mxu0 0.0
        %2407 = vmatpush2.msra.mxu0 0.0
        %2408 = vmatprep.subr.mxu0 0.0
        %2409 = vmatpush2.msra.mxu0 0.0
        %2410 = vmatprep.subr.mxu0 0.0
        %2411 = vmatpush2.msra.mxu0 0.0
        %2412 = vmatprep.subr.mxu0 0.0
        %2413 = vmatpush2.msra.mxu0 0.0
        %2414 = vmatprep.subr.mxu0 0.0
        %2415 = vmatpush2.msra.mxu0 0.0
        %2416 = vmatprep.subr.mxu0 0.0
        %2417 = vmatpush2.msra.mxu0 0.0
        %2418 = vmatprep.subr.mxu0 0.0
        %2419 = vmatpush2.msra.mxu0 0.0
        %2420 = vmatprep.subr.mxu0 0.0
        %2421 = vmatpush2.msra.mxu0 0.0
        %2422 = vmatprep.subr.mxu0 0.0
        %2423 = vmatpush2.msra.mxu0 0.0
        %2424 = vmatprep.subr.mxu0 0.0
        %2425 = vmatpush2.msra.mxu0 0.0
        %2426 = vmatprep.mubr.f32.mxu0 0.0
        %v2427 = vand.u32 %v680, 4294901760
        %v2428 = vsub.f32 %v680, %v2427
        %v2429 = vand.u32 %v2428, 4294901760
        %v2430 = vsub.f32 %v2428, %v2429
        %v2431 = vand.u32 %v2430, 4294901760
        %2432 = vmatmul.mubr.f32.gmra.mxu0 %v2431
        %v2433 = vpop.f32.mrf.mxu0
        %v2434 = vadd.f32 %v666, %v2433
        %v2435 = vpop.f32.mrf.mxu0
        %v2436 = vadd.f32 %v666, %v2435
        %2437 = vmatprep.mubr.f32.mxu0 0.0
        %v2438 = vand.u32 %v683, 4294901760
        %v2439 = vsub.f32 %v683, %v2438
        %v2440 = vand.u32 %v2439, 4294901760
        %v2441 = vsub.f32 %v2439, %v2440
        %v2442 = vand.u32 %v2441, 4294901760
        %2443 = vmatmul.mubr.f32.gmra.mxu0 %v2442
        %v2444 = vpop.f32.mrf.mxu0
        %v2445 = vadd.f32 %v671, %v2444
        %v2446 = vpop.f32.mrf.mxu0
        %v2447 = vadd.f32 %v671, %v2446
        %2448 = vmatprep.mubr.f32.mxu0 0.0
        %v2449 = vand.u32 %v686, 4294901760
        %v2450 = vsub.f32 %v686, %v2449
        %v2451 = vand.u32 %v2450, 4294901760
        %v2452 = vsub.f32 %v2450, %v2451
        %v2453 = vand.u32 %v2452, 4294901760
        %2454 = vmatmul.mubr.f32.gmra.mxu0 %v2453
        %v2455 = vpop.f32.mrf.mxu0
        %v2456 = vadd.f32 %v676, %v2455
        %v2457 = vpop.f32.mrf.mxu0
        %v2458 = vadd.f32 %v676, %v2457
        %2459 = vdwg.mxu0
        %2460 = vmatprep.subr.mxu0 0.0
        %2461 = vmatpush1.msra.mxu0 0.0
        %2462 = vmatprep.subr.mxu0 0.0
        %2463 = vmatpush1.msra.mxu0 0.0
        %2464 = vmatprep.subr.mxu0 0.0
        %2465 = vmatpush1.msra.mxu0 0.0
        %2466 = vmatprep.subr.mxu0 0.0
        %2467 = vmatpush1.msra.mxu0 0.0
        %2468 = vmatprep.subr.mxu0 0.0
        %2469 = vmatpush1.msra.mxu0 0.0
        %2470 = vmatprep.subr.mxu0 0.0
        %2471 = vmatpush1.msra.mxu0 0.0
        %2472 = vmatprep.subr.mxu0 0.0
        %2473 = vmatpush1.msra.mxu0 0.0
        %2474 = vmatprep.subr.mxu0 0.0
        %2475 = vmatpush1.msra.mxu0 0.0
        %2476 = vmatprep.subr.mxu0 0.0
        %2477 = vmatpush1.msra.mxu0 0.0
        %2478 = vmatprep.subr.mxu0 0.0
        %2479 = vmatpush1.msra.mxu0 0.0
        %2480 = vmatprep.subr.mxu0 0.0
        %2481 = vmatpush1.msra.mxu0 0.0
        %2482 = vmatprep.subr.mxu0 0.0
        %2483 = vmatpush1.msra.mxu0 0.0
        %2484 = vmatprep.subr.mxu0 0.0
        %2485 = vmatpush1.msra.mxu0 0.0
        %2486 = vmatprep.subr.mxu0 0.0
        %2487 = vmatpush1.msra.mxu0 0.0
        %v2488 = vand.u32 %v2355, 4294901760
        %v2489 = vsub.f32 %v2355, %v2488
        %v2490 = vand.u32 %v2489, 4294901760
        %v2491 = vsub.f32 %v2489, %v2490
        %v2492 = vand.u32 %v2491, 4294901760
        %2493 = vmatprep.subr.mxu0 %v2492
        %v2494 = vand.u32 %v2354, 4294901760
        %v2495 = vsub.f32 %v2354, %v2494
        %v2496 = vand.u32 %v2495, 4294901760
        %v2497 = vsub.f32 %v2495, %v2496
        %v2498 = vand.u32 %v2497, 4294901760
        %2499 = vmatpush1.msra.mxu0 %v2498
        %v2500 = vand.u32 %v2351, 4294901760
        %v2501 = vsub.f32 %v2351, %v2500
        %v2502 = vand.u32 %v2501, 4294901760
        %v2503 = vsub.f32 %v2501, %v2502
        %v2504 = vand.u32 %v2503, 4294901760
        %2505 = vmatprep.subr.mxu0 %v2504
        %v2506 = vand.u32 %v2350, 4294901760
        %v2507 = vsub.f32 %v2350, %v2506
        %v2508 = vand.u32 %v2507, 4294901760
        %v2509 = vsub.f32 %v2507, %v2508
        %v2510 = vand.u32 %v2509, 4294901760
        %2511 = vmatpush1.msra.mxu0 %v2510
        %2512 = vmatprep.subr.mxu0 0.0
        %2513 = vmatpush2.msra.mxu0 0.0
        %2514 = vmatprep.subr.mxu0 0.0
        %2515 = vmatpush2.msra.mxu0 0.0
        %2516 = vmatprep.subr.mxu0 0.0
        %2517 = vmatpush2.msra.mxu0 0.0
        %2518 = vmatprep.subr.mxu0 0.0
        %2519 = vmatpush2.msra.mxu0 0.0
        %2520 = vmatprep.subr.mxu0 0.0
        %2521 = vmatpush2.msra.mxu0 0.0
        %2522 = vmatprep.subr.mxu0 0.0
        %2523 = vmatpush2.msra.mxu0 0.0
        %2524 = vmatprep.subr.mxu0 0.0
        %2525 = vmatpush2.msra.mxu0 0.0
        %2526 = vmatprep.subr.mxu0 0.0
        %2527 = vmatpush2.msra.mxu0 0.0
        %2528 = vmatprep.subr.mxu0 0.0
        %2529 = vmatpush2.msra.mxu0 0.0
        %2530 = vmatprep.subr.mxu0 0.0
        %2531 = vmatpush2.msra.mxu0 0.0
        %2532 = vmatprep.subr.mxu0 0.0
        %2533 = vmatpush2.msra.mxu0 0.0
        %2534 = vmatprep.subr.mxu0 0.0
        %2535 = vmatpush2.msra.mxu0 0.0
        %2536 = vmatprep.subr.mxu0 0.0
        %2537 = vmatpush2.msra.mxu0 0.0
        %2538 = vmatprep.subr.mxu0 0.0
        %2539 = vmatpush2.msra.mxu0 0.0
        %2540 = vmatprep.subr.mxu0 0.0
        %2541 = vmatpush2.msra.mxu0 0.0
        %2542 = vmatprep.subr.mxu0 0.0
        %2543 = vmatpush2.msra.mxu0 0.0
        %2544 = vmatprep.mubr.f32.mxu0 0.0
        %v2545 = vand.u32 %v680, 4294901760
        %2546 = vmatmul.mubr.f32.gmra.mxu0 %v2545
        %v2547 = vpop.f32.mrf.mxu0
        %v2548 = vadd.f32 %v2434, %v2547
        %v2549 = vpop.f32.mrf.mxu0
        %v2550 = vadd.f32 %v2436, %v2549
        %2551 = vmatprep.mubr.f32.mxu0 0.0
        %v2552 = vand.u32 %v683, 4294901760
        %2553 = vmatmul.mubr.f32.gmra.mxu0 %v2552
        %v2554 = vpop.f32.mrf.mxu0
        %v2555 = vadd.f32 %v2445, %v2554
        %v2556 = vpop.f32.mrf.mxu0
        %v2557 = vadd.f32 %v2447, %v2556
        %2558 = vmatprep.mubr.f32.mxu0 0.0
        %v2559 = vand.u32 %v686, 4294901760
        %2560 = vmatmul.mubr.f32.gmra.mxu0 %v2559
        %v2561 = vpop.f32.mrf.mxu0
        %v2562 = vadd.f32 %v2456, %v2561
        %v2563 = vpop.f32.mrf.mxu0
        %v2564 = vadd.f32 %v2458, %v2563
        %2565 = vdwg.mxu0
        %2566 = vmatprep.subr.mxu0 0.0
        %2567 = vmatpush1.msra.mxu0 0.0
        %2568 = vmatprep.subr.mxu0 0.0
        %2569 = vmatpush1.msra.mxu0 0.0
        %2570 = vmatprep.subr.mxu0 0.0
        %2571 = vmatpush1.msra.mxu0 0.0
        %2572 = vmatprep.subr.mxu0 0.0
        %2573 = vmatpush1.msra.mxu0 0.0
        %2574 = vmatprep.subr.mxu0 0.0
        %2575 = vmatpush1.msra.mxu0 0.0
        %2576 = vmatprep.subr.mxu0 0.0
        %2577 = vmatpush1.msra.mxu0 0.0
        %2578 = vmatprep.subr.mxu0 0.0
        %2579 = vmatpush1.msra.mxu0 0.0
        %2580 = vmatprep.subr.mxu0 0.0
        %2581 = vmatpush1.msra.mxu0 0.0
        %2582 = vmatprep.subr.mxu0 0.0
        %2583 = vmatpush1.msra.mxu0 0.0
        %2584 = vmatprep.subr.mxu0 0.0
        %2585 = vmatpush1.msra.mxu0 0.0
        %2586 = vmatprep.subr.mxu0 0.0
        %2587 = vmatpush1.msra.mxu0 0.0
        %2588 = vmatprep.subr.mxu0 0.0
        %2589 = vmatpush1.msra.mxu0 0.0
        %2590 = vmatprep.subr.mxu0 0.0
        %2591 = vmatpush1.msra.mxu0 0.0
        %2592 = vmatprep.subr.mxu0 0.0
        %2593 = vmatpush1.msra.mxu0 0.0
        %v2594 = vand.u32 %v2355, 4294901760
        %v2595 = vsub.f32 %v2355, %v2594
        %2596 = vmatprep.subr.mxu0 %v2595
        %v2597 = vand.u32 %v2354, 4294901760
        %v2598 = vsub.f32 %v2354, %v2597
        %2599 = vmatpush1.msra.mxu0 %v2598
        %v2600 = vand.u32 %v2351, 4294901760
        %v2601 = vsub.f32 %v2351, %v2600
        %2602 = vmatprep.subr.mxu0 %v2601
        %v2603 = vand.u32 %v2350, 4294901760
        %v2604 = vsub.f32 %v2350, %v2603
        %2605 = vmatpush1.msra.mxu0 %v2604
        %2606 = vmatprep.subr.mxu0 0.0
        %2607 = vmatpush2.msra.mxu0 0.0
        %2608 = vmatprep.subr.mxu0 0.0
        %2609 = vmatpush2.msra.mxu0 0.0
        %2610 = vmatprep.subr.mxu0 0.0
        %2611 = vmatpush2.msra.mxu0 0.0
        %2612 = vmatprep.subr.mxu0 0.0
        %2613 = vmatpush2.msra.mxu0 0.0
        %2614 = vmatprep.subr.mxu0 0.0
        %2615 = vmatpush2.msra.mxu0 0.0
        %2616 = vmatprep.subr.mxu0 0.0
        %2617 = vmatpush2.msra.mxu0 0.0
        %2618 = vmatprep.subr.mxu0 0.0
        %2619 = vmatpush2.msra.mxu0 0.0
        %2620 = vmatprep.subr.mxu0 0.0
        %2621 = vmatpush2.msra.mxu0 0.0
        %2622 = vmatprep.subr.mxu0 0.0
        %2623 = vmatpush2.msra.mxu0 0.0
        %2624 = vmatprep.subr.mxu0 0.0
        %2625 = vmatpush2.msra.mxu0 0.0
        %2626 = vmatprep.subr.mxu0 0.0
        %2627 = vmatpush2.msra.mxu0 0.0
        %2628 = vmatprep.subr.mxu0 0.0
        %2629 = vmatpush2.msra.mxu0 0.0
        %2630 = vmatprep.subr.mxu0 0.0
        %2631 = vmatpush2.msra.mxu0 0.0
        %2632 = vmatprep.subr.mxu0 0.0
        %2633 = vmatpush2.msra.mxu0 0.0
        %2634 = vmatprep.subr.mxu0 0.0
        %2635 = vmatpush2.msra.mxu0 0.0
        %2636 = vmatprep.subr.mxu0 0.0
        %2637 = vmatpush2.msra.mxu0 0.0
        %2638 = vmatprep.mubr.f32.mxu0 0.0
        %v2639 = vand.u32 %v680, 4294901760
        %v2640 = vsub.f32 %v680, %v2639
        %2641 = vmatmul.mubr.f32.gmra.mxu0 %v2640
        %v2642 = vpop.f32.mrf.mxu0
        %v2643 = vadd.f32 %v2548, %v2642
        %v2644 = vpop.f32.mrf.mxu0
        %v2645 = vadd.f32 %v2550, %v2644
        %2646 = vmatprep.mubr.f32.mxu0 0.0
        %v2647 = vand.u32 %v683, 4294901760
        %v2648 = vsub.f32 %v683, %v2647
        %2649 = vmatmul.mubr.f32.gmra.mxu0 %v2648
        %v2650 = vpop.f32.mrf.mxu0
        %v2651 = vadd.f32 %v2555, %v2650
        %v2652 = vpop.f32.mrf.mxu0
        %v2653 = vadd.f32 %v2557, %v2652
        %2654 = vmatprep.mubr.f32.mxu0 0.0
        %v2655 = vand.u32 %v686, 4294901760
        %v2656 = vsub.f32 %v686, %v2655
        %2657 = vmatmul.mubr.f32.gmra.mxu0 %v2656
        %v2658 = vpop.f32.mrf.mxu0
        %v2659 = vadd.f32 %v2562, %v2658
        %v2660 = vpop.f32.mrf.mxu0
        %v2661 = vadd.f32 %v2564, %v2660
        %2662 = vdwg.mxu0
        %2663 = vmatprep.subr.mxu0 0.0
        %2664 = vmatpush1.msra.mxu0 0.0
        %2665 = vmatprep.subr.mxu0 0.0
        %2666 = vmatpush1.msra.mxu0 0.0
        %2667 = vmatprep.subr.mxu0 0.0
        %2668 = vmatpush1.msra.mxu0 0.0
        %2669 = vmatprep.subr.mxu0 0.0
        %2670 = vmatpush1.msra.mxu0 0.0
        %2671 = vmatprep.subr.mxu0 0.0
        %2672 = vmatpush1.msra.mxu0 0.0
        %2673 = vmatprep.subr.mxu0 0.0
        %2674 = vmatpush1.msra.mxu0 0.0
        %2675 = vmatprep.subr.mxu0 0.0
        %2676 = vmatpush1.msra.mxu0 0.0
        %2677 = vmatprep.subr.mxu0 0.0
        %2678 = vmatpush1.msra.mxu0 0.0
        %2679 = vmatprep.subr.mxu0 0.0
        %2680 = vmatpush1.msra.mxu0 0.0
        %2681 = vmatprep.subr.mxu0 0.0
        %2682 = vmatpush1.msra.mxu0 0.0
        %2683 = vmatprep.subr.mxu0 0.0
        %2684 = vmatpush1.msra.mxu0 0.0
        %2685 = vmatprep.subr.mxu0 0.0
        %2686 = vmatpush1.msra.mxu0 0.0
        %2687 = vmatprep.subr.mxu0 0.0
        %2688 = vmatpush1.msra.mxu0 0.0
        %2689 = vmatprep.subr.mxu0 0.0
        %2690 = vmatpush1.msra.mxu0 0.0
        %v2691 = vand.u32 %v2355, 4294901760
        %2692 = vmatprep.subr.mxu0 %v2691
        %v2693 = vand.u32 %v2354, 4294901760
        %2694 = vmatpush1.msra.mxu0 %v2693
        %v2695 = vand.u32 %v2351, 4294901760
        %2696 = vmatprep.subr.mxu0 %v2695
        %v2697 = vand.u32 %v2350, 4294901760
        %2698 = vmatpush1.msra.mxu0 %v2697
        %2699 = vmatprep.subr.mxu0 0.0
        %2700 = vmatpush2.msra.mxu0 0.0
        %2701 = vmatprep.subr.mxu0 0.0
        %2702 = vmatpush2.msra.mxu0 0.0
        %2703 = vmatprep.subr.mxu0 0.0
        %2704 = vmatpush2.msra.mxu0 0.0
        %2705 = vmatprep.subr.mxu0 0.0
        %2706 = vmatpush2.msra.mxu0 0.0
        %2707 = vmatprep.subr.mxu0 0.0
        %2708 = vmatpush2.msra.mxu0 0.0
        %2709 = vmatprep.subr.mxu0 0.0
        %2710 = vmatpush2.msra.mxu0 0.0
        %2711 = vmatprep.subr.mxu0 0.0
        %2712 = vmatpush2.msra.mxu0 0.0
        %2713 = vmatprep.subr.mxu0 0.0
        %2714 = vmatpush2.msra.mxu0 0.0
        %2715 = vmatprep.subr.mxu0 0.0
        %2716 = vmatpush2.msra.mxu0 0.0
        %2717 = vmatprep.subr.mxu0 0.0
        %2718 = vmatpush2.msra.mxu0 0.0
        %2719 = vmatprep.subr.mxu0 0.0
        %2720 = vmatpush2.msra.mxu0 0.0
        %2721 = vmatprep.subr.mxu0 0.0
        %2722 = vmatpush2.msra.mxu0 0.0
        %2723 = vmatprep.subr.mxu0 0.0
        %2724 = vmatpush2.msra.mxu0 0.0
        %2725 = vmatprep.subr.mxu0 0.0
        %2726 = vmatpush2.msra.mxu0 0.0
        %2727 = vmatprep.subr.mxu0 0.0
        %2728 = vmatpush2.msra.mxu0 0.0
        %2729 = vmatprep.subr.mxu0 0.0
        %2730 = vmatpush2.msra.mxu0 0.0
        %2731 = vmatprep.mubr.f32.mxu0 0.0
        %v2732 = vand.u32 %v680, 4294901760
        %v2733 = vsub.f32 %v680, %v2732
        %v2734 = vand.u32 %v2733, 4294901760
        %2735 = vmatmul.mubr.f32.gmra.mxu0 %v2734
        %v2736 = vpop.f32.mrf.mxu0
        %v2737 = vadd.f32 %v2643, %v2736
        %v2738 = vpop.f32.mrf.mxu0
        %v2739 = vadd.f32 %v2645, %v2738
        %2740 = vmatprep.mubr.f32.mxu0 0.0
        %v2741 = vand.u32 %v683, 4294901760
        %v2742 = vsub.f32 %v683, %v2741
        %v2743 = vand.u32 %v2742, 4294901760
        %2744 = vmatmul.mubr.f32.gmra.mxu0 %v2743
        %v2745 = vpop.f32.mrf.mxu0
        %v2746 = vadd.f32 %v2651, %v2745
        %v2747 = vpop.f32.mrf.mxu0
        %v2748 = vadd.f32 %v2653, %v2747
        %2749 = vmatprep.mubr.f32.mxu0 0.0
        %v2750 = vand.u32 %v686, 4294901760
        %v2751 = vsub.f32 %v686, %v2750
        %v2752 = vand.u32 %v2751, 4294901760
        %2753 = vmatmul.mubr.f32.gmra.mxu0 %v2752
        %v2754 = vpop.f32.mrf.mxu0
        %v2755 = vadd.f32 %v2659, %v2754
        %v2756 = vpop.f32.mrf.mxu0
        %v2757 = vadd.f32 %v2661, %v2756
        %2758 = vdwg.mxu0
        %2759 = vmatprep.subr.mxu0 0.0
        %2760 = vmatpush1.msra.mxu0 0.0
        %2761 = vmatprep.subr.mxu0 0.0
        %2762 = vmatpush1.msra.mxu0 0.0
        %2763 = vmatprep.subr.mxu0 0.0
        %2764 = vmatpush1.msra.mxu0 0.0
        %2765 = vmatprep.subr.mxu0 0.0
        %2766 = vmatpush1.msra.mxu0 0.0
        %2767 = vmatprep.subr.mxu0 0.0
        %2768 = vmatpush1.msra.mxu0 0.0
        %2769 = vmatprep.subr.mxu0 0.0
        %2770 = vmatpush1.msra.mxu0 0.0
        %2771 = vmatprep.subr.mxu0 0.0
        %2772 = vmatpush1.msra.mxu0 0.0
        %2773 = vmatprep.subr.mxu0 0.0
        %2774 = vmatpush1.msra.mxu0 0.0
        %2775 = vmatprep.subr.mxu0 0.0
        %2776 = vmatpush1.msra.mxu0 0.0
        %2777 = vmatprep.subr.mxu0 0.0
        %2778 = vmatpush1.msra.mxu0 0.0
        %2779 = vmatprep.subr.mxu0 0.0
        %2780 = vmatpush1.msra.mxu0 0.0
        %2781 = vmatprep.subr.mxu0 0.0
        %2782 = vmatpush1.msra.mxu0 0.0
        %2783 = vmatprep.subr.mxu0 0.0
        %2784 = vmatpush1.msra.mxu0 0.0
        %2785 = vmatprep.subr.mxu0 0.0
        %2786 = vmatpush1.msra.mxu0 0.0
        %v2787 = vand.u32 %v2355, 4294901760
        %v2788 = vsub.f32 %v2355, %v2787
        %v2789 = vand.u32 %v2788, 4294901760
        %2790 = vmatprep.subr.mxu0 %v2789
        %v2791 = vand.u32 %v2354, 4294901760
        %v2792 = vsub.f32 %v2354, %v2791
        %v2793 = vand.u32 %v2792, 4294901760
        %2794 = vmatpush1.msra.mxu0 %v2793
        %v2795 = vand.u32 %v2351, 4294901760
        %v2796 = vsub.f32 %v2351, %v2795
        %v2797 = vand.u32 %v2796, 4294901760
        %2798 = vmatprep.subr.mxu0 %v2797
        %v2799 = vand.u32 %v2350, 4294901760
        %v2800 = vsub.f32 %v2350, %v2799
        %v2801 = vand.u32 %v2800, 4294901760
        %2802 = vmatpush1.msra.mxu0 %v2801
        %2803 = vmatprep.subr.mxu0 0.0
        %2804 = vmatpush2.msra.mxu0 0.0
        %2805 = vmatprep.subr.mxu0 0.0
        %2806 = vmatpush2.msra.mxu0 0.0
        %2807 = vmatprep.subr.mxu0 0.0
        %2808 = vmatpush2.msra.mxu0 0.0
        %2809 = vmatprep.subr.mxu0 0.0
        %2810 = vmatpush2.msra.mxu0 0.0
        %2811 = vmatprep.subr.mxu0 0.0
        %2812 = vmatpush2.msra.mxu0 0.0
        %2813 = vmatprep.subr.mxu0 0.0
        %2814 = vmatpush2.msra.mxu0 0.0
        %2815 = vmatprep.subr.mxu0 0.0
        %2816 = vmatpush2.msra.mxu0 0.0
        %2817 = vmatprep.subr.mxu0 0.0
        %2818 = vmatpush2.msra.mxu0 0.0
        %2819 = vmatprep.subr.mxu0 0.0
        %2820 = vmatpush2.msra.mxu0 0.0
        %2821 = vmatprep.subr.mxu0 0.0
        %2822 = vmatpush2.msra.mxu0 0.0
        %2823 = vmatprep.subr.mxu0 0.0
        %2824 = vmatpush2.msra.mxu0 0.0
        %2825 = vmatprep.subr.mxu0 0.0
        %2826 = vmatpush2.msra.mxu0 0.0
        %2827 = vmatprep.subr.mxu0 0.0
        %2828 = vmatpush2.msra.mxu0 0.0
        %2829 = vmatprep.subr.mxu0 0.0
        %2830 = vmatpush2.msra.mxu0 0.0
        %2831 = vmatprep.subr.mxu0 0.0
        %2832 = vmatpush2.msra.mxu0 0.0
        %2833 = vmatprep.subr.mxu0 0.0
        %2834 = vmatpush2.msra.mxu0 0.0
        %2835 = vmatprep.mubr.f32.mxu0 0.0
        %v2836 = vand.u32 %v680, 4294901760
        %2837 = vmatmul.mubr.f32.gmra.mxu0 %v2836
        %v2838 = vpop.f32.mrf.mxu0
        %v2839 = vadd.f32 %v2737, %v2838
        %v2840 = vpop.f32.mrf.mxu0
        %v2841 = vadd.f32 %v2739, %v2840
        %2842 = vmatprep.mubr.f32.mxu0 0.0
        %v2843 = vand.u32 %v683, 4294901760
        %2844 = vmatmul.mubr.f32.gmra.mxu0 %v2843
        %v2845 = vpop.f32.mrf.mxu0
        %v2846 = vadd.f32 %v2746, %v2845
        %v2847 = vpop.f32.mrf.mxu0
        %v2848 = vadd.f32 %v2748, %v2847
        %2849 = vmatprep.mubr.f32.mxu0 0.0
        %v2850 = vand.u32 %v686, 4294901760
        %2851 = vmatmul.mubr.f32.gmra.mxu0 %v2850
        %v2852 = vpop.f32.mrf.mxu0
        %v2853 = vadd.f32 %v2755, %v2852
        %v2854 = vpop.f32.mrf.mxu0
        %v2855 = vadd.f32 %v2757, %v2854
        %2856 = vdwg.mxu0
        %2857 = vmatprep.subr.mxu0 0.0
        %2858 = vmatpush1.msra.mxu0 0.0
        %2859 = vmatprep.subr.mxu0 0.0
        %2860 = vmatpush1.msra.mxu0 0.0
        %2861 = vmatprep.subr.mxu0 0.0
        %2862 = vmatpush1.msra.mxu0 0.0
        %2863 = vmatprep.subr.mxu0 0.0
        %2864 = vmatpush1.msra.mxu0 0.0
        %2865 = vmatprep.subr.mxu0 0.0
        %2866 = vmatpush1.msra.mxu0 0.0
        %2867 = vmatprep.subr.mxu0 0.0
        %2868 = vmatpush1.msra.mxu0 0.0
        %2869 = vmatprep.subr.mxu0 0.0
        %2870 = vmatpush1.msra.mxu0 0.0
        %2871 = vmatprep.subr.mxu0 0.0
        %2872 = vmatpush1.msra.mxu0 0.0
        %2873 = vmatprep.subr.mxu0 0.0
        %2874 = vmatpush1.msra.mxu0 0.0
        %2875 = vmatprep.subr.mxu0 0.0
        %2876 = vmatpush1.msra.mxu0 0.0
        %2877 = vmatprep.subr.mxu0 0.0
        %2878 = vmatpush1.msra.mxu0 0.0
        %2879 = vmatprep.subr.mxu0 0.0
        %2880 = vmatpush1.msra.mxu0 0.0
        %2881 = vmatprep.subr.mxu0 0.0
        %2882 = vmatpush1.msra.mxu0 0.0
        %2883 = vmatprep.subr.mxu0 0.0
        %2884 = vmatpush1.msra.mxu0 0.0
        %v2885 = vand.u32 %v2355, 4294901760
        %2886 = vmatprep.subr.mxu0 %v2885
        %v2887 = vand.u32 %v2354, 4294901760
        %2888 = vmatpush1.msra.mxu0 %v2887
        %v2889 = vand.u32 %v2351, 4294901760
        %2890 = vmatprep.subr.mxu0 %v2889
        %v2891 = vand.u32 %v2350, 4294901760
        %2892 = vmatpush1.msra.mxu0 %v2891
        %2893 = vmatprep.subr.mxu0 0.0
        %2894 = vmatpush2.msra.mxu0 0.0
        %2895 = vmatprep.subr.mxu0 0.0
        %2896 = vmatpush2.msra.mxu0 0.0
        %2897 = vmatprep.subr.mxu0 0.0
        %2898 = vmatpush2.msra.mxu0 0.0
        %2899 = vmatprep.subr.mxu0 0.0
        %2900 = vmatpush2.msra.mxu0 0.0
        %2901 = vmatprep.subr.mxu0 0.0
        %2902 = vmatpush2.msra.mxu0 0.0
        %2903 = vmatprep.subr.mxu0 0.0
        %2904 = vmatpush2.msra.mxu0 0.0
        %2905 = vmatprep.subr.mxu0 0.0
        %2906 = vmatpush2.msra.mxu0 0.0
        %2907 = vmatprep.subr.mxu0 0.0
        %2908 = vmatpush2.msra.mxu0 0.0
        %2909 = vmatprep.subr.mxu0 0.0
        %2910 = vmatpush2.msra.mxu0 0.0
        %2911 = vmatprep.subr.mxu0 0.0
        %2912 = vmatpush2.msra.mxu0 0.0
        %2913 = vmatprep.subr.mxu0 0.0
        %2914 = vmatpush2.msra.mxu0 0.0
        %2915 = vmatprep.subr.mxu0 0.0
        %2916 = vmatpush2.msra.mxu0 0.0
        %2917 = vmatprep.subr.mxu0 0.0
        %2918 = vmatpush2.msra.mxu0 0.0
        %2919 = vmatprep.subr.mxu0 0.0
        %2920 = vmatpush2.msra.mxu0 0.0
        %2921 = vmatprep.subr.mxu0 0.0
        %2922 = vmatpush2.msra.mxu0 0.0
        %2923 = vmatprep.subr.mxu0 0.0
        %2924 = vmatpush2.msra.mxu0 0.0
        %2925 = vmatprep.mubr.f32.mxu0 0.0
        %v2926 = vand.u32 %v680, 4294901760
        %2927 = vmatmul.mubr.f32.gmra.mxu0 %v2926
        %v2928 = vpop.f32.mrf.mxu0
        %v2929 = vadd.f32 %v2839, %v2928
        %v2930 = vpop.f32.mrf.mxu0
        %v2931 = vadd.f32 %v2841, %v2930
        %2932 = vmatprep.mubr.f32.mxu0 0.0
        %v2933 = vand.u32 %v683, 4294901760
        %2934 = vmatmul.mubr.f32.gmra.mxu0 %v2933
        %v2935 = vpop.f32.mrf.mxu0
        %v2936 = vadd.f32 %v2846, %v2935
        %v2937 = vpop.f32.mrf.mxu0
        %v2938 = vadd.f32 %v2848, %v2937
        %2939 = vmatprep.mubr.f32.mxu0 0.0
        %v2940 = vand.u32 %v686, 4294901760
        %2941 = vmatmul.mubr.f32.gmra.mxu0 %v2940
        %v2942 = vpop.f32.mrf.mxu0
        %v2943 = vadd.f32 %v2853, %v2942
        %v2944 = vpop.f32.mrf.mxu0
        %v2945 = vadd.f32 %v2855, %v2944
        %2946 = vdwg.mxu0
        %2947 = vmatprep.subr.mxu0 0.0
        %2948 = vmatpush1.msra.mxu0 0.0
        %2949 = vmatprep.subr.mxu0 0.0
        %2950 = vmatpush1.msra.mxu0 0.0
        %2951 = vmatprep.subr.mxu0 0.0
        %2952 = vmatpush1.msra.mxu0 0.0
        %2953 = vmatprep.subr.mxu0 0.0
        %2954 = vmatpush1.msra.mxu0 0.0
        %2955 = vmatprep.subr.mxu0 0.0
        %2956 = vmatpush1.msra.mxu0 0.0
        %2957 = vmatprep.subr.mxu0 0.0
        %2958 = vmatpush1.msra.mxu0 0.0
        %2959 = vmatprep.subr.mxu0 0.0
        %2960 = vmatpush1.msra.mxu0 0.0
        %2961 = vmatprep.subr.mxu0 0.0
        %2962 = vmatpush1.msra.mxu0 0.0
        %2963 = vmatprep.subr.mxu0 0.0
        %2964 = vmatpush1.msra.mxu0 0.0
        %2965 = vmatprep.subr.mxu0 0.0
        %2966 = vmatpush1.msra.mxu0 0.0
        %2967 = vmatprep.subr.mxu0 0.0
        %2968 = vmatpush1.msra.mxu0 0.0
        %2969 = vmatprep.subr.mxu0 0.0
        %2970 = vmatpush1.msra.mxu0 0.0
        %2971 = vmatprep.subr.mxu0 0.0
        %2972 = vmatpush1.msra.mxu0 0.0
        %2973 = vmatprep.subr.mxu0 0.0
        %2974 = vmatpush1.msra.mxu0 0.0
        %v2975 = vand.u32 %v2357, 4294901760
        %2976 = vmatprep.subr.mxu0 %v2975
        %v2977 = vand.u32 %v2356, 4294901760
        %2978 = vmatpush1.msra.mxu0 %v2977
        %v2979 = vand.u32 %v2353, 4294901760
        %2980 = vmatprep.subr.mxu0 %v2979
        %v2981 = vand.u32 %v2352, 4294901760
        %2982 = vmatpush1.msra.mxu0 %v2981
        %2983 = vmatprep.subr.mxu0 0.0
        %2984 = vmatpush2.msra.mxu0 0.0
        %2985 = vmatprep.subr.mxu0 0.0
        %2986 = vmatpush2.msra.mxu0 0.0
        %2987 = vmatprep.subr.mxu0 0.0
        %2988 = vmatpush2.msra.mxu0 0.0
        %2989 = vmatprep.subr.mxu0 0.0
        %2990 = vmatpush2.msra.mxu0 0.0
        %2991 = vmatprep.subr.mxu0 0.0
        %2992 = vmatpush2.msra.mxu0 0.0
        %2993 = vmatprep.subr.mxu0 0.0
        %2994 = vmatpush2.msra.mxu0 0.0
        %2995 = vmatprep.subr.mxu0 0.0
        %2996 = vmatpush2.msra.mxu0 0.0
        %2997 = vmatprep.subr.mxu0 0.0
        %2998 = vmatpush2.msra.mxu0 0.0
        %2999 = vmatprep.subr.mxu0 0.0
        %3000 = vmatpush2.msra.mxu0 0.0
        %3001 = vmatprep.subr.mxu0 0.0
        %3002 = vmatpush2.msra.mxu0 0.0
        %3003 = vmatprep.subr.mxu0 0.0
        %3004 = vmatpush2.msra.mxu0 0.0
        %3005 = vmatprep.subr.mxu0 0.0
        %3006 = vmatpush2.msra.mxu0 0.0
        %3007 = vmatprep.subr.mxu0 0.0
        %3008 = vmatpush2.msra.mxu0 0.0
        %3009 = vmatprep.subr.mxu0 0.0
        %3010 = vmatpush2.msra.mxu0 0.0
        %3011 = vmatprep.subr.mxu0 0.0
        %3012 = vmatpush2.msra.mxu0 0.0
        %3013 = vmatprep.subr.mxu0 0.0
        %3014 = vmatpush2.msra.mxu0 0.0
        %3015 = vmatprep.mubr.f32.mxu0 0.0
        %v3016 = vand.u32 %v680, 4294901760
        %v3017 = vsub.f32 %v680, %v3016
        %v3018 = vand.u32 %v3017, 4294901760
        %v3019 = vsub.f32 %v3017, %v3018
        %v3020 = vand.u32 %v3019, 4294901760
        %3021 = vmatmul.mubr.f32.gmra.mxu0 %v3020
        %v3022 = vpop.f32.mrf.mxu0
        %v3023 = vadd.f32 %v666, %v3022
        %v3024 = vpop.f32.mrf.mxu0
        %v3025 = vadd.f32 %v666, %v3024
        %3026 = vmatprep.mubr.f32.mxu0 0.0
        %v3027 = vand.u32 %v683, 4294901760
        %v3028 = vsub.f32 %v683, %v3027
        %v3029 = vand.u32 %v3028, 4294901760
        %v3030 = vsub.f32 %v3028, %v3029
        %v3031 = vand.u32 %v3030, 4294901760
        %3032 = vmatmul.mubr.f32.gmra.mxu0 %v3031
        %v3033 = vpop.f32.mrf.mxu0
        %v3034 = vadd.f32 %v671, %v3033
        %v3035 = vpop.f32.mrf.mxu0
        %v3036 = vadd.f32 %v671, %v3035
        %3037 = vmatprep.mubr.f32.mxu0 0.0
        %v3038 = vand.u32 %v686, 4294901760
        %v3039 = vsub.f32 %v686, %v3038
        %v3040 = vand.u32 %v3039, 4294901760
        %v3041 = vsub.f32 %v3039, %v3040
        %v3042 = vand.u32 %v3041, 4294901760
        %3043 = vmatmul.mubr.f32.gmra.mxu0 %v3042
        %v3044 = vpop.f32.mrf.mxu0
        %v3045 = vadd.f32 %v676, %v3044
        %v3046 = vpop.f32.mrf.mxu0
        %v3047 = vadd.f32 %v676, %v3046
        %3048 = vdwg.mxu0
        %3049 = vmatprep.subr.mxu0 0.0
        %3050 = vmatpush1.msra.mxu0 0.0
        %3051 = vmatprep.subr.mxu0 0.0
        %3052 = vmatpush1.msra.mxu0 0.0
        %3053 = vmatprep.subr.mxu0 0.0
        %3054 = vmatpush1.msra.mxu0 0.0
        %3055 = vmatprep.subr.mxu0 0.0
        %3056 = vmatpush1.msra.mxu0 0.0
        %3057 = vmatprep.subr.mxu0 0.0
        %3058 = vmatpush1.msra.mxu0 0.0
        %3059 = vmatprep.subr.mxu0 0.0
        %3060 = vmatpush1.msra.mxu0 0.0
        %3061 = vmatprep.subr.mxu0 0.0
        %3062 = vmatpush1.msra.mxu0 0.0
        %3063 = vmatprep.subr.mxu0 0.0
        %3064 = vmatpush1.msra.mxu0 0.0
        %3065 = vmatprep.subr.mxu0 0.0
        %3066 = vmatpush1.msra.mxu0 0.0
        %3067 = vmatprep.subr.mxu0 0.0
        %3068 = vmatpush1.msra.mxu0 0.0
        %3069 = vmatprep.subr.mxu0 0.0
        %3070 = vmatpush1.msra.mxu0 0.0
        %3071 = vmatprep.subr.mxu0 0.0
        %3072 = vmatpush1.msra.mxu0 0.0
        %3073 = vmatprep.subr.mxu0 0.0
        %3074 = vmatpush1.msra.mxu0 0.0
        %3075 = vmatprep.subr.mxu0 0.0
        %3076 = vmatpush1.msra.mxu0 0.0
        %v3077 = vand.u32 %v2357, 4294901760
        %v3078 = vsub.f32 %v2357, %v3077
        %v3079 = vand.u32 %v3078, 4294901760
        %v3080 = vsub.f32 %v3078, %v3079
        %v3081 = vand.u32 %v3080, 4294901760
        %3082 = vmatprep.subr.mxu0 %v3081
        %v3083 = vand.u32 %v2356, 4294901760
        %v3084 = vsub.f32 %v2356, %v3083
        %v3085 = vand.u32 %v3084, 4294901760
        %v3086 = vsub.f32 %v3084, %v3085
        %v3087 = vand.u32 %v3086, 4294901760
        %3088 = vmatpush1.msra.mxu0 %v3087
        %v3089 = vand.u32 %v2353, 4294901760
        %v3090 = vsub.f32 %v2353, %v3089
        %v3091 = vand.u32 %v3090, 4294901760
        %v3092 = vsub.f32 %v3090, %v3091
        %v3093 = vand.u32 %v3092, 4294901760
        %3094 = vmatprep.subr.mxu0 %v3093
        %v3095 = vand.u32 %v2352, 4294901760
        %v3096 = vsub.f32 %v2352, %v3095
        %v3097 = vand.u32 %v3096, 4294901760
        %v3098 = vsub.f32 %v3096, %v3097
        %v3099 = vand.u32 %v3098, 4294901760
        %3100 = vmatpush1.msra.mxu0 %v3099
        %3101 = vmatprep.subr.mxu0 0.0
        %3102 = vmatpush2.msra.mxu0 0.0
        %3103 = vmatprep.subr.mxu0 0.0
        %3104 = vmatpush2.msra.mxu0 0.0
        %3105 = vmatprep.subr.mxu0 0.0
        %3106 = vmatpush2.msra.mxu0 0.0
        %3107 = vmatprep.subr.mxu0 0.0
        %3108 = vmatpush2.msra.mxu0 0.0
        %3109 = vmatprep.subr.mxu0 0.0
        %3110 = vmatpush2.msra.mxu0 0.0
        %3111 = vmatprep.subr.mxu0 0.0
        %3112 = vmatpush2.msra.mxu0 0.0
        %3113 = vmatprep.subr.mxu0 0.0
        %3114 = vmatpush2.msra.mxu0 0.0
        %3115 = vmatprep.subr.mxu0 0.0
        %3116 = vmatpush2.msra.mxu0 0.0
        %3117 = vmatprep.subr.mxu0 0.0
        %3118 = vmatpush2.msra.mxu0 0.0
        %3119 = vmatprep.subr.mxu0 0.0
        %3120 = vmatpush2.msra.mxu0 0.0
        %3121 = vmatprep.subr.mxu0 0.0
        %3122 = vmatpush2.msra.mxu0 0.0
        %3123 = vmatprep.subr.mxu0 0.0
        %3124 = vmatpush2.msra.mxu0 0.0
        %3125 = vmatprep.subr.mxu0 0.0
        %3126 = vmatpush2.msra.mxu0 0.0
        %3127 = vmatprep.subr.mxu0 0.0
        %3128 = vmatpush2.msra.mxu0 0.0
        %3129 = vmatprep.subr.mxu0 0.0
        %3130 = vmatpush2.msra.mxu0 0.0
        %3131 = vmatprep.subr.mxu0 0.0
        %3132 = vmatpush2.msra.mxu0 0.0
        %3133 = vmatprep.mubr.f32.mxu0 0.0
        %v3134 = vand.u32 %v680, 4294901760
        %3135 = vmatmul.mubr.f32.gmra.mxu0 %v3134
        %v3136 = vpop.f32.mrf.mxu0
        %v3137 = vadd.f32 %v3023, %v3136
        %v3138 = vpop.f32.mrf.mxu0
        %v3139 = vadd.f32 %v3025, %v3138
        %3140 = vmatprep.mubr.f32.mxu0 0.0
        %v3141 = vand.u32 %v683, 4294901760
        %3142 = vmatmul.mubr.f32.gmra.mxu0 %v3141
        %v3143 = vpop.f32.mrf.mxu0
        %v3144 = vadd.f32 %v3034, %v3143
        %v3145 = vpop.f32.mrf.mxu0
        %v3146 = vadd.f32 %v3036, %v3145
        %3147 = vmatprep.mubr.f32.mxu0 0.0
        %v3148 = vand.u32 %v686, 4294901760
        %3149 = vmatmul.mubr.f32.gmra.mxu0 %v3148
        %v3150 = vpop.f32.mrf.mxu0
        %v3151 = vadd.f32 %v3045, %v3150
        %v3152 = vpop.f32.mrf.mxu0
        %v3153 = vadd.f32 %v3047, %v3152
        %3154 = vdwg.mxu0
        %3155 = vmatprep.subr.mxu0 0.0
        %3156 = vmatpush1.msra.mxu0 0.0
        %3157 = vmatprep.subr.mxu0 0.0
        %3158 = vmatpush1.msra.mxu0 0.0
        %3159 = vmatprep.subr.mxu0 0.0
        %3160 = vmatpush1.msra.mxu0 0.0
        %3161 = vmatprep.subr.mxu0 0.0
        %3162 = vmatpush1.msra.mxu0 0.0
        %3163 = vmatprep.subr.mxu0 0.0
        %3164 = vmatpush1.msra.mxu0 0.0
        %3165 = vmatprep.subr.mxu0 0.0
        %3166 = vmatpush1.msra.mxu0 0.0
        %3167 = vmatprep.subr.mxu0 0.0
        %3168 = vmatpush1.msra.mxu0 0.0
        %3169 = vmatprep.subr.mxu0 0.0
        %3170 = vmatpush1.msra.mxu0 0.0
        %3171 = vmatprep.subr.mxu0 0.0
        %3172 = vmatpush1.msra.mxu0 0.0
        %3173 = vmatprep.subr.mxu0 0.0
        %3174 = vmatpush1.msra.mxu0 0.0
        %3175 = vmatprep.subr.mxu0 0.0
        %3176 = vmatpush1.msra.mxu0 0.0
        %3177 = vmatprep.subr.mxu0 0.0
        %3178 = vmatpush1.msra.mxu0 0.0
        %3179 = vmatprep.subr.mxu0 0.0
        %3180 = vmatpush1.msra.mxu0 0.0
        %3181 = vmatprep.subr.mxu0 0.0
        %3182 = vmatpush1.msra.mxu0 0.0
        %v3183 = vand.u32 %v2357, 4294901760
        %v3184 = vsub.f32 %v2357, %v3183
        %3185 = vmatprep.subr.mxu0 %v3184
        %v3186 = vand.u32 %v2356, 4294901760
        %v3187 = vsub.f32 %v2356, %v3186
        %3188 = vmatpush1.msra.mxu0 %v3187
        %v3189 = vand.u32 %v2353, 4294901760
        %v3190 = vsub.f32 %v2353, %v3189
        %3191 = vmatprep.subr.mxu0 %v3190
        %v3192 = vand.u32 %v2352, 4294901760
        %v3193 = vsub.f32 %v2352, %v3192
        %3194 = vmatpush1.msra.mxu0 %v3193
        %3195 = vmatprep.subr.mxu0 0.0
        %3196 = vmatpush2.msra.mxu0 0.0
        %3197 = vmatprep.subr.mxu0 0.0
        %3198 = vmatpush2.msra.mxu0 0.0
        %3199 = vmatprep.subr.mxu0 0.0
        %3200 = vmatpush2.msra.mxu0 0.0
        %3201 = vmatprep.subr.mxu0 0.0
        %3202 = vmatpush2.msra.mxu0 0.0
        %3203 = vmatprep.subr.mxu0 0.0
        %3204 = vmatpush2.msra.mxu0 0.0
        %3205 = vmatprep.subr.mxu0 0.0
        %3206 = vmatpush2.msra.mxu0 0.0
        %3207 = vmatprep.subr.mxu0 0.0
        %3208 = vmatpush2.msra.mxu0 0.0
        %3209 = vmatprep.subr.mxu0 0.0
        %3210 = vmatpush2.msra.mxu0 0.0
        %3211 = vmatprep.subr.mxu0 0.0
        %3212 = vmatpush2.msra.mxu0 0.0
        %3213 = vmatprep.subr.mxu0 0.0
        %3214 = vmatpush2.msra.mxu0 0.0
        %3215 = vmatprep.subr.mxu0 0.0
        %3216 = vmatpush2.msra.mxu0 0.0
        %3217 = vmatprep.subr.mxu0 0.0
        %3218 = vmatpush2.msra.mxu0 0.0
        %3219 = vmatprep.subr.mxu0 0.0
        %3220 = vmatpush2.msra.mxu0 0.0
        %3221 = vmatprep.subr.mxu0 0.0
        %3222 = vmatpush2.msra.mxu0 0.0
        %3223 = vmatprep.subr.mxu0 0.0
        %3224 = vmatpush2.msra.mxu0 0.0
        %3225 = vmatprep.subr.mxu0 0.0
        %3226 = vmatpush2.msra.mxu0 0.0
        %3227 = vmatprep.mubr.f32.mxu0 0.0
        %v3228 = vand.u32 %v680, 4294901760
        %v3229 = vsub.f32 %v680, %v3228
        %3230 = vmatmul.mubr.f32.gmra.mxu0 %v3229
        %v3231 = vpop.f32.mrf.mxu0
        %v3232 = vadd.f32 %v3137, %v3231
        %v3233 = vpop.f32.mrf.mxu0
        %v3234 = vadd.f32 %v3139, %v3233
        %3235 = vmatprep.mubr.f32.mxu0 0.0
        %v3236 = vand.u32 %v683, 4294901760
        %v3237 = vsub.f32 %v683, %v3236
        %3238 = vmatmul.mubr.f32.gmra.mxu0 %v3237
        %v3239 = vpop.f32.mrf.mxu0
        %v3240 = vadd.f32 %v3144, %v3239
        %v3241 = vpop.f32.mrf.mxu0
        %v3242 = vadd.f32 %v3146, %v3241
        %3243 = vmatprep.mubr.f32.mxu0 0.0
        %v3244 = vand.u32 %v686, 4294901760
        %v3245 = vsub.f32 %v686, %v3244
        %3246 = vmatmul.mubr.f32.gmra.mxu0 %v3245
        %v3247 = vpop.f32.mrf.mxu0
        %v3248 = vadd.f32 %v3151, %v3247
        %v3249 = vpop.f32.mrf.mxu0
        %v3250 = vadd.f32 %v3153, %v3249
        %3251 = vdwg.mxu0
        %3252 = vmatprep.subr.mxu0 0.0
        %3253 = vmatpush1.msra.mxu0 0.0
        %3254 = vmatprep.subr.mxu0 0.0
        %3255 = vmatpush1.msra.mxu0 0.0
        %3256 = vmatprep.subr.mxu0 0.0
        %3257 = vmatpush1.msra.mxu0 0.0
        %3258 = vmatprep.subr.mxu0 0.0
        %3259 = vmatpush1.msra.mxu0 0.0
        %3260 = vmatprep.subr.mxu0 0.0
        %3261 = vmatpush1.msra.mxu0 0.0
        %3262 = vmatprep.subr.mxu0 0.0
        %3263 = vmatpush1.msra.mxu0 0.0
        %3264 = vmatprep.subr.mxu0 0.0
        %3265 = vmatpush1.msra.mxu0 0.0
        %3266 = vmatprep.subr.mxu0 0.0
        %3267 = vmatpush1.msra.mxu0 0.0
        %3268 = vmatprep.subr.mxu0 0.0
        %3269 = vmatpush1.msra.mxu0 0.0
        %3270 = vmatprep.subr.mxu0 0.0
        %3271 = vmatpush1.msra.mxu0 0.0
        %3272 = vmatprep.subr.mxu0 0.0
        %3273 = vmatpush1.msra.mxu0 0.0
        %3274 = vmatprep.subr.mxu0 0.0
        %3275 = vmatpush1.msra.mxu0 0.0
        %3276 = vmatprep.subr.mxu0 0.0
        %3277 = vmatpush1.msra.mxu0 0.0
        %3278 = vmatprep.subr.mxu0 0.0
        %3279 = vmatpush1.msra.mxu0 0.0
        %v3280 = vand.u32 %v2357, 4294901760
        %3281 = vmatprep.subr.mxu0 %v3280
        %v3282 = vand.u32 %v2356, 4294901760
        %3283 = vmatpush1.msra.mxu0 %v3282
        %v3284 = vand.u32 %v2353, 4294901760
        %3285 = vmatprep.subr.mxu0 %v3284
        %v3286 = vand.u32 %v2352, 4294901760
        %3287 = vmatpush1.msra.mxu0 %v3286
        %3288 = vmatprep.subr.mxu0 0.0
        %3289 = vmatpush2.msra.mxu0 0.0
        %3290 = vmatprep.subr.mxu0 0.0
        %3291 = vmatpush2.msra.mxu0 0.0
        %3292 = vmatprep.subr.mxu0 0.0
        %3293 = vmatpush2.msra.mxu0 0.0
        %3294 = vmatprep.subr.mxu0 0.0
        %3295 = vmatpush2.msra.mxu0 0.0
        %3296 = vmatprep.subr.mxu0 0.0
        %3297 = vmatpush2.msra.mxu0 0.0
        %3298 = vmatprep.subr.mxu0 0.0
        %3299 = vmatpush2.msra.mxu0 0.0
        %3300 = vmatprep.subr.mxu0 0.0
        %3301 = vmatpush2.msra.mxu0 0.0
        %3302 = vmatprep.subr.mxu0 0.0
        %3303 = vmatpush2.msra.mxu0 0.0
        %3304 = vmatprep.subr.mxu0 0.0
        %3305 = vmatpush2.msra.mxu0 0.0
        %3306 = vmatprep.subr.mxu0 0.0
        %3307 = vmatpush2.msra.mxu0 0.0
        %3308 = vmatprep.subr.mxu0 0.0
        %3309 = vmatpush2.msra.mxu0 0.0
        %3310 = vmatprep.subr.mxu0 0.0
        %3311 = vmatpush2.msra.mxu0 0.0
        %3312 = vmatprep.subr.mxu0 0.0
        %3313 = vmatpush2.msra.mxu0 0.0
        %3314 = vmatprep.subr.mxu0 0.0
        %3315 = vmatpush2.msra.mxu0 0.0
        %3316 = vmatprep.subr.mxu0 0.0
        %3317 = vmatpush2.msra.mxu0 0.0
        %3318 = vmatprep.subr.mxu0 0.0
        %3319 = vmatpush2.msra.mxu0 0.0
        %3320 = vmatprep.mubr.f32.mxu0 0.0
        %v3321 = vand.u32 %v680, 4294901760
        %v3322 = vsub.f32 %v680, %v3321
        %v3323 = vand.u32 %v3322, 4294901760
        %3324 = vmatmul.mubr.f32.gmra.mxu0 %v3323
        %v3325 = vpop.f32.mrf.mxu0
        %v3326 = vadd.f32 %v3232, %v3325
        %v3327 = vpop.f32.mrf.mxu0
        %v3328 = vadd.f32 %v3234, %v3327
        %3329 = vmatprep.mubr.f32.mxu0 0.0
        %v3330 = vand.u32 %v683, 4294901760
        %v3331 = vsub.f32 %v683, %v3330
        %v3332 = vand.u32 %v3331, 4294901760
        %3333 = vmatmul.mubr.f32.gmra.mxu0 %v3332
        %v3334 = vpop.f32.mrf.mxu0
        %v3335 = vadd.f32 %v3240, %v3334
        %v3336 = vpop.f32.mrf.mxu0
        %v3337 = vadd.f32 %v3242, %v3336
        %3338 = vmatprep.mubr.f32.mxu0 0.0
        %v3339 = vand.u32 %v686, 4294901760
        %v3340 = vsub.f32 %v686, %v3339
        %v3341 = vand.u32 %v3340, 4294901760
        %3342 = vmatmul.mubr.f32.gmra.mxu0 %v3341
        %v3343 = vpop.f32.mrf.mxu0
        %v3344 = vadd.f32 %v3248, %v3343
        %v3345 = vpop.f32.mrf.mxu0
        %v3346 = vadd.f32 %v3250, %v3345
        %3347 = vdwg.mxu0
        %3348 = vmatprep.subr.mxu0 0.0
        %3349 = vmatpush1.msra.mxu0 0.0
        %3350 = vmatprep.subr.mxu0 0.0
        %3351 = vmatpush1.msra.mxu0 0.0
        %3352 = vmatprep.subr.mxu0 0.0
        %3353 = vmatpush1.msra.mxu0 0.0
        %3354 = vmatprep.subr.mxu0 0.0
        %3355 = vmatpush1.msra.mxu0 0.0
        %3356 = vmatprep.subr.mxu0 0.0
        %3357 = vmatpush1.msra.mxu0 0.0
        %3358 = vmatprep.subr.mxu0 0.0
        %3359 = vmatpush1.msra.mxu0 0.0
        %3360 = vmatprep.subr.mxu0 0.0
        %3361 = vmatpush1.msra.mxu0 0.0
        %3362 = vmatprep.subr.mxu0 0.0
        %3363 = vmatpush1.msra.mxu0 0.0
        %3364 = vmatprep.subr.mxu0 0.0
        %3365 = vmatpush1.msra.mxu0 0.0
        %3366 = vmatprep.subr.mxu0 0.0
        %3367 = vmatpush1.msra.mxu0 0.0
        %3368 = vmatprep.subr.mxu0 0.0
        %3369 = vmatpush1.msra.mxu0 0.0
        %3370 = vmatprep.subr.mxu0 0.0
        %3371 = vmatpush1.msra.mxu0 0.0
        %3372 = vmatprep.subr.mxu0 0.0
        %3373 = vmatpush1.msra.mxu0 0.0
        %3374 = vmatprep.subr.mxu0 0.0
        %3375 = vmatpush1.msra.mxu0 0.0
        %v3376 = vand.u32 %v2357, 4294901760
        %v3377 = vsub.f32 %v2357, %v3376
        %v3378 = vand.u32 %v3377, 4294901760
        %3379 = vmatprep.subr.mxu0 %v3378
        %v3380 = vand.u32 %v2356, 4294901760
        %v3381 = vsub.f32 %v2356, %v3380
        %v3382 = vand.u32 %v3381, 4294901760
        %3383 = vmatpush1.msra.mxu0 %v3382
        %v3384 = vand.u32 %v2353, 4294901760
        %v3385 = vsub.f32 %v2353, %v3384
        %v3386 = vand.u32 %v3385, 4294901760
        %3387 = vmatprep.subr.mxu0 %v3386
        %v3388 = vand.u32 %v2352, 4294901760
        %v3389 = vsub.f32 %v2352, %v3388
        %v3390 = vand.u32 %v3389, 4294901760
        %3391 = vmatpush1.msra.mxu0 %v3390
        %3392 = vmatprep.subr.mxu0 0.0
        %3393 = vmatpush2.msra.mxu0 0.0
        %3394 = vmatprep.subr.mxu0 0.0
        %3395 = vmatpush2.msra.mxu0 0.0
        %3396 = vmatprep.subr.mxu0 0.0
        %3397 = vmatpush2.msra.mxu0 0.0
        %3398 = vmatprep.subr.mxu0 0.0
        %3399 = vmatpush2.msra.mxu0 0.0
        %3400 = vmatprep.subr.mxu0 0.0
        %3401 = vmatpush2.msra.mxu0 0.0
        %3402 = vmatprep.subr.mxu0 0.0
        %3403 = vmatpush2.msra.mxu0 0.0
        %3404 = vmatprep.subr.mxu0 0.0
        %3405 = vmatpush2.msra.mxu0 0.0
        %3406 = vmatprep.subr.mxu0 0.0
        %3407 = vmatpush2.msra.mxu0 0.0
        %3408 = vmatprep.subr.mxu0 0.0
        %3409 = vmatpush2.msra.mxu0 0.0
        %3410 = vmatprep.subr.mxu0 0.0
        %3411 = vmatpush2.msra.mxu0 0.0
        %3412 = vmatprep.subr.mxu0 0.0
        %3413 = vmatpush2.msra.mxu0 0.0
        %3414 = vmatprep.subr.mxu0 0.0
        %3415 = vmatpush2.msra.mxu0 0.0
        %3416 = vmatprep.subr.mxu0 0.0
        %3417 = vmatpush2.msra.mxu0 0.0
        %3418 = vmatprep.subr.mxu0 0.0
        %3419 = vmatpush2.msra.mxu0 0.0
        %3420 = vmatprep.subr.mxu0 0.0
        %3421 = vmatpush2.msra.mxu0 0.0
        %3422 = vmatprep.subr.mxu0 0.0
        %3423 = vmatpush2.msra.mxu0 0.0
        %3424 = vmatprep.mubr.f32.mxu0 0.0
        %v3425 = vand.u32 %v680, 4294901760
        %3426 = vmatmul.mubr.f32.gmra.mxu0 %v3425
        %v3427 = vpop.f32.mrf.mxu0
        %v3428 = vadd.f32 %v3326, %v3427
        %v3429 = vpop.f32.mrf.mxu0
        %v3430 = vadd.f32 %v3328, %v3429
        %3431 = vmatprep.mubr.f32.mxu0 0.0
        %v3432 = vand.u32 %v683, 4294901760
        %3433 = vmatmul.mubr.f32.gmra.mxu0 %v3432
        %v3434 = vpop.f32.mrf.mxu0
        %v3435 = vadd.f32 %v3335, %v3434
        %v3436 = vpop.f32.mrf.mxu0
        %v3437 = vadd.f32 %v3337, %v3436
        %3438 = vmatprep.mubr.f32.mxu0 0.0
        %v3439 = vand.u32 %v686, 4294901760
        %3440 = vmatmul.mubr.f32.gmra.mxu0 %v3439
        %v3441 = vpop.f32.mrf.mxu0
        %v3442 = vadd.f32 %v3344, %v3441
        %v3443 = vpop.f32.mrf.mxu0
        %v3444 = vadd.f32 %v3346, %v3443
        %3445 = vdwg.mxu0
        %3446 = vmatprep.subr.mxu0 0.0
        %3447 = vmatpush1.msra.mxu0 0.0
        %3448 = vmatprep.subr.mxu0 0.0
        %3449 = vmatpush1.msra.mxu0 0.0
        %3450 = vmatprep.subr.mxu0 0.0
        %3451 = vmatpush1.msra.mxu0 0.0
        %3452 = vmatprep.subr.mxu0 0.0
        %3453 = vmatpush1.msra.mxu0 0.0
        %3454 = vmatprep.subr.mxu0 0.0
        %3455 = vmatpush1.msra.mxu0 0.0
        %3456 = vmatprep.subr.mxu0 0.0
        %3457 = vmatpush1.msra.mxu0 0.0
        %3458 = vmatprep.subr.mxu0 0.0
        %3459 = vmatpush1.msra.mxu0 0.0
        %3460 = vmatprep.subr.mxu0 0.0
        %3461 = vmatpush1.msra.mxu0 0.0
        %3462 = vmatprep.subr.mxu0 0.0
        %3463 = vmatpush1.msra.mxu0 0.0
        %3464 = vmatprep.subr.mxu0 0.0
        %3465 = vmatpush1.msra.mxu0 0.0
        %3466 = vmatprep.subr.mxu0 0.0
        %3467 = vmatpush1.msra.mxu0 0.0
        %3468 = vmatprep.subr.mxu0 0.0
        %3469 = vmatpush1.msra.mxu0 0.0
        %3470 = vmatprep.subr.mxu0 0.0
        %3471 = vmatpush1.msra.mxu0 0.0
        %3472 = vmatprep.subr.mxu0 0.0
        %3473 = vmatpush1.msra.mxu0 0.0
        %v3474 = vand.u32 %v2357, 4294901760
        %3475 = vmatprep.subr.mxu0 %v3474
        %v3476 = vand.u32 %v2356, 4294901760
        %3477 = vmatpush1.msra.mxu0 %v3476
        %v3478 = vand.u32 %v2353, 4294901760
        %3479 = vmatprep.subr.mxu0 %v3478
        %v3480 = vand.u32 %v2352, 4294901760
        %3481 = vmatpush1.msra.mxu0 %v3480
        %3482 = vmatprep.subr.mxu0 0.0
        %3483 = vmatpush2.msra.mxu0 0.0
        %3484 = vmatprep.subr.mxu0 0.0
        %3485 = vmatpush2.msra.mxu0 0.0
        %3486 = vmatprep.subr.mxu0 0.0
        %3487 = vmatpush2.msra.mxu0 0.0
        %3488 = vmatprep.subr.mxu0 0.0
        %3489 = vmatpush2.msra.mxu0 0.0
        %3490 = vmatprep.subr.mxu0 0.0
        %3491 = vmatpush2.msra.mxu0 0.0
        %3492 = vmatprep.subr.mxu0 0.0
        %3493 = vmatpush2.msra.mxu0 0.0
        %3494 = vmatprep.subr.mxu0 0.0
        %3495 = vmatpush2.msra.mxu0 0.0
        %3496 = vmatprep.subr.mxu0 0.0
        %3497 = vmatpush2.msra.mxu0 0.0
        %3498 = vmatprep.subr.mxu0 0.0
        %3499 = vmatpush2.msra.mxu0 0.0
        %3500 = vmatprep.subr.mxu0 0.0
        %3501 = vmatpush2.msra.mxu0 0.0
        %3502 = vmatprep.subr.mxu0 0.0
        %3503 = vmatpush2.msra.mxu0 0.0
        %3504 = vmatprep.subr.mxu0 0.0
        %3505 = vmatpush2.msra.mxu0 0.0
        %3506 = vmatprep.subr.mxu0 0.0
        %3507 = vmatpush2.msra.mxu0 0.0
        %3508 = vmatprep.subr.mxu0 0.0
        %3509 = vmatpush2.msra.mxu0 0.0
        %3510 = vmatprep.subr.mxu0 0.0
        %3511 = vmatpush2.msra.mxu0 0.0
        %3512 = vmatprep.subr.mxu0 0.0
        %3513 = vmatpush2.msra.mxu0 0.0
        %3514 = vmatprep.mubr.f32.mxu0 0.0
        %v3515 = vand.u32 %v680, 4294901760
        %3516 = vmatmul.mubr.f32.gmra.mxu0 %v3515
        %v3517 = vpop.f32.mrf.mxu0
        %v3518 = vadd.f32 %v3428, %v3517
        %v3519 = vpop.f32.mrf.mxu0
        %v3520 = vadd.f32 %v3430, %v3519
        %3521 = vmatprep.mubr.f32.mxu0 0.0
        %v3522 = vand.u32 %v683, 4294901760
        %3523 = vmatmul.mubr.f32.gmra.mxu0 %v3522
        %v3524 = vpop.f32.mrf.mxu0
        %v3525 = vadd.f32 %v3435, %v3524
        %v3526 = vpop.f32.mrf.mxu0
        %v3527 = vadd.f32 %v3437, %v3526
        %3528 = vmatprep.mubr.f32.mxu0 0.0
        %v3529 = vand.u32 %v686, 4294901760
        %3530 = vmatmul.mubr.f32.gmra.mxu0 %v3529
        %v3531 = vpop.f32.mrf.mxu0
        %v3532 = vadd.f32 %v3442, %v3531
        %v3533 = vpop.f32.mrf.mxu0
        %v3534 = vadd.f32 %v3444, %v3533
        %3535 = vdwg.mxu0
        %s3536 = sadd.s32 %s435, 512
        %v3537 = vstv %s3536
        %v3538 = vadd.s32 %v1867, %v3537
        %v3539 = vadd.s32 %v1868, %v3537
        %v3540 = vadd.s32 %v1869, %v3537
        %v3541 = vadd.s32 %v1870, %v3537
        %v3542 = vcvt.s32.f32 %v3538
        %v3543 = vcvt.s32.f32 %v3539
        %v3544 = vcvt.s32.f32 %v3540
        %v3545 = vcvt.s32.f32 %v3541
        %v3546 = vadd.f32 %v3542, 0.5
        %v3547 = vadd.f32 %v3543, 0.5
        %v3548 = vadd.f32 %v3544, 0.5
        %v3549 = vadd.f32 %v3545, 0.5
        %v3550 = vmul.f32 %v3546, %v1884
        %v3551 = vmul.f32 %v3547, %v1884
        %v3552 = vmul.f32 %v3548, %v1884
        %v3553 = vmul.f32 %v3549, %v1884
        %v3554 = vfloor.f32 %v3550
        %v3555 = vfloor.f32 %v3551
        %v3556 = vfloor.f32 %v3552
        %v3557 = vfloor.f32 %v3553
        %v3558 = vmul.f32 %v3554, %v1893
        %v3559 = vmul.f32 %v3555, %v1893
        %v3560 = vmul.f32 %v3556, %v1893
        %v3561 = vmul.f32 %v3557, %v1893
        %v3562 = vsub.f32 %v3542, %v3558
        %v3563 = vsub.f32 %v3543, %v3559
        %v3564 = vsub.f32 %v3544, %v3560
        %v3565 = vsub.f32 %v3545, %v3561
        %v3566 = vadd.f32 %v3562, 0.5
        %v3567 = vadd.f32 %v3563, 0.5
        %v3568 = vadd.f32 %v3564, 0.5
        %v3569 = vadd.f32 %v3565, 0.5
        %v3570 = vmul.f32 %v3566, %v1906
        %v3571 = vmul.f32 %v3567, %v1906
        %v3572 = vmul.f32 %v3568, %v1906
        %v3573 = vmul.f32 %v3569, %v1906
        %v3574 = vfloor.f32 %v3570
        %v3575 = vfloor.f32 %v3571
        %v3576 = vfloor.f32 %v3572
        %v3577 = vfloor.f32 %v3573
        %v3578 = vmul.f32 %v3574, %v1915
        %v3579 = vmul.f32 %v3575, %v1915
        %v3580 = vmul.f32 %v3576, %v1915
        %v3581 = vmul.f32 %v3577, %v1915
        %v3582 = vsub.f32 %v3562, %v3578
        %v3583 = vsub.f32 %v3563, %v3579
        %v3584 = vsub.f32 %v3564, %v3580
        %v3585 = vsub.f32 %v3565, %v3581
        %v3586 = vxor.u32 %v2929, 2147483648
        %v3587 = vxor.u32 %v2931, 2147483648
        %v3588 = vxor.u32 %v3518, 2147483648
        %v3589 = vxor.u32 %v3520, 2147483648
        %v3590 = vmul.f32 %v3586, 1.442695
        %v3591 = vpow.pop %v3590
        %v3592 = vmul.f32 %v3587, 1.442695
        %v3593 = vpow.pop %v3592
        %v3594 = vmul.f32 %v3588, 1.442695
        %v3595 = vpow.pop %v3594
        %v3596 = vmul.f32 %v3589, 1.442695
        %v3597 = vpow.pop %v3596
        %v3598 = vadd.f32 %v3591, 1.0
        %v3599 = vadd.f32 %v3593, 1.0
        %v3600 = vadd.f32 %v3595, 1.0
        %v3601 = vadd.f32 %v3597, 1.0
        %v3602 = vrcp.pop %v3598
        %v3603 = vmul.f32 1.0, %v3602
        %v3604 = vrcp.pop %v3599
        %v3605 = vmul.f32 1.0, %v3604
        %v3606 = vrcp.pop %v3600
        %v3607 = vmul.f32 1.0, %v3606
        %v3608 = vrcp.pop %v3601
        %v3609 = vmul.f32 1.0, %v3608
        %vm3610 = vcmp.gt.f32.partialorder %v2929, %v1948
        %vm3611 = vcmp.gt.f32.partialorder %v2931, %v1948
        %vm3612 = vcmp.gt.f32.partialorder %v3518, %v1948
        %vm3613 = vcmp.gt.f32.partialorder %v3520, %v1948
        %v3614 = vsel %vm3610, 1, 0
        %v3615 = vsel %vm3611, 1, 0
        %v3616 = vsel %vm3612, 1, 0
        %v3617 = vsel %vm3613, 1, 0
        %v3618 = vcvt.s32.f32 %v3614
        %v3619 = vcvt.s32.f32 %v3615
        %v3620 = vcvt.s32.f32 %v3616
        %v3621 = vcvt.s32.f32 %v3617
        %v3622 = vadd.f32 %v3582, %v2929
        %v3623 = vadd.f32 %v3583, %v2931
        %v3624 = vadd.f32 %v3584, %v3518
        %v3625 = vadd.f32 %v3585, %v3520
        %v3626 = vmul.f32 %v3622, %v1965
        %v3627 = vmul.f32 %v3623, %v1965
        %v3628 = vmul.f32 %v3624, %v1965
        %v3629 = vmul.f32 %v3625, %v1965
        %v3630 = vadd.f32 %v3574, %v2929
        %v3631 = vadd.f32 %v3575, %v2931
        %v3632 = vadd.f32 %v3576, %v3518
        %v3633 = vadd.f32 %v3577, %v3520
        %v3634 = vadd.f32 %v3574, %v2936
        %v3635 = vadd.f32 %v3575, %v2938
        %v3636 = vadd.f32 %v3576, %v3525
        %v3637 = vadd.f32 %v3577, %v3527
        %v3638 = vmul.f32 %v3630, %v1965
        %v3639 = vmul.f32 %v3631, %v1965
        %v3640 = vmul.f32 %v3632, %v1965
        %v3641 = vmul.f32 %v3633, %v1965
        %v3642 = vmul.f32 %v3634, %v1965
        %v3643 = vmul.f32 %v3635, %v1965
        %v3644 = vmul.f32 %v3636, %v1965
        %v3645 = vmul.f32 %v3637, %v1965
        %v3646 = vmul.f32 %v2936, 1.442695
        %v3647 = vpow.pop %v3646
        %v3648 = vmul.f32 %v2938, 1.442695
        %v3649 = vpow.pop %v3648
        %v3650 = vmul.f32 %v3525, 1.442695
        %v3651 = vpow.pop %v3650
        %v3652 = vmul.f32 %v3527, 1.442695
        %v3653 = vpow.pop %v3652
        %v3658 = vrot.slane %v3647, 1
        %v3659 = vrot.slane %v3649, 1
        %v3660 = vrot.slane %v3651, 1
        %v3661 = vrot.slane %v3653, 1
        %v3666 = vmul.f32 %v1997, %v3658
        %v3667 = vmul.f32 %v1997, %v3659
        %v3668 = vmul.f32 %v1997, %v3660
        %v3669 = vmul.f32 %v1997, %v3661
        %v3678 = vrot.slane %v2936, 5
        %v3679 = vrot.slane %v2943, 5
        %v3680 = vsel %vm2023, %v3678, %v3679
        %v3681 = vrot.slane %v2938, 5
        %v3682 = vrot.slane %v2945, 5
        %v3683 = vsel %vm2023, %v3681, %v3682
        %v3684 = vrot.slane %v3525, 5
        %v3685 = vrot.slane %v3532, 5
        %v3686 = vsel %vm2023, %v3684, %v3685
        %v3687 = vrot.slane %v3527, 5
        %v3688 = vrot.slane %v3534, 5
        %v3689 = vsel %vm2023, %v3687, %v3688
        %vm3694 = vcmp.gt.f32.partialorder %v2943, %v3680
        %vm3695 = vcmp.gt.f32.partialorder %v2945, %v3683
        %vm3696 = vcmp.gt.f32.partialorder %v3532, %v3686
        %vm3697 = vcmp.gt.f32.partialorder %v3534, %v3689
        %v3698 = vsel %vm3694, 1.0, 0.0
        %v3699 = vsel %vm3695, 1.0, 0.0
        %v3700 = vsel %vm3696, 1.0, 0.0
        %v3701 = vsel %vm3697, 1.0, 0.0
        %v3702 = vrot.slane %v2943, 3
        %v3703 = vrot.slane %v2945, 3
        %v3704 = vrot.slane %v3532, 3
        %v3705 = vrot.slane %v3534, 3
        %v3710 = vmax.f32 %v2936, %v3702
        %v3711 = vmax.f32 %v2938, %v3703
        %v3712 = vmax.f32 %v3525, %v3704
        %v3713 = vmax.f32 %v3527, %v3705
        %v3714 = vmax.f32 %v2943, %v3702
        %v3715 = vmax.f32 %v2945, %v3703
        %v3716 = vmax.f32 %v3532, %v3704
        %v3717 = vmax.f32 %v3534, %v3705
        %v3726 = vrot.slane %v3710, 2
        %v3727 = vrot.slane %v3714, 2
        %v3728 = vsel %vm2072, %v3726, %v3727
        %v3729 = vrot.slane %v3711, 2
        %v3730 = vrot.slane %v3715, 2
        %v3731 = vsel %vm2072, %v3729, %v3730
        %v3732 = vrot.slane %v3712, 2
        %v3733 = vrot.slane %v3716, 2
        %v3734 = vsel %vm2072, %v3732, %v3733
        %v3735 = vrot.slane %v3713, 2
        %v3736 = vrot.slane %v3717, 2
        %v3737 = vsel %vm2072, %v3735, %v3736
        %vm3742 = vcmp.gt.f32.partialorder %v2943, %v3728
        %vm3743 = vcmp.gt.f32.partialorder %v2945, %v3731
        %vm3744 = vcmp.gt.f32.partialorder %v3532, %v3734
        %vm3745 = vcmp.gt.f32.partialorder %v3534, %v3737
        %v3750 = vrot.slane %v3698, 5
        %v3751 = vrot.slane %v3699, 5
        %v3752 = vrot.slane %v3700, 5
        %v3753 = vrot.slane %v3701, 5
        %v3758 = vsel %vm3742, 2.0, %v3750
        %v3759 = vsel %vm3743, 2.0, %v3751
        %v3760 = vsel %vm3744, 2.0, %v3752
        %v3761 = vsel %vm3745, 2.0, %v3753
        %v3766 = vrot.slane %v3666, 7
        %v3767 = vrot.slane %v3667, 7
        %v3768 = vrot.slane %v3668, 7
        %v3769 = vrot.slane %v3669, 7
        %v3778 = vrot.slane %v3758, 6
        %v3779 = vrot.slane %v3759, 6
        %v3780 = vrot.slane %v3760, 6
        %v3781 = vrot.slane %v3761, 6
        %v3790 = vrot.slane %v3618, 6
        %v3791 = vrot.slane %v3619, 6
        %v3792 = vrot.slane %v3620, 6
        %v3793 = vrot.slane %v3621, 6
        %v3798 = vsel %vm2023, %v3603, %v3626
        %v3799 = vsel %vm2023, %v3605, %v3627
        %v3800 = vsel %vm2023, %v3607, %v3628
        %v3801 = vsel %vm2023, %v3609, %v3629
        %v3802 = vsel %vm2072, %v3798, %v3638
        %v3803 = vsel %vm2072, %v3799, %v3639
        %v3804 = vsel %vm2072, %v3800, %v3640
        %v3805 = vsel %vm2072, %v3801, %v3641
        %v3806 = vsel %vm2153, %v3642, %v3766
        %v3807 = vsel %vm2153, %v3643, %v3767
        %v3808 = vsel %vm2153, %v3644, %v3768
        %v3809 = vsel %vm2153, %v3645, %v3769
        %v3810 = vsel %vm2158, %v3806, %v3766
        %v3811 = vsel %vm2158, %v3807, %v3767
        %v3812 = vsel %vm2158, %v3808, %v3768
        %v3813 = vsel %vm2158, %v3809, %v3769
        %v3814 = vsel %vm2163, %v3810, %v3778
        %v3815 = vsel %vm2163, %v3811, %v3779
        %v3816 = vsel %vm2163, %v3812, %v3780
        %v3817 = vsel %vm2163, %v3813, %v3781
        %v3818 = vsel %vm2168, %v3778, %v3790
        %v3819 = vsel %vm2168, %v3779, %v3791
        %v3820 = vsel %vm2168, %v3780, %v3792
        %v3821 = vsel %vm2168, %v3781, %v3793
        %v3822 = vsel %vm2173, %v3818, 0.0
        %v3823 = vsel %vm2173, %v3819, 0.0
        %v3824 = vsel %vm2173, %v3820, 0.0
        %v3825 = vsel %vm2173, %v3821, 0.0
        %3826 = vst [vmem:[%s392 + $0x20] sm:$0xff] %v3802
        %3827 = vst [vmem:[%s392 + $0x28] sm:$0xff] %v3803
        %3828 = vst [vmem:[%s392 + $0x30] sm:$0xff] %v3804
        %3829 = vst [vmem:[%s392 + $0x38] sm:$0xff] %v3805
        %3830 = vst [vmem:[%s392 + $0x60] sm:$0xff] %v3814
        %3831 = vst [vmem:[%s392 + $0x68] sm:$0xff] %v3815
        %3832 = vst [vmem:[%s392 + $0x70] sm:$0xff] %v3816
        %3833 = vst [vmem:[%s392 + $0x78] sm:$0xff] %v3817
        %3834 = vst [vmem:[%s392 + $0xa0] sm:$0xff] %v3822
        %3835 = vst [vmem:[%s392 + $0xa8] sm:$0xff] %v3823
        %3836 = vst [vmem:[%s392 + $0xb0] sm:$0xff] %v3824
        %3837 = vst [vmem:[%s392 + $0xb8] sm:$0xff] %v3825
        %s3838 = sand.u32 %s226, 1
        %s3839 = sand.u32 %s226, 1
        %s3840 = smul.addr %s3839, 192
        %s3841 = scalar_lea.vmem [#allocation7], %s3840
        // Predicated region
        $region53: #{_forward_device.1} parent=47 // pred_check
          %p3842 = pneg %p236
        $region54: #{_forward_device.1} parent=47 // pred_check_branch
          %3844 = sbr.rel (%p3842) target = $region56
        $region55: #{_forward_device.1} parent=47 // pred_region
          %s3845 = smul.u32 8, %s31
          %s3846 = smul.addr %s3845, 8
          %s3847 = scalar_lea.vmem %s9, %s3846
          // Predicated region
          $region57: #{_forward_device.1} parent=55 // pred_check
            _
          $region58: #{_forward_device.1} parent=55 // pred_check_branch
            %3849 = sbr.rel (0) target = $region60
          $region59: #{_forward_device.1} parent=55 // pred_region
            // Predicated region
            $region61: #{_forward_device.1} parent=59 // pred_check
              _
            $region62: #{_forward_device.1} parent=59 // pred_check_branch
              %3851 = sbr.rel (0) target = $region64
            $region63: #{_forward_device.1} parent=59 // pred_region
              loop: start=0, step=1, limit=1
              $region65: #{_forward_device.1} parent=63 // loop_pre_header
                _
              $region66: #{_forward_device.1} parent=63 // loop_header
                %s3853 = sphi 0, %s3857
                %p3854 = scmp.ge.s32.totalorder %s3853, 1
                %s3858 = sphi %s3841, %s3841
                %s3859 = sphi %s3847, %s3847
              $region67: #{_forward_device.1} parent=63 // loop_header_branch
                %3856 = sbr.rel (%p3854) target = $region71
              $region68: #{_forward_device.1} parent=63 // loop_body
                %v3860 = vld [vmem:[%s3858] sm:$0xff]
                %3861 = vst [vmem:[%s3859] sm:$0xff] %v3860
                %v3862 = vld [vmem:[%s3858 + $0x8] sm:$0xff]
                %3863 = vst [vmem:[%s3859 + $0x8] sm:$0xff] %v3862
                %v3864 = vld [vmem:[%s3858 + $0x10] sm:$0xff]
                %3865 = vst [vmem:[%s3859 + $0x10] sm:$0xff] %v3864
                %v3866 = vld [vmem:[%s3858 + $0x18] sm:$0xff]
                %3867 = vst [vmem:[%s3859 + $0x18] sm:$0xff] %v3866
                %v3868 = vld [vmem:[%s3858 + $0x20] sm:$0xff]
                %3869 = vst [vmem:[%s3859 + $0x20] sm:$0xff] %v3868
                %v3870 = vld [vmem:[%s3858 + $0x28] sm:$0xff]
                %3871 = vst [vmem:[%s3859 + $0x28] sm:$0xff] %v3870
                %v3872 = vld [vmem:[%s3858 + $0x30] sm:$0xff]
                %3873 = vst [vmem:[%s3859 + $0x30] sm:$0xff] %v3872
                %v3874 = vld [vmem:[%s3858 + $0x38] sm:$0xff]
                %3875 = vst [vmem:[%s3859 + $0x38] sm:$0xff] %v3874
                %v3876 = vld [vmem:[%s3858 + $0x40] sm:$0xff]
                %3877 = vst [vmem:[%s3859 + $0xc0] sm:$0xff] %v3876
                %v3878 = vld [vmem:[%s3858 + $0x48] sm:$0xff]
                %3879 = vst [vmem:[%s3859 + $0xc8] sm:$0xff] %v3878
                %v3880 = vld [vmem:[%s3858 + $0x50] sm:$0xff]
                %3881 = vst [vmem:[%s3859 + $0xd0] sm:$0xff] %v3880
                %v3882 = vld [vmem:[%s3858 + $0x58] sm:$0xff]
                %3883 = vst [vmem:[%s3859 + $0xd8] sm:$0xff] %v3882
                %v3884 = vld [vmem:[%s3858 + $0x60] sm:$0xff]
                %3885 = vst [vmem:[%s3859 + $0xe0] sm:$0xff] %v3884
                %v3886 = vld [vmem:[%s3858 + $0x68] sm:$0xff]
                %3887 = vst [vmem:[%s3859 + $0xe8] sm:$0xff] %v3886
                %v3888 = vld [vmem:[%s3858 + $0x70] sm:$0xff]
                %3889 = vst [vmem:[%s3859 + $0xf0] sm:$0xff] %v3888
                %v3890 = vld [vmem:[%s3858 + $0x78] sm:$0xff]
                %3891 = vst [vmem:[%s3859 + $0xf8] sm:$0xff] %v3890
                %v3892 = vld [vmem:[%s3858 + $0x80] sm:$0xff]
                %3893 = vst [vmem:[%s3859 + $0x180] sm:$0xff] %v3892
                %v3894 = vld [vmem:[%s3858 + $0x88] sm:$0xff]
                %3895 = vst [vmem:[%s3859 + $0x188] sm:$0xff] %v3894
                %v3896 = vld [vmem:[%s3858 + $0x90] sm:$0xff]
                %3897 = vst [vmem:[%s3859 + $0x190] sm:$0xff] %v3896
                %v3898 = vld [vmem:[%s3858 + $0x98] sm:$0xff]
                %3899 = vst [vmem:[%s3859 + $0x198] sm:$0xff] %v3898
                %v3900 = vld [vmem:[%s3858 + $0xa0] sm:$0xff]
                %3901 = vst [vmem:[%s3859 + $0x1a0] sm:$0xff] %v3900
                %v3902 = vld [vmem:[%s3858 + $0xa8] sm:$0xff]
                %3903 = vst [vmem:[%s3859 + $0x1a8] sm:$0xff] %v3902
                %v3904 = vld [vmem:[%s3858 + $0xb0] sm:$0xff]
                %3905 = vst [vmem:[%s3859 + $0x1b0] sm:$0xff] %v3904
                %v3906 = vld [vmem:[%s3858 + $0xb8] sm:$0xff]
                %3907 = vst [vmem:[%s3859 + $0x1b8] sm:$0xff] %v3906
              $region69: #{_forward_device.1} parent=63 // loop_footer
                %s3857 = sadd.s32 1, %s3853
              $region70: #{_forward_device.1} parent=63 // loop_footer_branch
                %3852 = sbr.rel target = $region66
              $region71: #{_forward_device.1} parent=63 // loop_exit
                _
            $region64: #{_forward_device.1} parent=59 // pred_fallthru
              _
            // Predicated region
            $region72: #{_forward_device.1} parent=59 // pred_check
              _
            $region73: #{_forward_device.1} parent=59 // pred_check_branch
              %3909 = sbr.rel target = $region75
            $region74: #{_forward_device.1} parent=59 // pred_region
              _
            $region75: #{_forward_device.1} parent=59 // pred_fallthru
              _
          $region60: #{_forward_device.1} parent=55 // pred_fallthru
            _
          %3910 = vnop
        $region56: #{_forward_device.1} parent=47 // pred_fallthru
          _
      $region48: #{_forward_device.1} parent=5 // pred_fallthru
        _
      %p3911 = scmp.le.s32.totalorder 2, %s26
      // Predicated region
      $region76: #{_forward_device.1} parent=5 // pred_check
        %p3912 = pneg %p3911
      $region77: #{_forward_device.1} parent=5 // pred_check_branch
        %3914 = sbr.rel (%p3912) target = $region79
      $region78: #{_forward_device.1} parent=5 // pred_region
        %s3915 = ssub.s32 %s26, 2
        // Predicated region
        $region80: #{_forward_device.1} parent=78 // pred_check
          %p3916 = pneg %p242
        $region81: #{_forward_device.1} parent=78 // pred_check_branch
          %3918 = sbr.rel (%p3916) target = $region83
        $region82: #{_forward_device.1} parent=78 // pred_region
          %s3919 = sand.u32 %s227, 1
          %s3920 = sand.u32 %s227, 1
          %s3921 = smul.addr %s3920, 192
          %s3922 = scalar_lea.vmem [#allocation7], %s3921
        $region83: #{_forward_device.1} parent=78 // pred_fallthru
          _
      $region79: #{_forward_device.1} parent=5 // pred_fallthru
        _
    $region6: #{_forward_device.1} parent=1 // loop_footer
      %s30 = sadd.s32 1, %s26
    $region7: #{_forward_device.1} parent=1 // loop_footer_branch
      %25 = sbr.rel target = $region3
    $region8: #{_forward_device.1} parent=1 // loop_exit
      _
    %3923 = vsyncpa [#allocation6], 1
    %s3924 = scalar_lea.sflag [#allocation6], 1
    %3925 = vsyncpa %s3924, 1

</llo_original>
